<compile_context>
chip_gen: v7x
topology: tpu7x:2x2x1
jax: 0.10.0
libtpu: 0.0.40
codegen_flags: <defaults>
</compile_context>

<pallas_src>
import jax
import jax.numpy as jnp
import numpy as np
from jax.experimental import pallas as pl
from jax.experimental.pallas import tpu as pltpu

EPS = 1e-5


def _swish(z):
    return z * jax.nn.sigmoid(z)


def _bn_swish(y, gamma, beta):
    # BatchNorm1d (training mode: batch stats, biased variance) followed by swish.
    mu = jnp.mean(y, axis=0, keepdims=True)
    var = jnp.mean(jnp.square(y - mu), axis=0, keepdims=True)
    z = (y - mu) * jax.lax.rsqrt(var + EPS) * gamma + beta
    return _swish(z)


def split_model_kernel(
    x_ref,
    w1_ref, b1_ref, g1_ref, be1_ref,
    w2_ref, b2_ref, g2_ref, be2_ref,
    w3_ref, b3_ref, g3_ref, be3_ref,
    w4_ref, b4_ref, g4_ref, be4_ref,
    wih_cat_ref, bias_cat_ref,          # (F, 8H), (1, 8H): [forward | backward]
    whh_f_ref, whh_b_ref,               # (H, 4H) each
    g5f_ref, be5f_ref, g5b_ref, be5b_ref,
    out_ref,
    gx_scr, hf_scr, hb_scr,
):
    x = x_ref[...]

    # --- MLP stack: Linear -> BN(batch stats) -> swish, four times ---
    h1 = _bn_swish(
        jnp.dot(x, w1_ref[...], preferred_element_type=jnp.float32) + b1_ref[...],
        g1_ref[...], be1_ref[...])
    h2 = _bn_swish(
        jnp.dot(h1, w2_ref[...], preferred_element_type=jnp.float32) + b2_ref[...],
        g2_ref[...], be2_ref[...])
    h3 = _bn_swish(
        jnp.dot(h2, w3_ref[...], preferred_element_type=jnp.float32) + b3_ref[...],
        g3_ref[...], be3_ref[...])
    feats = _bn_swish(
        jnp.dot(h3, w4_ref[...], preferred_element_type=jnp.float32) + b4_ref[...],
        g4_ref[...], be4_ref[...])

    # --- hoisted LSTM input projection: one wide (N, 8H) matmul, bias folded in ---
    gx_scr[...] = (
        jnp.dot(feats, wih_cat_ref[...], preferred_element_type=jnp.float32)
        + bias_cat_ref[...]
    )

    n_steps = x_ref.shape[0]
    hid = whh_f_ref.shape[0]
    four_h = 4 * hid

    whh_f = whh_f_ref[...]
    whh_b = whh_b_ref[...]

    # Lane mask selecting the g-gate block (lanes [2H, 3H)) of the (1, 4H) gates.
    lane = jax.lax.broadcasted_iota(jnp.int32, (1, four_h), 1)
    g_mask = (lane >= 2 * hid) & (lane < 3 * hid)

    def cell(gates, c):
        # Full-vreg transcendentals on the EUP + one VPU select; equivalent to
        # PyTorch gate order (i, f, g, o): sigmoid on i/f/o, tanh on g.
        act = jnp.where(g_mask, jnp.tanh(gates), jax.nn.sigmoid(gates))
        i_g = act[:, 0:hid]
        f_g = act[:, hid:2 * hid]
        g_g = act[:, 2 * hid:3 * hid]
        o_g = act[:, 3 * hid:4 * hid]
        c_new = f_g * c + i_g * g_g
        h_new = o_g * jnp.tanh(c_new)
        return h_new, c_new

    # --- fused bidirectional recurrence, fully unrolled (n_steps is static) ---
    zero = jnp.zeros((1, hid), jnp.float32)
    h_f, c_f = zero, zero
    h_b, c_b = zero, zero
    for t in range(n_steps):
        rt = n_steps - 1 - t
        gates_f = gx_scr[t:t + 1, 0:four_h] + jnp.dot(
            h_f, whh_f, preferred_element_type=jnp.float32)
        gates_b = gx_scr[rt:rt + 1, four_h:2 * four_h] + jnp.dot(
            h_b, whh_b, preferred_element_type=jnp.float32)
        h_f, c_f = cell(gates_f, c_f)
        h_b, c_b = cell(gates_b, c_b)
        hf_scr[t:t + 1, :] = h_f
        hb_scr[rt:rt + 1, :] = h_b

    # --- final BN+swish, applied per direction half (no lane-axis concat) ---
    out_ref[:, 0:hid] = _bn_swish(hf_scr[...], g5f_ref[...], be5f_ref[...])
    out_ref[:, hid:2 * hid] = _bn_swish(hb_scr[...], g5b_ref[...], be5b_ref[...])


@jax.jit
def split_model_forward(x, params):
    n, _ = x.shape
    hid = params["Whh_f"].shape[0]

    # Pre-concatenate / split small parameters at the JAX level (cheap, jitted).
    wih_cat = jnp.concatenate([params["Wih_f"], params["Wih_b"]], axis=1)   # (F, 8H)
    bias_cat = jnp.concatenate([params["bias_f"], params["bias_b"]], axis=1)  # (1, 8H)
    g5f, g5b = params["g5"][:, :hid], params["g5"][:, hid:]
    be5f, be5b = params["be5"][:, :hid], params["be5"][:, hid:]

    args = (
        x,
        params["W1"], params["b1"], params["g1"], params["be1"],
        params["W2"], params["b2"], params["g2"], params["be2"],
        params["W3"], params["b3"], params["g3"], params["be3"],
        params["W4"], params["b4"], params["g4"], params["be4"],
        wih_cat, bias_cat,
        params["Whh_f"], params["Whh_b"],
        g5f, be5f, g5b, be5b,
    )

    return pl.pallas_call(
        split_model_kernel,
        out_shape=jax.ShapeDtypeStruct((n, 2 * hid), jnp.float32),
        in_specs=[pl.BlockSpec(memory_space=pltpu.MemorySpace.VMEM)] * len(args),
        out_specs=pl.BlockSpec(memory_space=pltpu.MemorySpace.VMEM),
        scratch_shapes=[
            pltpu.VMEM((n, 8 * hid), jnp.float32),   # precomputed input gates (fwd|bwd)
            pltpu.VMEM((n, hid), jnp.float32),       # forward-direction hidden states
            pltpu.VMEM((n, hid), jnp.float32),       # backward-direction hidden states
        ],
    )(*args)


# ------------------------- pure-JAX reference -------------------------

def reference_forward(x, params):
    hid = params["Whh_f"].shape[0]

    def bn_swish(y, g, b):
        mu = jnp.mean(y, axis=0, keepdims=True)
        var = jnp.mean(jnp.square(y - mu), axis=0, keepdims=True)
        z = (y - mu) / jnp.sqrt(var + EPS) * g + b
        return z * jax.nn.sigmoid(z)

    h1 = bn_swish(x @ params["W1"] + params["b1"], params["g1"], params["be1"])
    h2 = bn_swish(h1 @ params["W2"] + params["b2"], params["g2"], params["be2"])
    h3 = bn_swish(h2 @ params["W3"] + params["b3"], params["g3"], params["be3"])
    feats = bn_swish(h3 @ params["W4"] + params["b4"], params["g4"], params["be4"])

    def lstm_dir(xs, wih, whh, bias, reverse):
        def step(carry, xt):
            h, c = carry
            gates = xt @ wih + h @ whh + bias[0]
            i_g = jax.nn.sigmoid(gates[0:hid])
            f_g = jax.nn.sigmoid(gates[hid:2 * hid])
            g_g = jnp.tanh(gates[2 * hid:3 * hid])
            o_g = jax.nn.sigmoid(gates[3 * hid:4 * hid])
            c_new = f_g * c + i_g * g_g
            h_new = o_g * jnp.tanh(c_new)
            return (h_new, c_new), h_new

        seq = xs[::-1] if reverse else xs
        _, hs = jax.lax.scan(step, (jnp.zeros(hid), jnp.zeros(hid)), seq)
        return hs[::-1] if reverse else hs

    hf = lstm_dir(feats, params["Wih_f"], params["Whh_f"], params["bias_f"], False)
    hb = lstm_dir(feats, params["Wih_b"], params["Whh_b"], params["bias_b"], True)
    hidden = jnp.concatenate([hf, hb], axis=-1)
    return bn_swish(hidden, params["g5"], params["be5"])


# ------------------------- parameter construction -------------------------

def make_params(key, input_dim, hidden_dim, feature_dim):
    keys = iter(jax.random.split(key, 40))

    def linear(fan_in, fan_out):
        bound = 1.0 / np.sqrt(fan_in)
        w = jax.random.uniform(next(keys), (fan_in, fan_out), jnp.float32, -bound, bound)
        b = jax.random.uniform(next(keys), (1, fan_out), jnp.float32, -bound, bound)
        return w, b

    def bn(dim):
        g = 1.0 + 0.1 * jax.random.normal(next(keys), (1, dim), jnp.float32)
        b = 0.1 * jax.random.normal(next(keys), (1, dim), jnp.float32)
        return g, b

    def lstm_dir(in_dim, hid):
        bound = 1.0 / np.sqrt(hid)
        wih = jax.random.uniform(next(keys), (in_dim, 4 * hid), jnp.float32, -bound, bound)
        whh = jax.random.uniform(next(keys), (hid, 4 * hid), jnp.float32, -bound, bound)
        # combined bias == b_ih + b_hh
        bias = jax.random.uniform(next(keys), (1, 4 * hid), jnp.float32, -2 * bound, 2 * bound)
        return wih, whh, bias

    p = {}
    p["W1"], p["b1"] = linear(input_dim, hidden_dim)
    p["g1"], p["be1"] = bn(hidden_dim)
    p["W2"], p["b2"] = linear(hidden_dim, 2 * hidden_dim)
    p["g2"], p["be2"] = bn(2 * hidden_dim)
    p["W3"], p["b3"] = linear(2 * hidden_dim, hidden_dim)
    p["g3"], p["be3"] = bn(hidden_dim)
    p["W4"], p["b4"] = linear(hidden_dim, feature_dim)
    p["g4"], p["be4"] = bn(feature_dim)
    p["Wih_f"], p["Whh_f"], p["bias_f"] = lstm_dir(feature_dim, hidden_dim)
    p["Wih_b"], p["Whh_b"], p["bias_b"] = lstm_dir(feature_dim, hidden_dim)
    p["g5"], p["be5"] = bn(2 * hidden_dim)
    return p
    # TODO(synk): BatchNorm running-stat updates (training-time side effect) are not
    # tracked; they do not affect the forward output.


if __name__ == "__main__":
    N, INPUT_DIM, HIDDEN_DIM, FEATURE_DIM = 8, 16, 32, 16

    root = jax.random.PRNGKey(0)
    k_params, k_x = jax.random.split(root)
    params = make_params(k_params, INPUT_DIM, HIDDEN_DIM, FEATURE_DIM)
    x = jax.random.normal(k_x, (N, INPUT_DIM), jnp.float32)

    out = split_model_forward(x, params)
    jax.block_until_ready(out)

    ref = reference_forward(x, params)
    np.testing.assert_allclose(np.asarray(out), np.asarray(ref), rtol=2e-2, atol=2e-2)

    print("KERNEL_OK")
</pallas_src>

<mosaic_0001>
module attributes {stable_mosaic.version = 11 : i64} {
  func.func @split_model_kernel(%arg0: memref<8x16xf32, #tpu.memory_space<vmem>>, %arg1: memref<16x32xf32, #tpu.memory_space<vmem>>, %arg2: memref<1x32xf32, #tpu.memory_space<vmem>>, %arg3: memref<1x32xf32, #tpu.memory_space<vmem>>, %arg4: memref<1x32xf32, #tpu.memory_space<vmem>>, %arg5: memref<32x64xf32, #tpu.memory_space<vmem>>, %arg6: memref<1x64xf32, #tpu.memory_space<vmem>>, %arg7: memref<1x64xf32, #tpu.memory_space<vmem>>, %arg8: memref<1x64xf32, #tpu.memory_space<vmem>>, %arg9: memref<64x32xf32, #tpu.memory_space<vmem>>, %arg10: memref<1x32xf32, #tpu.memory_space<vmem>>, %arg11: memref<1x32xf32, #tpu.memory_space<vmem>>, %arg12: memref<1x32xf32, #tpu.memory_space<vmem>>, %arg13: memref<32x16xf32, #tpu.memory_space<vmem>>, %arg14: memref<1x16xf32, #tpu.memory_space<vmem>>, %arg15: memref<1x16xf32, #tpu.memory_space<vmem>>, %arg16: memref<1x16xf32, #tpu.memory_space<vmem>>, %arg17: memref<16x256xf32, #tpu.memory_space<vmem>>, %arg18: memref<1x256xf32, #tpu.memory_space<vmem>>, %arg19: memref<32x128xf32, #tpu.memory_space<vmem>>, %arg20: memref<32x128xf32, #tpu.memory_space<vmem>>, %arg21: memref<1x32xf32, #tpu.memory_space<vmem>>, %arg22: memref<1x32xf32, #tpu.memory_space<vmem>>, %arg23: memref<1x32xf32, #tpu.memory_space<vmem>>, %arg24: memref<1x32xf32, #tpu.memory_space<vmem>>, %arg25: memref<8x64xf32, #tpu.memory_space<vmem>>, %arg26: memref<8x256xf32, #tpu.memory_space<vmem>>, %arg27: memref<8x32xf32, #tpu.memory_space<vmem>>, %arg28: memref<8x32xf32, #tpu.memory_space<vmem>>) attributes {dimension_semantics = [], scalar_prefetch = 0 : i64, scratch_operands = 3 : i64, tpu.core_type = #tpu.core_type<tc>} {
    %c0 = arith.constant 0 : index
    %c0_0 = arith.constant 0 : index
    %0 = vector.load %arg0[%c0, %c0_0] : memref<8x16xf32, #tpu.memory_space<vmem>>, vector<8x16xf32>
    %c0_1 = arith.constant 0 : index
    %c0_2 = arith.constant 0 : index
    %1 = vector.load %arg1[%c0_1, %c0_2] : memref<16x32xf32, #tpu.memory_space<vmem>>, vector<16x32xf32>
    %cst = arith.constant dense<0.000000e+00> : vector<8x32xf32>
    %2 = tpu.matmul %0, %1, %cst {dimension_numbers = #tpu.dot_dimension_numbers<[1], [0], [0], [1], [0, 0, 1, 1], [], []>} : vector<8x16xf32>, vector<16x32xf32>, vector<8x32xf32> -> vector<8x32xf32>
    %c0_3 = arith.constant 0 : index
    %c0_4 = arith.constant 0 : index
    %3 = vector.load %arg2[%c0_3, %c0_4] : memref<1x32xf32, #tpu.memory_space<vmem>>, vector<1x32xf32>
    %4 = vector.broadcast %3 : vector<1x32xf32> to vector<8x32xf32>
    %5 = arith.addf %2, %4 : vector<8x32xf32>
    %c0_5 = arith.constant 0 : index
    %c0_6 = arith.constant 0 : index
    %6 = vector.load %arg3[%c0_5, %c0_6] : memref<1x32xf32, #tpu.memory_space<vmem>>, vector<1x32xf32>
    %c0_7 = arith.constant 0 : index
    %c0_8 = arith.constant 0 : index
    %7 = vector.load %arg4[%c0_7, %c0_8] : memref<1x32xf32, #tpu.memory_space<vmem>>, vector<1x32xf32>
    %cst_9 = arith.constant dense<0.000000e+00> : vector<32xf32>
    %8 = vector.multi_reduction <add>, %5, %cst_9 [0] : vector<8x32xf32> to vector<32xf32>
    %9 = vector.shape_cast %8 : vector<32xf32> to vector<1x32xf32>
    %cst_10 = arith.constant 8.000000e+00 : f32
    %10 = vector.broadcast %cst_10 : f32 to vector<1x32xf32>
    %11 = arith.divf %9, %10 : vector<1x32xf32>
    %12 = vector.broadcast %11 : vector<1x32xf32> to vector<8x32xf32>
    %13 = arith.subf %5, %12 : vector<8x32xf32>
    %14 = arith.mulf %13, %13 : vector<8x32xf32>
    %cst_11 = arith.constant dense<0.000000e+00> : vector<32xf32>
    %15 = vector.multi_reduction <add>, %14, %cst_11 [0] : vector<8x32xf32> to vector<32xf32>
    %16 = vector.shape_cast %15 : vector<32xf32> to vector<1x32xf32>
    %cst_12 = arith.constant 8.000000e+00 : f32
    %17 = vector.broadcast %cst_12 : f32 to vector<1x32xf32>
    %18 = arith.divf %16, %17 : vector<1x32xf32>
    %19 = vector.broadcast %11 : vector<1x32xf32> to vector<8x32xf32>
    %20 = arith.subf %5, %19 : vector<8x32xf32>
    %cst_13 = arith.constant 9.99999974E-6 : f32
    %21 = vector.broadcast %cst_13 : f32 to vector<1x32xf32>
    %22 = arith.addf %18, %21 : vector<1x32xf32>
    %23 = math.rsqrt %22 : vector<1x32xf32>
    %24 = vector.broadcast %23 : vector<1x32xf32> to vector<8x32xf32>
    %25 = arith.mulf %20, %24 : vector<8x32xf32>
    %26 = vector.broadcast %6 : vector<1x32xf32> to vector<8x32xf32>
    %27 = arith.mulf %25, %26 : vector<8x32xf32>
    %28 = vector.broadcast %7 : vector<1x32xf32> to vector<8x32xf32>
    %29 = arith.addf %27, %28 : vector<8x32xf32>
    %30 = arith.negf %29 : vector<8x32xf32>
    %31 = math.exp %30 : vector<8x32xf32>
    %cst_14 = arith.constant 1.000000e+00 : f32
    %32 = vector.broadcast %cst_14 : f32 to vector<8x32xf32>
    %33 = arith.addf %32, %31 : vector<8x32xf32>
    %34 = arith.divf %32, %33 : vector<8x32xf32>
    %35 = arith.mulf %29, %34 : vector<8x32xf32>
    %c0_15 = arith.constant 0 : index
    %c0_16 = arith.constant 0 : index
    %36 = vector.load %arg5[%c0_15, %c0_16] : memref<32x64xf32, #tpu.memory_space<vmem>>, vector<32x64xf32>
    %cst_17 = arith.constant dense<0.000000e+00> : vector<8x64xf32>
    %37 = tpu.matmul %35, %36, %cst_17 {dimension_numbers = #tpu.dot_dimension_numbers<[1], [0], [0], [1], [0, 0, 1, 1], [], []>} : vector<8x32xf32>, vector<32x64xf32>, vector<8x64xf32> -> vector<8x64xf32>
    %c0_18 = arith.constant 0 : index
    %c0_19 = arith.constant 0 : index
    %38 = vector.load %arg6[%c0_18, %c0_19] : memref<1x64xf32, #tpu.memory_space<vmem>>, vector<1x64xf32>
    %39 = vector.broadcast %38 : vector<1x64xf32> to vector<8x64xf32>
    %40 = arith.addf %37, %39 : vector<8x64xf32>
    %c0_20 = arith.constant 0 : index
    %c0_21 = arith.constant 0 : index
    %41 = vector.load %arg7[%c0_20, %c0_21] : memref<1x64xf32, #tpu.memory_space<vmem>>, vector<1x64xf32>
    %c0_22 = arith.constant 0 : index
    %c0_23 = arith.constant 0 : index
    %42 = vector.load %arg8[%c0_22, %c0_23] : memref<1x64xf32, #tpu.memory_space<vmem>>, vector<1x64xf32>
    %cst_24 = arith.constant dense<0.000000e+00> : vector<64xf32>
    %43 = vector.multi_reduction <add>, %40, %cst_24 [0] : vector<8x64xf32> to vector<64xf32>
    %44 = vector.shape_cast %43 : vector<64xf32> to vector<1x64xf32>
    %cst_25 = arith.constant 8.000000e+00 : f32
    %45 = vector.broadcast %cst_25 : f32 to vector<1x64xf32>
    %46 = arith.divf %44, %45 : vector<1x64xf32>
    %47 = vector.broadcast %46 : vector<1x64xf32> to vector<8x64xf32>
    %48 = arith.subf %40, %47 : vector<8x64xf32>
    %49 = arith.mulf %48, %48 : vector<8x64xf32>
    %cst_26 = arith.constant dense<0.000000e+00> : vector<64xf32>
    %50 = vector.multi_reduction <add>, %49, %cst_26 [0] : vector<8x64xf32> to vector<64xf32>
    %51 = vector.shape_cast %50 : vector<64xf32> to vector<1x64xf32>
    %cst_27 = arith.constant 8.000000e+00 : f32
    %52 = vector.broadcast %cst_27 : f32 to vector<1x64xf32>
    %53 = arith.divf %51, %52 : vector<1x64xf32>
    %54 = vector.broadcast %46 : vector<1x64xf32> to vector<8x64xf32>
    %55 = arith.subf %40, %54 : vector<8x64xf32>
    %cst_28 = arith.constant 9.99999974E-6 : f32
    %56 = vector.broadcast %cst_28 : f32 to vector<1x64xf32>
    %57 = arith.addf %53, %56 : vector<1x64xf32>
    %58 = math.rsqrt %57 : vector<1x64xf32>
    %59 = vector.broadcast %58 : vector<1x64xf32> to vector<8x64xf32>
    %60 = arith.mulf %55, %59 : vector<8x64xf32>
    %61 = vector.broadcast %41 : vector<1x64xf32> to vector<8x64xf32>
    %62 = arith.mulf %60, %61 : vector<8x64xf32>
    %63 = vector.broadcast %42 : vector<1x64xf32> to vector<8x64xf32>
    %64 = arith.addf %62, %63 : vector<8x64xf32>
    %65 = arith.negf %64 : vector<8x64xf32>
    %66 = math.exp %65 : vector<8x64xf32>
    %cst_29 = arith.constant 1.000000e+00 : f32
    %67 = vector.broadcast %cst_29 : f32 to vector<8x64xf32>
    %68 = arith.addf %67, %66 : vector<8x64xf32>
    %69 = arith.divf %67, %68 : vector<8x64xf32>
    %70 = arith.mulf %64, %69 : vector<8x64xf32>
    %c0_30 = arith.constant 0 : index
    %c0_31 = arith.constant 0 : index
    %71 = vector.load %arg9[%c0_30, %c0_31] : memref<64x32xf32, #tpu.memory_space<vmem>>, vector<64x32xf32>
    %cst_32 = arith.constant dense<0.000000e+00> : vector<8x32xf32>
    %72 = tpu.matmul %70, %71, %cst_32 {dimension_numbers = #tpu.dot_dimension_numbers<[1], [0], [0], [1], [0, 0, 1, 1], [], []>} : vector<8x64xf32>, vector<64x32xf32>, vector<8x32xf32> -> vector<8x32xf32>
    %c0_33 = arith.constant 0 : index
    %c0_34 = arith.constant 0 : index
    %73 = vector.load %arg10[%c0_33, %c0_34] : memref<1x32xf32, #tpu.memory_space<vmem>>, vector<1x32xf32>
    %74 = vector.broadcast %73 : vector<1x32xf32> to vector<8x32xf32>
    %75 = arith.addf %72, %74 : vector<8x32xf32>
    %c0_35 = arith.constant 0 : index
    %c0_36 = arith.constant 0 : index
    %76 = vector.load %arg11[%c0_35, %c0_36] : memref<1x32xf32, #tpu.memory_space<vmem>>, vector<1x32xf32>
    %c0_37 = arith.constant 0 : index
    %c0_38 = arith.constant 0 : index
    %77 = vector.load %arg12[%c0_37, %c0_38] : memref<1x32xf32, #tpu.memory_space<vmem>>, vector<1x32xf32>
    %cst_39 = arith.constant dense<0.000000e+00> : vector<32xf32>
    %78 = vector.multi_reduction <add>, %75, %cst_39 [0] : vector<8x32xf32> to vector<32xf32>
    %79 = vector.shape_cast %78 : vector<32xf32> to vector<1x32xf32>
    %cst_40 = arith.constant 8.000000e+00 : f32
    %80 = vector.broadcast %cst_40 : f32 to vector<1x32xf32>
    %81 = arith.divf %79, %80 : vector<1x32xf32>
    %82 = vector.broadcast %81 : vector<1x32xf32> to vector<8x32xf32>
    %83 = arith.subf %75, %82 : vector<8x32xf32>
    %84 = arith.mulf %83, %83 : vector<8x32xf32>
    %cst_41 = arith.constant dense<0.000000e+00> : vector<32xf32>
    %85 = vector.multi_reduction <add>, %84, %cst_41 [0] : vector<8x32xf32> to vector<32xf32>
    %86 = vector.shape_cast %85 : vector<32xf32> to vector<1x32xf32>
    %cst_42 = arith.constant 8.000000e+00 : f32
    %87 = vector.broadcast %cst_42 : f32 to vector<1x32xf32>
    %88 = arith.divf %86, %87 : vector<1x32xf32>
    %89 = vector.broadcast %81 : vector<1x32xf32> to vector<8x32xf32>
    %90 = arith.subf %75, %89 : vector<8x32xf32>
    %cst_43 = arith.constant 9.99999974E-6 : f32
    %91 = vector.broadcast %cst_43 : f32 to vector<1x32xf32>
    %92 = arith.addf %88, %91 : vector<1x32xf32>
    %93 = math.rsqrt %92 : vector<1x32xf32>
    %94 = vector.broadcast %93 : vector<1x32xf32> to vector<8x32xf32>
    %95 = arith.mulf %90, %94 : vector<8x32xf32>
    %96 = vector.broadcast %76 : vector<1x32xf32> to vector<8x32xf32>
    %97 = arith.mulf %95, %96 : vector<8x32xf32>
    %98 = vector.broadcast %77 : vector<1x32xf32> to vector<8x32xf32>
    %99 = arith.addf %97, %98 : vector<8x32xf32>
    %100 = arith.negf %99 : vector<8x32xf32>
    %101 = math.exp %100 : vector<8x32xf32>
    %cst_44 = arith.constant 1.000000e+00 : f32
    %102 = vector.broadcast %cst_44 : f32 to vector<8x32xf32>
    %103 = arith.addf %102, %101 : vector<8x32xf32>
    %104 = arith.divf %102, %103 : vector<8x32xf32>
    %105 = arith.mulf %99, %104 : vector<8x32xf32>
    %c0_45 = arith.constant 0 : index
    %c0_46 = arith.constant 0 : index
    %106 = vector.load %arg13[%c0_45, %c0_46] : memref<32x16xf32, #tpu.memory_space<vmem>>, vector<32x16xf32>
    %cst_47 = arith.constant dense<0.000000e+00> : vector<8x16xf32>
    %107 = tpu.matmul %105, %106, %cst_47 {dimension_numbers = #tpu.dot_dimension_numbers<[1], [0], [0], [1], [0, 0, 1, 1], [], []>} : vector<8x32xf32>, vector<32x16xf32>, vector<8x16xf32> -> vector<8x16xf32>
    %c0_48 = arith.constant 0 : index
    %c0_49 = arith.constant 0 : index
    %108 = vector.load %arg14[%c0_48, %c0_49] : memref<1x16xf32, #tpu.memory_space<vmem>>, vector<1x16xf32>
    %109 = vector.broadcast %108 : vector<1x16xf32> to vector<8x16xf32>
    %110 = arith.addf %107, %109 : vector<8x16xf32>
    %c0_50 = arith.constant 0 : index
    %c0_51 = arith.constant 0 : index
    %111 = vector.load %arg15[%c0_50, %c0_51] : memref<1x16xf32, #tpu.memory_space<vmem>>, vector<1x16xf32>
    %c0_52 = arith.constant 0 : index
    %c0_53 = arith.constant 0 : index
    %112 = vector.load %arg16[%c0_52, %c0_53] : memref<1x16xf32, #tpu.memory_space<vmem>>, vector<1x16xf32>
    %cst_54 = arith.constant dense<0.000000e+00> : vector<16xf32>
    %113 = vector.multi_reduction <add>, %110, %cst_54 [0] : vector<8x16xf32> to vector<16xf32>
    %114 = vector.shape_cast %113 : vector<16xf32> to vector<1x16xf32>
    %cst_55 = arith.constant 8.000000e+00 : f32
    %115 = vector.broadcast %cst_55 : f32 to vector<1x16xf32>
    %116 = arith.divf %114, %115 : vector<1x16xf32>
    %117 = vector.broadcast %116 : vector<1x16xf32> to vector<8x16xf32>
    %118 = arith.subf %110, %117 : vector<8x16xf32>
    %119 = arith.mulf %118, %118 : vector<8x16xf32>
    %cst_56 = arith.constant dense<0.000000e+00> : vector<16xf32>
    %120 = vector.multi_reduction <add>, %119, %cst_56 [0] : vector<8x16xf32> to vector<16xf32>
    %121 = vector.shape_cast %120 : vector<16xf32> to vector<1x16xf32>
    %cst_57 = arith.constant 8.000000e+00 : f32
    %122 = vector.broadcast %cst_57 : f32 to vector<1x16xf32>
    %123 = arith.divf %121, %122 : vector<1x16xf32>
    %124 = vector.broadcast %116 : vector<1x16xf32> to vector<8x16xf32>
    %125 = arith.subf %110, %124 : vector<8x16xf32>
    %cst_58 = arith.constant 9.99999974E-6 : f32
    %126 = vector.broadcast %cst_58 : f32 to vector<1x16xf32>
    %127 = arith.addf %123, %126 : vector<1x16xf32>
    %128 = math.rsqrt %127 : vector<1x16xf32>
    %129 = vector.broadcast %128 : vector<1x16xf32> to vector<8x16xf32>
    %130 = arith.mulf %125, %129 : vector<8x16xf32>
    %131 = vector.broadcast %111 : vector<1x16xf32> to vector<8x16xf32>
    %132 = arith.mulf %130, %131 : vector<8x16xf32>
    %133 = vector.broadcast %112 : vector<1x16xf32> to vector<8x16xf32>
    %134 = arith.addf %132, %133 : vector<8x16xf32>
    %135 = arith.negf %134 : vector<8x16xf32>
    %136 = math.exp %135 : vector<8x16xf32>
    %cst_59 = arith.constant 1.000000e+00 : f32
    %137 = vector.broadcast %cst_59 : f32 to vector<8x16xf32>
    %138 = arith.addf %137, %136 : vector<8x16xf32>
    %139 = arith.divf %137, %138 : vector<8x16xf32>
    %140 = arith.mulf %134, %139 : vector<8x16xf32>
    %c0_60 = arith.constant 0 : index
    %c0_61 = arith.constant 0 : index
    %141 = vector.load %arg17[%c0_60, %c0_61] : memref<16x256xf32, #tpu.memory_space<vmem>>, vector<16x256xf32>
    %cst_62 = arith.constant dense<0.000000e+00> : vector<8x256xf32>
    %142 = tpu.matmul %140, %141, %cst_62 {dimension_numbers = #tpu.dot_dimension_numbers<[1], [0], [0], [1], [0, 0, 1, 1], [], []>} : vector<8x16xf32>, vector<16x256xf32>, vector<8x256xf32> -> vector<8x256xf32>
    %c0_63 = arith.constant 0 : index
    %c0_64 = arith.constant 0 : index
    %143 = vector.load %arg18[%c0_63, %c0_64] : memref<1x256xf32, #tpu.memory_space<vmem>>, vector<1x256xf32>
    %144 = vector.broadcast %143 : vector<1x256xf32> to vector<8x256xf32>
    %145 = arith.addf %142, %144 : vector<8x256xf32>
    %c0_65 = arith.constant 0 : index
    %c0_66 = arith.constant 0 : index
    %146 = vector.load %arg26[%c0_65, %c0_66] : memref<8x256xf32, #tpu.memory_space<vmem>>, vector<8x256xf32>
    tpu.vector_store %arg26[%c0_65, %c0_66], %145 {strides = array<i32>} : memref<8x256xf32, #tpu.memory_space<vmem>>, vector<8x256xf32>,
    %c0_67 = arith.constant 0 : index
    %c0_68 = arith.constant 0 : index
    %147 = vector.load %arg19[%c0_67, %c0_68] : memref<32x128xf32, #tpu.memory_space<vmem>>, vector<32x128xf32>
    %c0_69 = arith.constant 0 : index
    %c0_70 = arith.constant 0 : index
    %148 = vector.load %arg20[%c0_69, %c0_70] : memref<32x128xf32, #tpu.memory_space<vmem>>, vector<32x128xf32>
    %149 = tpu.iota {dimensions = array<i32: 1>} : vector<1x128xi32>
    %c64_i32 = arith.constant 64 : i32
    %150 = vector.broadcast %c64_i32 : i32 to vector<1x128xi32>
    %151 = arith.cmpi sge, %149, %150 : vector<1x128xi32>
    %c96_i32 = arith.constant 96 : i32
    %152 = vector.broadcast %c96_i32 : i32 to vector<1x128xi32>
    %153 = arith.cmpi slt, %149, %152 : vector<1x128xi32>
    %154 = arith.andi %151, %153 : vector<1x128xi1>
    %cst_71 = arith.constant 0.000000e+00 : f32
    %155 = vector.broadcast %cst_71 : f32 to vector<1x32xf32>
    %c0_72 = arith.constant 0 : index
    %c0_73 = arith.constant 0 : index
    %156 = vector.load %arg26[%c0_72, %c0_73] : memref<8x256xf32, #tpu.memory_space<vmem>>, vector<1x128xf32>
    %cst_74 = arith.constant dense<0.000000e+00> : vector<1x128xf32>
    %157 = tpu.matmul %155, %147, %cst_74 {dimension_numbers = #tpu.dot_dimension_numbers<[1], [0], [0], [1], [0, 0, 1, 1], [], []>} : vector<1x32xf32>, vector<32x128xf32>, vector<1x128xf32> -> vector<1x128xf32>
    %158 = arith.addf %156, %157 : vector<1x128xf32>
    %c7 = arith.constant 7 : index
    %c128 = arith.constant 128 : index
    %159 = vector.load %arg26[%c7, %c128] : memref<8x256xf32, #tpu.memory_space<vmem>>, vector<1x128xf32>
    %cst_75 = arith.constant dense<0.000000e+00> : vector<1x128xf32>
    %160 = tpu.matmul %155, %148, %cst_75 {dimension_numbers = #tpu.dot_dimension_numbers<[1], [0], [0], [1], [0, 0, 1, 1], [], []>} : vector<1x32xf32>, vector<32x128xf32>, vector<1x128xf32> -> vector<1x128xf32>
    %161 = arith.addf %159, %160 : vector<1x128xf32>
    %162 = math.tanh %158 : vector<1x128xf32>
    %163 = arith.negf %158 : vector<1x128xf32>
    %164 = math.exp %163 : vector<1x128xf32>
    %cst_76 = arith.constant 1.000000e+00 : f32
    %165 = vector.broadcast %cst_76 : f32 to vector<1x128xf32>
    %166 = arith.addf %165, %164 : vector<1x128xf32>
    %167 = arith.divf %165, %166 : vector<1x128xf32>
    %168 = arith.select %154, %162, %167 : vector<1x128xi1>, vector<1x128xf32>
    %169 = vector.extract_strided_slice %168 {offsets = [0, 0], sizes = [1, 32], strides = [1, 1]} : vector<1x128xf32> to vector<1x32xf32>
    %170 = vector.extract_strided_slice %168 {offsets = [0, 32], sizes = [1, 32], strides = [1, 1]} : vector<1x128xf32> to vector<1x32xf32>
    %171 = vector.extract_strided_slice %168 {offsets = [0, 64], sizes = [1, 32], strides = [1, 1]} : vector<1x128xf32> to vector<1x32xf32>
    %172 = vector.extract_strided_slice %168 {offsets = [0, 96], sizes = [1, 32], strides = [1, 1]} : vector<1x128xf32> to vector<1x32xf32>
    %173 = arith.mulf %170, %155 : vector<1x32xf32>
    %174 = arith.mulf %169, %171 : vector<1x32xf32>
    %175 = arith.addf %173, %174 : vector<1x32xf32>
    %176 = math.tanh %175 : vector<1x32xf32>
    %177 = arith.mulf %172, %176 : vector<1x32xf32>
    %178 = math.tanh %161 : vector<1x128xf32>
    %179 = arith.negf %161 : vector<1x128xf32>
    %180 = math.exp %179 : vector<1x128xf32>
    %cst_77 = arith.constant 1.000000e+00 : f32
    %181 = vector.broadcast %cst_77 : f32 to vector<1x128xf32>
    %182 = arith.addf %181, %180 : vector<1x128xf32>
    %183 = arith.divf %181, %182 : vector<1x128xf32>
    %184 = arith.select %154, %178, %183 : vector<1x128xi1>, vector<1x128xf32>
    %185 = vector.extract_strided_slice %184 {offsets = [0, 0], sizes = [1, 32], strides = [1, 1]} : vector<1x128xf32> to vector<1x32xf32>
    %186 = vector.extract_strided_slice %184 {offsets = [0, 32], sizes = [1, 32], strides = [1, 1]} : vector<1x128xf32> to vector<1x32xf32>
    %187 = vector.extract_strided_slice %184 {offsets = [0, 64], sizes = [1, 32], strides = [1, 1]} : vector<1x128xf32> to vector<1x32xf32>
    %188 = vector.extract_strided_slice %184 {offsets = [0, 96], sizes = [1, 32], strides = [1, 1]} : vector<1x128xf32> to vector<1x32xf32>
    %189 = arith.mulf %186, %155 : vector<1x32xf32>
    %190 = arith.mulf %185, %187 : vector<1x32xf32>
    %191 = arith.addf %189, %190 : vector<1x32xf32>
    %192 = math.tanh %191 : vector<1x32xf32>
    %193 = arith.mulf %188, %192 : vector<1x32xf32>
    %c0_78 = arith.constant 0 : index
    %c0_79 = arith.constant 0 : index
    %194 = vector.load %arg27[%c0_78, %c0_79] : memref<8x32xf32, #tpu.memory_space<vmem>>, vector<1x32xf32>
    tpu.vector_store %arg27[%c0_78, %c0_79], %177 {strides = array<i32>} : memref<8x32xf32, #tpu.memory_space<vmem>>, vector<1x32xf32>,
    %c7_80 = arith.constant 7 : index
    %c0_81 = arith.constant 0 : index
    %195 = vector.load %arg28[%c7_80, %c0_81] : memref<8x32xf32, #tpu.memory_space<vmem>>, vector<1x32xf32>
    tpu.vector_store %arg28[%c7_80, %c0_81], %193 {strides = array<i32>} : memref<8x32xf32, #tpu.memory_space<vmem>>, vector<1x32xf32>,
    %c1 = arith.constant 1 : index
    %c0_82 = arith.constant 0 : index
    %196 = vector.load %arg26[%c1, %c0_82] : memref<8x256xf32, #tpu.memory_space<vmem>>, vector<1x128xf32>
    %cst_83 = arith.constant dense<0.000000e+00> : vector<1x128xf32>
    %197 = tpu.matmul %177, %147, %cst_83 {dimension_numbers = #tpu.dot_dimension_numbers<[1], [0], [0], [1], [0, 0, 1, 1], [], []>} : vector<1x32xf32>, vector<32x128xf32>, vector<1x128xf32> -> vector<1x128xf32>
    %198 = arith.addf %196, %197 : vector<1x128xf32>
    %c6 = arith.constant 6 : index
    %c128_84 = arith.constant 128 : index
    %199 = vector.load %arg26[%c6, %c128_84] : memref<8x256xf32, #tpu.memory_space<vmem>>, vector<1x128xf32>
    %cst_85 = arith.constant dense<0.000000e+00> : vector<1x128xf32>
    %200 = tpu.matmul %193, %148, %cst_85 {dimension_numbers = #tpu.dot_dimension_numbers<[1], [0], [0], [1], [0, 0, 1, 1], [], []>} : vector<1x32xf32>, vector<32x128xf32>, vector<1x128xf32> -> vector<1x128xf32>
    %201 = arith.addf %199, %200 : vector<1x128xf32>
    %202 = math.tanh %198 : vector<1x128xf32>
    %203 = arith.negf %198 : vector<1x128xf32>
    %204 = math.exp %203 : vector<1x128xf32>
    %cst_86 = arith.constant 1.000000e+00 : f32
    %205 = vector.broadcast %cst_86 : f32 to vector<1x128xf32>
    %206 = arith.addf %205, %204 : vector<1x128xf32>
    %207 = arith.divf %205, %206 : vector<1x128xf32>
    %208 = arith.select %154, %202, %207 : vector<1x128xi1>, vector<1x128xf32>
    %209 = vector.extract_strided_slice %208 {offsets = [0, 0], sizes = [1, 32], strides = [1, 1]} : vector<1x128xf32> to vector<1x32xf32>
    %210 = vector.extract_strided_slice %208 {offsets = [0, 32], sizes = [1, 32], strides = [1, 1]} : vector<1x128xf32> to vector<1x32xf32>
    %211 = vector.extract_strided_slice %208 {offsets = [0, 64], sizes = [1, 32], strides = [1, 1]} : vector<1x128xf32> to vector<1x32xf32>
    %212 = vector.extract_strided_slice %208 {offsets = [0, 96], sizes = [1, 32], strides = [1, 1]} : vector<1x128xf32> to vector<1x32xf32>
    %213 = arith.mulf %210, %175 : vector<1x32xf32>
    %214 = arith.mulf %209, %211 : vector<1x32xf32>
    %215 = arith.addf %213, %214 : vector<1x32xf32>
    %216 = math.tanh %215 : vector<1x32xf32>
    %217 = arith.mulf %212, %216 : vector<1x32xf32>
    %218 = math.tanh %201 : vector<1x128xf32>
    %219 = arith.negf %201 : vector<1x128xf32>
    %220 = math.exp %219 : vector<1x128xf32>
    %cst_87 = arith.constant 1.000000e+00 : f32
    %221 = vector.broadcast %cst_87 : f32 to vector<1x128xf32>
    %222 = arith.addf %221, %220 : vector<1x128xf32>
    %223 = arith.divf %221, %222 : vector<1x128xf32>
    %224 = arith.select %154, %218, %223 : vector<1x128xi1>, vector<1x128xf32>
    %225 = vector.extract_strided_slice %224 {offsets = [0, 0], sizes = [1, 32], strides = [1, 1]} : vector<1x128xf32> to vector<1x32xf32>
    %226 = vector.extract_strided_slice %224 {offsets = [0, 32], sizes = [1, 32], strides = [1, 1]} : vector<1x128xf32> to vector<1x32xf32>
    %227 = vector.extract_strided_slice %224 {offsets = [0, 64], sizes = [1, 32], strides = [1, 1]} : vector<1x128xf32> to vector<1x32xf32>
    %228 = vector.extract_strided_slice %224 {offsets = [0, 96], sizes = [1, 32], strides = [1, 1]} : vector<1x128xf32> to vector<1x32xf32>
    %229 = arith.mulf %226, %191 : vector<1x32xf32>
    %230 = arith.mulf %225, %227 : vector<1x32xf32>
    %231 = arith.addf %229, %230 : vector<1x32xf32>
    %232 = math.tanh %231 : vector<1x32xf32>
    %233 = arith.mulf %228, %232 : vector<1x32xf32>
    %c1_88 = arith.constant 1 : index
    %c0_89 = arith.constant 0 : index
    %234 = vector.load %arg27[%c1_88, %c0_89] : memref<8x32xf32, #tpu.memory_space<vmem>>, vector<1x32xf32>
    tpu.vector_store %arg27[%c1_88, %c0_89], %217 {strides = array<i32>} : memref<8x32xf32, #tpu.memory_space<vmem>>, vector<1x32xf32>,
    %c6_90 = arith.constant 6 : index
    %c0_91 = arith.constant 0 : index
    %235 = vector.load %arg28[%c6_90, %c0_91] : memref<8x32xf32, #tpu.memory_space<vmem>>, vector<1x32xf32>
    tpu.vector_store %arg28[%c6_90, %c0_91], %233 {strides = array<i32>} : memref<8x32xf32, #tpu.memory_space<vmem>>, vector<1x32xf32>,
    %c2 = arith.constant 2 : index
    %c0_92 = arith.constant 0 : index
    %236 = vector.load %arg26[%c2, %c0_92] : memref<8x256xf32, #tpu.memory_space<vmem>>, vector<1x128xf32>
    %cst_93 = arith.constant dense<0.000000e+00> : vector<1x128xf32>
    %237 = tpu.matmul %217, %147, %cst_93 {dimension_numbers = #tpu.dot_dimension_numbers<[1], [0], [0], [1], [0, 0, 1, 1], [], []>} : vector<1x32xf32>, vector<32x128xf32>, vector<1x128xf32> -> vector<1x128xf32>
    %238 = arith.addf %236, %237 : vector<1x128xf32>
    %c5 = arith.constant 5 : index
    %c128_94 = arith.constant 128 : index
    %239 = vector.load %arg26[%c5, %c128_94] : memref<8x256xf32, #tpu.memory_space<vmem>>, vector<1x128xf32>
    %cst_95 = arith.constant dense<0.000000e+00> : vector<1x128xf32>
    %240 = tpu.matmul %233, %148, %cst_95 {dimension_numbers = #tpu.dot_dimension_numbers<[1], [0], [0], [1], [0, 0, 1, 1], [], []>} : vector<1x32xf32>, vector<32x128xf32>, vector<1x128xf32> -> vector<1x128xf32>
    %241 = arith.addf %239, %240 : vector<1x128xf32>
    %242 = math.tanh %238 : vector<1x128xf32>
    %243 = arith.negf %238 : vector<1x128xf32>
    %244 = math.exp %243 : vector<1x128xf32>
    %cst_96 = arith.constant 1.000000e+00 : f32
    %245 = vector.broadcast %cst_96 : f32 to vector<1x128xf32>
    %246 = arith.addf %245, %244 : vector<1x128xf32>
    %247 = arith.divf %245, %246 : vector<1x128xf32>
    %248 = arith.select %154, %242, %247 : vector<1x128xi1>, vector<1x128xf32>
    %249 = vector.extract_strided_slice %248 {offsets = [0, 0], sizes = [1, 32], strides = [1, 1]} : vector<1x128xf32> to vector<1x32xf32>
    %250 = vector.extract_strided_slice %248 {offsets = [0, 32], sizes = [1, 32], strides = [1, 1]} : vector<1x128xf32> to vector<1x32xf32>
    %251 = vector.extract_strided_slice %248 {offsets = [0, 64], sizes = [1, 32], strides = [1, 1]} : vector<1x128xf32> to vector<1x32xf32>
    %252 = vector.extract_strided_slice %248 {offsets = [0, 96], sizes = [1, 32], strides = [1, 1]} : vector<1x128xf32> to vector<1x32xf32>
    %253 = arith.mulf %250, %215 : vector<1x32xf32>
    %254 = arith.mulf %249, %251 : vector<1x32xf32>
    %255 = arith.addf %253, %254 : vector<1x32xf32>
    %256 = math.tanh %255 : vector<1x32xf32>
    %257 = arith.mulf %252, %256 : vector<1x32xf32>
    %258 = math.tanh %241 : vector<1x128xf32>
    %259 = arith.negf %241 : vector<1x128xf32>
    %260 = math.exp %259 : vector<1x128xf32>
    %cst_97 = arith.constant 1.000000e+00 : f32
    %261 = vector.broadcast %cst_97 : f32 to vector<1x128xf32>
    %262 = arith.addf %261, %260 : vector<1x128xf32>
    %263 = arith.divf %261, %262 : vector<1x128xf32>
    %264 = arith.select %154, %258, %263 : vector<1x128xi1>, vector<1x128xf32>
    %265 = vector.extract_strided_slice %264 {offsets = [0, 0], sizes = [1, 32], strides = [1, 1]} : vector<1x128xf32> to vector<1x32xf32>
    %266 = vector.extract_strided_slice %264 {offsets = [0, 32], sizes = [1, 32], strides = [1, 1]} : vector<1x128xf32> to vector<1x32xf32>
    %267 = vector.extract_strided_slice %264 {offsets = [0, 64], sizes = [1, 32], strides = [1, 1]} : vector<1x128xf32> to vector<1x32xf32>
    %268 = vector.extract_strided_slice %264 {offsets = [0, 96], sizes = [1, 32], strides = [1, 1]} : vector<1x128xf32> to vector<1x32xf32>
    %269 = arith.mulf %266, %231 : vector<1x32xf32>
    %270 = arith.mulf %265, %267 : vector<1x32xf32>
    %271 = arith.addf %269, %270 : vector<1x32xf32>
    %272 = math.tanh %271 : vector<1x32xf32>
    %273 = arith.mulf %268, %272 : vector<1x32xf32>
    %c2_98 = arith.constant 2 : index
    %c0_99 = arith.constant 0 : index
    %274 = vector.load %arg27[%c2_98, %c0_99] : memref<8x32xf32, #tpu.memory_space<vmem>>, vector<1x32xf32>
    tpu.vector_store %arg27[%c2_98, %c0_99], %257 {strides = array<i32>} : memref<8x32xf32, #tpu.memory_space<vmem>>, vector<1x32xf32>,
    %c5_100 = arith.constant 5 : index
    %c0_101 = arith.constant 0 : index
    %275 = vector.load %arg28[%c5_100, %c0_101] : memref<8x32xf32, #tpu.memory_space<vmem>>, vector<1x32xf32>
    tpu.vector_store %arg28[%c5_100, %c0_101], %273 {strides = array<i32>} : memref<8x32xf32, #tpu.memory_space<vmem>>, vector<1x32xf32>,
    %c3 = arith.constant 3 : index
    %c0_102 = arith.constant 0 : index
    %276 = vector.load %arg26[%c3, %c0_102] : memref<8x256xf32, #tpu.memory_space<vmem>>, vector<1x128xf32>
    %cst_103 = arith.constant dense<0.000000e+00> : vector<1x128xf32>
    %277 = tpu.matmul %257, %147, %cst_103 {dimension_numbers = #tpu.dot_dimension_numbers<[1], [0], [0], [1], [0, 0, 1, 1], [], []>} : vector<1x32xf32>, vector<32x128xf32>, vector<1x128xf32> -> vector<1x128xf32>
    %278 = arith.addf %276, %277 : vector<1x128xf32>
    %c4 = arith.constant 4 : index
    %c128_104 = arith.constant 128 : index
    %279 = vector.load %arg26[%c4, %c128_104] : memref<8x256xf32, #tpu.memory_space<vmem>>, vector<1x128xf32>
    %cst_105 = arith.constant dense<0.000000e+00> : vector<1x128xf32>
    %280 = tpu.matmul %273, %148, %cst_105 {dimension_numbers = #tpu.dot_dimension_numbers<[1], [0], [0], [1], [0, 0, 1, 1], [], []>} : vector<1x32xf32>, vector<32x128xf32>, vector<1x128xf32> -> vector<1x128xf32>
    %281 = arith.addf %279, %280 : vector<1x128xf32>
    %282 = math.tanh %278 : vector<1x128xf32>
    %283 = arith.negf %278 : vector<1x128xf32>
    %284 = math.exp %283 : vector<1x128xf32>
    %cst_106 = arith.constant 1.000000e+00 : f32
    %285 = vector.broadcast %cst_106 : f32 to vector<1x128xf32>
    %286 = arith.addf %285, %284 : vector<1x128xf32>
    %287 = arith.divf %285, %286 : vector<1x128xf32>
    %288 = arith.select %154, %282, %287 : vector<1x128xi1>, vector<1x128xf32>
    %289 = vector.extract_strided_slice %288 {offsets = [0, 0], sizes = [1, 32], strides = [1, 1]} : vector<1x128xf32> to vector<1x32xf32>
    %290 = vector.extract_strided_slice %288 {offsets = [0, 32], sizes = [1, 32], strides = [1, 1]} : vector<1x128xf32> to vector<1x32xf32>
    %291 = vector.extract_strided_slice %288 {offsets = [0, 64], sizes = [1, 32], strides = [1, 1]} : vector<1x128xf32> to vector<1x32xf32>
    %292 = vector.extract_strided_slice %288 {offsets = [0, 96], sizes = [1, 32], strides = [1, 1]} : vector<1x128xf32> to vector<1x32xf32>
    %293 = arith.mulf %290, %255 : vector<1x32xf32>
    %294 = arith.mulf %289, %291 : vector<1x32xf32>
    %295 = arith.addf %293, %294 : vector<1x32xf32>
    %296 = math.tanh %295 : vector<1x32xf32>
    %297 = arith.mulf %292, %296 : vector<1x32xf32>
    %298 = math.tanh %281 : vector<1x128xf32>
    %299 = arith.negf %281 : vector<1x128xf32>
    %300 = math.exp %299 : vector<1x128xf32>
    %cst_107 = arith.constant 1.000000e+00 : f32
    %301 = vector.broadcast %cst_107 : f32 to vector<1x128xf32>
    %302 = arith.addf %301, %300 : vector<1x128xf32>
    %303 = arith.divf %301, %302 : vector<1x128xf32>
    %304 = arith.select %154, %298, %303 : vector<1x128xi1>, vector<1x128xf32>
    %305 = vector.extract_strided_slice %304 {offsets = [0, 0], sizes = [1, 32], strides = [1, 1]} : vector<1x128xf32> to vector<1x32xf32>
    %306 = vector.extract_strided_slice %304 {offsets = [0, 32], sizes = [1, 32], strides = [1, 1]} : vector<1x128xf32> to vector<1x32xf32>
    %307 = vector.extract_strided_slice %304 {offsets = [0, 64], sizes = [1, 32], strides = [1, 1]} : vector<1x128xf32> to vector<1x32xf32>
    %308 = vector.extract_strided_slice %304 {offsets = [0, 96], sizes = [1, 32], strides = [1, 1]} : vector<1x128xf32> to vector<1x32xf32>
    %309 = arith.mulf %306, %271 : vector<1x32xf32>
    %310 = arith.mulf %305, %307 : vector<1x32xf32>
    %311 = arith.addf %309, %310 : vector<1x32xf32>
    %312 = math.tanh %311 : vector<1x32xf32>
    %313 = arith.mulf %308, %312 : vector<1x32xf32>
    %c3_108 = arith.constant 3 : index
    %c0_109 = arith.constant 0 : index
    %314 = vector.load %arg27[%c3_108, %c0_109] : memref<8x32xf32, #tpu.memory_space<vmem>>, vector<1x32xf32>
    tpu.vector_store %arg27[%c3_108, %c0_109], %297 {strides = array<i32>} : memref<8x32xf32, #tpu.memory_space<vmem>>, vector<1x32xf32>,
    %c4_110 = arith.constant 4 : index
    %c0_111 = arith.constant 0 : index
    %315 = vector.load %arg28[%c4_110, %c0_111] : memref<8x32xf32, #tpu.memory_space<vmem>>, vector<1x32xf32>
    tpu.vector_store %arg28[%c4_110, %c0_111], %313 {strides = array<i32>} : memref<8x32xf32, #tpu.memory_space<vmem>>, vector<1x32xf32>,
    %c4_112 = arith.constant 4 : index
    %c0_113 = arith.constant 0 : index
    %316 = vector.load %arg26[%c4_112, %c0_113] : memref<8x256xf32, #tpu.memory_space<vmem>>, vector<1x128xf32>
    %cst_114 = arith.constant dense<0.000000e+00> : vector<1x128xf32>
    %317 = tpu.matmul %297, %147, %cst_114 {dimension_numbers = #tpu.dot_dimension_numbers<[1], [0], [0], [1], [0, 0, 1, 1], [], []>} : vector<1x32xf32>, vector<32x128xf32>, vector<1x128xf32> -> vector<1x128xf32>
    %318 = arith.addf %316, %317 : vector<1x128xf32>
    %c3_115 = arith.constant 3 : index
    %c128_116 = arith.constant 128 : index
    %319 = vector.load %arg26[%c3_115, %c128_116] : memref<8x256xf32, #tpu.memory_space<vmem>>, vector<1x128xf32>
    %cst_117 = arith.constant dense<0.000000e+00> : vector<1x128xf32>
    %320 = tpu.matmul %313, %148, %cst_117 {dimension_numbers = #tpu.dot_dimension_numbers<[1], [0], [0], [1], [0, 0, 1, 1], [], []>} : vector<1x32xf32>, vector<32x128xf32>, vector<1x128xf32> -> vector<1x128xf32>
    %321 = arith.addf %319, %320 : vector<1x128xf32>
    %322 = math.tanh %318 : vector<1x128xf32>
    %323 = arith.negf %318 : vector<1x128xf32>
    %324 = math.exp %323 : vector<1x128xf32>
    %cst_118 = arith.constant 1.000000e+00 : f32
    %325 = vector.broadcast %cst_118 : f32 to vector<1x128xf32>
    %326 = arith.addf %325, %324 : vector<1x128xf32>
    %327 = arith.divf %325, %326 : vector<1x128xf32>
    %328 = arith.select %154, %322, %327 : vector<1x128xi1>, vector<1x128xf32>
    %329 = vector.extract_strided_slice %328 {offsets = [0, 0], sizes = [1, 32], strides = [1, 1]} : vector<1x128xf32> to vector<1x32xf32>
    %330 = vector.extract_strided_slice %328 {offsets = [0, 32], sizes = [1, 32], strides = [1, 1]} : vector<1x128xf32> to vector<1x32xf32>
    %331 = vector.extract_strided_slice %328 {offsets = [0, 64], sizes = [1, 32], strides = [1, 1]} : vector<1x128xf32> to vector<1x32xf32>
    %332 = vector.extract_strided_slice %328 {offsets = [0, 96], sizes = [1, 32], strides = [1, 1]} : vector<1x128xf32> to vector<1x32xf32>
    %333 = arith.mulf %330, %295 : vector<1x32xf32>
    %334 = arith.mulf %329, %331 : vector<1x32xf32>
    %335 = arith.addf %333, %334 : vector<1x32xf32>
    %336 = math.tanh %335 : vector<1x32xf32>
    %337 = arith.mulf %332, %336 : vector<1x32xf32>
    %338 = math.tanh %321 : vector<1x128xf32>
    %339 = arith.negf %321 : vector<1x128xf32>
    %340 = math.exp %339 : vector<1x128xf32>
    %cst_119 = arith.constant 1.000000e+00 : f32
    %341 = vector.broadcast %cst_119 : f32 to vector<1x128xf32>
    %342 = arith.addf %341, %340 : vector<1x128xf32>
    %343 = arith.divf %341, %342 : vector<1x128xf32>
    %344 = arith.select %154, %338, %343 : vector<1x128xi1>, vector<1x128xf32>
    %345 = vector.extract_strided_slice %344 {offsets = [0, 0], sizes = [1, 32], strides = [1, 1]} : vector<1x128xf32> to vector<1x32xf32>
    %346 = vector.extract_strided_slice %344 {offsets = [0, 32], sizes = [1, 32], strides = [1, 1]} : vector<1x128xf32> to vector<1x32xf32>
    %347 = vector.extract_strided_slice %344 {offsets = [0, 64], sizes = [1, 32], strides = [1, 1]} : vector<1x128xf32> to vector<1x32xf32>
    %348 = vector.extract_strided_slice %344 {offsets = [0, 96], sizes = [1, 32], strides = [1, 1]} : vector<1x128xf32> to vector<1x32xf32>
    %349 = arith.mulf %346, %311 : vector<1x32xf32>
    %350 = arith.mulf %345, %347 : vector<1x32xf32>
    %351 = arith.addf %349, %350 : vector<1x32xf32>
    %352 = math.tanh %351 : vector<1x32xf32>
    %353 = arith.mulf %348, %352 : vector<1x32xf32>
    %c4_120 = arith.constant 4 : index
    %c0_121 = arith.constant 0 : index
    %354 = vector.load %arg27[%c4_120, %c0_121] : memref<8x32xf32, #tpu.memory_space<vmem>>, vector<1x32xf32>
    tpu.vector_store %arg27[%c4_120, %c0_121], %337 {strides = array<i32>} : memref<8x32xf32, #tpu.memory_space<vmem>>, vector<1x32xf32>,
    %c3_122 = arith.constant 3 : index
    %c0_123 = arith.constant 0 : index
    %355 = vector.load %arg28[%c3_122, %c0_123] : memref<8x32xf32, #tpu.memory_space<vmem>>, vector<1x32xf32>
    tpu.vector_store %arg28[%c3_122, %c0_123], %353 {strides = array<i32>} : memref<8x32xf32, #tpu.memory_space<vmem>>, vector<1x32xf32>,
    %c5_124 = arith.constant 5 : index
    %c0_125 = arith.constant 0 : index
    %356 = vector.load %arg26[%c5_124, %c0_125] : memref<8x256xf32, #tpu.memory_space<vmem>>, vector<1x128xf32>
    %cst_126 = arith.constant dense<0.000000e+00> : vector<1x128xf32>
    %357 = tpu.matmul %337, %147, %cst_126 {dimension_numbers = #tpu.dot_dimension_numbers<[1], [0], [0], [1], [0, 0, 1, 1], [], []>} : vector<1x32xf32>, vector<32x128xf32>, vector<1x128xf32> -> vector<1x128xf32>
    %358 = arith.addf %356, %357 : vector<1x128xf32>
    %c2_127 = arith.constant 2 : index
    %c128_128 = arith.constant 128 : index
    %359 = vector.load %arg26[%c2_127, %c128_128] : memref<8x256xf32, #tpu.memory_space<vmem>>, vector<1x128xf32>
    %cst_129 = arith.constant dense<0.000000e+00> : vector<1x128xf32>
    %360 = tpu.matmul %353, %148, %cst_129 {dimension_numbers = #tpu.dot_dimension_numbers<[1], [0], [0], [1], [0, 0, 1, 1], [], []>} : vector<1x32xf32>, vector<32x128xf32>, vector<1x128xf32> -> vector<1x128xf32>
    %361 = arith.addf %359, %360 : vector<1x128xf32>
    %362 = math.tanh %358 : vector<1x128xf32>
    %363 = arith.negf %358 : vector<1x128xf32>
    %364 = math.exp %363 : vector<1x128xf32>
    %cst_130 = arith.constant 1.000000e+00 : f32
    %365 = vector.broadcast %cst_130 : f32 to vector<1x128xf32>
    %366 = arith.addf %365, %364 : vector<1x128xf32>
    %367 = arith.divf %365, %366 : vector<1x128xf32>
    %368 = arith.select %154, %362, %367 : vector<1x128xi1>, vector<1x128xf32>
    %369 = vector.extract_strided_slice %368 {offsets = [0, 0], sizes = [1, 32], strides = [1, 1]} : vector<1x128xf32> to vector<1x32xf32>
    %370 = vector.extract_strided_slice %368 {offsets = [0, 32], sizes = [1, 32], strides = [1, 1]} : vector<1x128xf32> to vector<1x32xf32>
    %371 = vector.extract_strided_slice %368 {offsets = [0, 64], sizes = [1, 32], strides = [1, 1]} : vector<1x128xf32> to vector<1x32xf32>
    %372 = vector.extract_strided_slice %368 {offsets = [0, 96], sizes = [1, 32], strides = [1, 1]} : vector<1x128xf32> to vector<1x32xf32>
    %373 = arith.mulf %370, %335 : vector<1x32xf32>
    %374 = arith.mulf %369, %371 : vector<1x32xf32>
    %375 = arith.addf %373, %374 : vector<1x32xf32>
    %376 = math.tanh %375 : vector<1x32xf32>
    %377 = arith.mulf %372, %376 : vector<1x32xf32>
    %378 = math.tanh %361 : vector<1x128xf32>
    %379 = arith.negf %361 : vector<1x128xf32>
    %380 = math.exp %379 : vector<1x128xf32>
    %cst_131 = arith.constant 1.000000e+00 : f32
    %381 = vector.broadcast %cst_131 : f32 to vector<1x128xf32>
    %382 = arith.addf %381, %380 : vector<1x128xf32>
    %383 = arith.divf %381, %382 : vector<1x128xf32>
    %384 = arith.select %154, %378, %383 : vector<1x128xi1>, vector<1x128xf32>
    %385 = vector.extract_strided_slice %384 {offsets = [0, 0], sizes = [1, 32], strides = [1, 1]} : vector<1x128xf32> to vector<1x32xf32>
    %386 = vector.extract_strided_slice %384 {offsets = [0, 32], sizes = [1, 32], strides = [1, 1]} : vector<1x128xf32> to vector<1x32xf32>
    %387 = vector.extract_strided_slice %384 {offsets = [0, 64], sizes = [1, 32], strides = [1, 1]} : vector<1x128xf32> to vector<1x32xf32>
    %388 = vector.extract_strided_slice %384 {offsets = [0, 96], sizes = [1, 32], strides = [1, 1]} : vector<1x128xf32> to vector<1x32xf32>
    %389 = arith.mulf %386, %351 : vector<1x32xf32>
    %390 = arith.mulf %385, %387 : vector<1x32xf32>
    %391 = arith.addf %389, %390 : vector<1x32xf32>
    %392 = math.tanh %391 : vector<1x32xf32>
    %393 = arith.mulf %388, %392 : vector<1x32xf32>
    %c5_132 = arith.constant 5 : index
    %c0_133 = arith.constant 0 : index
    %394 = vector.load %arg27[%c5_132, %c0_133] : memref<8x32xf32, #tpu.memory_space<vmem>>, vector<1x32xf32>
    tpu.vector_store %arg27[%c5_132, %c0_133], %377 {strides = array<i32>} : memref<8x32xf32, #tpu.memory_space<vmem>>, vector<1x32xf32>,
    %c2_134 = arith.constant 2 : index
    %c0_135 = arith.constant 0 : index
    %395 = vector.load %arg28[%c2_134, %c0_135] : memref<8x32xf32, #tpu.memory_space<vmem>>, vector<1x32xf32>
    tpu.vector_store %arg28[%c2_134, %c0_135], %393 {strides = array<i32>} : memref<8x32xf32, #tpu.memory_space<vmem>>, vector<1x32xf32>,
    %c6_136 = arith.constant 6 : index
    %c0_137 = arith.constant 0 : index
    %396 = vector.load %arg26[%c6_136, %c0_137] : memref<8x256xf32, #tpu.memory_space<vmem>>, vector<1x128xf32>
    %cst_138 = arith.constant dense<0.000000e+00> : vector<1x128xf32>
    %397 = tpu.matmul %377, %147, %cst_138 {dimension_numbers = #tpu.dot_dimension_numbers<[1], [0], [0], [1], [0, 0, 1, 1], [], []>} : vector<1x32xf32>, vector<32x128xf32>, vector<1x128xf32> -> vector<1x128xf32>
    %398 = arith.addf %396, %397 : vector<1x128xf32>
    %c1_139 = arith.constant 1 : index
    %c128_140 = arith.constant 128 : index
    %399 = vector.load %arg26[%c1_139, %c128_140] : memref<8x256xf32, #tpu.memory_space<vmem>>, vector<1x128xf32>
    %cst_141 = arith.constant dense<0.000000e+00> : vector<1x128xf32>
    %400 = tpu.matmul %393, %148, %cst_141 {dimension_numbers = #tpu.dot_dimension_numbers<[1], [0], [0], [1], [0, 0, 1, 1], [], []>} : vector<1x32xf32>, vector<32x128xf32>, vector<1x128xf32> -> vector<1x128xf32>
    %401 = arith.addf %399, %400 : vector<1x128xf32>
    %402 = math.tanh %398 : vector<1x128xf32>
    %403 = arith.negf %398 : vector<1x128xf32>
    %404 = math.exp %403 : vector<1x128xf32>
    %cst_142 = arith.constant 1.000000e+00 : f32
    %405 = vector.broadcast %cst_142 : f32 to vector<1x128xf32>
    %406 = arith.addf %405, %404 : vector<1x128xf32>
    %407 = arith.divf %405, %406 : vector<1x128xf32>
    %408 = arith.select %154, %402, %407 : vector<1x128xi1>, vector<1x128xf32>
    %409 = vector.extract_strided_slice %408 {offsets = [0, 0], sizes = [1, 32], strides = [1, 1]} : vector<1x128xf32> to vector<1x32xf32>
    %410 = vector.extract_strided_slice %408 {offsets = [0, 32], sizes = [1, 32], strides = [1, 1]} : vector<1x128xf32> to vector<1x32xf32>
    %411 = vector.extract_strided_slice %408 {offsets = [0, 64], sizes = [1, 32], strides = [1, 1]} : vector<1x128xf32> to vector<1x32xf32>
    %412 = vector.extract_strided_slice %408 {offsets = [0, 96], sizes = [1, 32], strides = [1, 1]} : vector<1x128xf32> to vector<1x32xf32>
    %413 = arith.mulf %410, %375 : vector<1x32xf32>
    %414 = arith.mulf %409, %411 : vector<1x32xf32>
    %415 = arith.addf %413, %414 : vector<1x32xf32>
    %416 = math.tanh %415 : vector<1x32xf32>
    %417 = arith.mulf %412, %416 : vector<1x32xf32>
    %418 = math.tanh %401 : vector<1x128xf32>
    %419 = arith.negf %401 : vector<1x128xf32>
    %420 = math.exp %419 : vector<1x128xf32>
    %cst_143 = arith.constant 1.000000e+00 : f32
    %421 = vector.broadcast %cst_143 : f32 to vector<1x128xf32>
    %422 = arith.addf %421, %420 : vector<1x128xf32>
    %423 = arith.divf %421, %422 : vector<1x128xf32>
    %424 = arith.select %154, %418, %423 : vector<1x128xi1>, vector<1x128xf32>
    %425 = vector.extract_strided_slice %424 {offsets = [0, 0], sizes = [1, 32], strides = [1, 1]} : vector<1x128xf32> to vector<1x32xf32>
    %426 = vector.extract_strided_slice %424 {offsets = [0, 32], sizes = [1, 32], strides = [1, 1]} : vector<1x128xf32> to vector<1x32xf32>
    %427 = vector.extract_strided_slice %424 {offsets = [0, 64], sizes = [1, 32], strides = [1, 1]} : vector<1x128xf32> to vector<1x32xf32>
    %428 = vector.extract_strided_slice %424 {offsets = [0, 96], sizes = [1, 32], strides = [1, 1]} : vector<1x128xf32> to vector<1x32xf32>
    %429 = arith.mulf %426, %391 : vector<1x32xf32>
    %430 = arith.mulf %425, %427 : vector<1x32xf32>
    %431 = arith.addf %429, %430 : vector<1x32xf32>
    %432 = math.tanh %431 : vector<1x32xf32>
    %433 = arith.mulf %428, %432 : vector<1x32xf32>
    %c6_144 = arith.constant 6 : index
    %c0_145 = arith.constant 0 : index
    %434 = vector.load %arg27[%c6_144, %c0_145] : memref<8x32xf32, #tpu.memory_space<vmem>>, vector<1x32xf32>
    tpu.vector_store %arg27[%c6_144, %c0_145], %417 {strides = array<i32>} : memref<8x32xf32, #tpu.memory_space<vmem>>, vector<1x32xf32>,
    %c1_146 = arith.constant 1 : index
    %c0_147 = arith.constant 0 : index
    %435 = vector.load %arg28[%c1_146, %c0_147] : memref<8x32xf32, #tpu.memory_space<vmem>>, vector<1x32xf32>
    tpu.vector_store %arg28[%c1_146, %c0_147], %433 {strides = array<i32>} : memref<8x32xf32, #tpu.memory_space<vmem>>, vector<1x32xf32>,
    %c7_148 = arith.constant 7 : index
    %c0_149 = arith.constant 0 : index
    %436 = vector.load %arg26[%c7_148, %c0_149] : memref<8x256xf32, #tpu.memory_space<vmem>>, vector<1x128xf32>
    %cst_150 = arith.constant dense<0.000000e+00> : vector<1x128xf32>
    %437 = tpu.matmul %417, %147, %cst_150 {dimension_numbers = #tpu.dot_dimension_numbers<[1], [0], [0], [1], [0, 0, 1, 1], [], []>} : vector<1x32xf32>, vector<32x128xf32>, vector<1x128xf32> -> vector<1x128xf32>
    %438 = arith.addf %436, %437 : vector<1x128xf32>
    %c0_151 = arith.constant 0 : index
    %c128_152 = arith.constant 128 : index
    %439 = vector.load %arg26[%c0_151, %c128_152] : memref<8x256xf32, #tpu.memory_space<vmem>>, vector<1x128xf32>
    %cst_153 = arith.constant dense<0.000000e+00> : vector<1x128xf32>
    %440 = tpu.matmul %433, %148, %cst_153 {dimension_numbers = #tpu.dot_dimension_numbers<[1], [0], [0], [1], [0, 0, 1, 1], [], []>} : vector<1x32xf32>, vector<32x128xf32>, vector<1x128xf32> -> vector<1x128xf32>
    %441 = arith.addf %439, %440 : vector<1x128xf32>
    %442 = math.tanh %438 : vector<1x128xf32>
    %443 = arith.negf %438 : vector<1x128xf32>
    %444 = math.exp %443 : vector<1x128xf32>
    %cst_154 = arith.constant 1.000000e+00 : f32
    %445 = vector.broadcast %cst_154 : f32 to vector<1x128xf32>
    %446 = arith.addf %445, %444 : vector<1x128xf32>
    %447 = arith.divf %445, %446 : vector<1x128xf32>
    %448 = arith.select %154, %442, %447 : vector<1x128xi1>, vector<1x128xf32>
    %449 = vector.extract_strided_slice %448 {offsets = [0, 0], sizes = [1, 32], strides = [1, 1]} : vector<1x128xf32> to vector<1x32xf32>
    %450 = vector.extract_strided_slice %448 {offsets = [0, 32], sizes = [1, 32], strides = [1, 1]} : vector<1x128xf32> to vector<1x32xf32>
    %451 = vector.extract_strided_slice %448 {offsets = [0, 64], sizes = [1, 32], strides = [1, 1]} : vector<1x128xf32> to vector<1x32xf32>
    %452 = vector.extract_strided_slice %448 {offsets = [0, 96], sizes = [1, 32], strides = [1, 1]} : vector<1x128xf32> to vector<1x32xf32>
    %453 = arith.mulf %450, %415 : vector<1x32xf32>
    %454 = arith.mulf %449, %451 : vector<1x32xf32>
    %455 = arith.addf %453, %454 : vector<1x32xf32>
    %456 = math.tanh %455 : vector<1x32xf32>
    %457 = arith.mulf %452, %456 : vector<1x32xf32>
    %458 = math.tanh %441 : vector<1x128xf32>
    %459 = arith.negf %441 : vector<1x128xf32>
    %460 = math.exp %459 : vector<1x128xf32>
    %cst_155 = arith.constant 1.000000e+00 : f32
    %461 = vector.broadcast %cst_155 : f32 to vector<1x128xf32>
    %462 = arith.addf %461, %460 : vector<1x128xf32>
    %463 = arith.divf %461, %462 : vector<1x128xf32>
    %464 = arith.select %154, %458, %463 : vector<1x128xi1>, vector<1x128xf32>
    %465 = vector.extract_strided_slice %464 {offsets = [0, 0], sizes = [1, 32], strides = [1, 1]} : vector<1x128xf32> to vector<1x32xf32>
    %466 = vector.extract_strided_slice %464 {offsets = [0, 32], sizes = [1, 32], strides = [1, 1]} : vector<1x128xf32> to vector<1x32xf32>
    %467 = vector.extract_strided_slice %464 {offsets = [0, 64], sizes = [1, 32], strides = [1, 1]} : vector<1x128xf32> to vector<1x32xf32>
    %468 = vector.extract_strided_slice %464 {offsets = [0, 96], sizes = [1, 32], strides = [1, 1]} : vector<1x128xf32> to vector<1x32xf32>
    %469 = arith.mulf %466, %431 : vector<1x32xf32>
    %470 = arith.mulf %465, %467 : vector<1x32xf32>
    %471 = arith.addf %469, %470 : vector<1x32xf32>
    %472 = math.tanh %471 : vector<1x32xf32>
    %473 = arith.mulf %468, %472 : vector<1x32xf32>
    %c7_156 = arith.constant 7 : index
    %c0_157 = arith.constant 0 : index
    %474 = vector.load %arg27[%c7_156, %c0_157] : memref<8x32xf32, #tpu.memory_space<vmem>>, vector<1x32xf32>
    tpu.vector_store %arg27[%c7_156, %c0_157], %457 {strides = array<i32>} : memref<8x32xf32, #tpu.memory_space<vmem>>, vector<1x32xf32>,
    %c0_158 = arith.constant 0 : index
    %c0_159 = arith.constant 0 : index
    %475 = vector.load %arg28[%c0_158, %c0_159] : memref<8x32xf32, #tpu.memory_space<vmem>>, vector<1x32xf32>
    tpu.vector_store %arg28[%c0_158, %c0_159], %473 {strides = array<i32>} : memref<8x32xf32, #tpu.memory_space<vmem>>, vector<1x32xf32>,
    %c0_160 = arith.constant 0 : index
    %c0_161 = arith.constant 0 : index
    %476 = vector.load %arg27[%c0_160, %c0_161] : memref<8x32xf32, #tpu.memory_space<vmem>>, vector<8x32xf32>
    %c0_162 = arith.constant 0 : index
    %c0_163 = arith.constant 0 : index
    %477 = vector.load %arg21[%c0_162, %c0_163] : memref<1x32xf32, #tpu.memory_space<vmem>>, vector<1x32xf32>
    %c0_164 = arith.constant 0 : index
    %c0_165 = arith.constant 0 : index
    %478 = vector.load %arg22[%c0_164, %c0_165] : memref<1x32xf32, #tpu.memory_space<vmem>>, vector<1x32xf32>
    %cst_166 = arith.constant dense<0.000000e+00> : vector<32xf32>
    %479 = vector.multi_reduction <add>, %476, %cst_166 [0] : vector<8x32xf32> to vector<32xf32>
    %480 = vector.shape_cast %479 : vector<32xf32> to vector<1x32xf32>
    %cst_167 = arith.constant 8.000000e+00 : f32
    %481 = vector.broadcast %cst_167 : f32 to vector<1x32xf32>
    %482 = arith.divf %480, %481 : vector<1x32xf32>
    %483 = vector.broadcast %482 : vector<1x32xf32> to vector<8x32xf32>
    %484 = arith.subf %476, %483 : vector<8x32xf32>
    %485 = arith.mulf %484, %484 : vector<8x32xf32>
    %cst_168 = arith.constant dense<0.000000e+00> : vector<32xf32>
    %486 = vector.multi_reduction <add>, %485, %cst_168 [0] : vector<8x32xf32> to vector<32xf32>
    %487 = vector.shape_cast %486 : vector<32xf32> to vector<1x32xf32>
    %cst_169 = arith.constant 8.000000e+00 : f32
    %488 = vector.broadcast %cst_169 : f32 to vector<1x32xf32>
    %489 = arith.divf %487, %488 : vector<1x32xf32>
    %490 = vector.broadcast %482 : vector<1x32xf32> to vector<8x32xf32>
    %491 = arith.subf %476, %490 : vector<8x32xf32>
    %cst_170 = arith.constant 9.99999974E-6 : f32
    %492 = vector.broadcast %cst_170 : f32 to vector<1x32xf32>
    %493 = arith.addf %489, %492 : vector<1x32xf32>
    %494 = math.rsqrt %493 : vector<1x32xf32>
    %495 = vector.broadcast %494 : vector<1x32xf32> to vector<8x32xf32>
    %496 = arith.mulf %491, %495 : vector<8x32xf32>
    %497 = vector.broadcast %477 : vector<1x32xf32> to vector<8x32xf32>
    %498 = arith.mulf %496, %497 : vector<8x32xf32>
    %499 = vector.broadcast %478 : vector<1x32xf32> to vector<8x32xf32>
    %500 = arith.addf %498, %499 : vector<8x32xf32>
    %501 = arith.negf %500 : vector<8x32xf32>
    %502 = math.exp %501 : vector<8x32xf32>
    %cst_171 = arith.constant 1.000000e+00 : f32
    %503 = vector.broadcast %cst_171 : f32 to vector<8x32xf32>
    %504 = arith.addf %503, %502 : vector<8x32xf32>
    %505 = arith.divf %503, %504 : vector<8x32xf32>
    %506 = arith.mulf %500, %505 : vector<8x32xf32>
    %c0_172 = arith.constant 0 : index
    %c0_173 = arith.constant 0 : index
    %507 = vector.load %arg25[%c0_172, %c0_173] : memref<8x64xf32, #tpu.memory_space<vmem>>, vector<8x32xf32>
    tpu.vector_store %arg25[%c0_172, %c0_173], %506 {strides = array<i32>} : memref<8x64xf32, #tpu.memory_space<vmem>>, vector<8x32xf32>,
    %c0_174 = arith.constant 0 : index
    %c0_175 = arith.constant 0 : index
    %508 = vector.load %arg28[%c0_174, %c0_175] : memref<8x32xf32, #tpu.memory_space<vmem>>, vector<8x32xf32>
    %c0_176 = arith.constant 0 : index
    %c0_177 = arith.constant 0 : index
    %509 = vector.load %arg23[%c0_176, %c0_177] : memref<1x32xf32, #tpu.memory_space<vmem>>, vector<1x32xf32>
    %c0_178 = arith.constant 0 : index
    %c0_179 = arith.constant 0 : index
    %510 = vector.load %arg24[%c0_178, %c0_179] : memref<1x32xf32, #tpu.memory_space<vmem>>, vector<1x32xf32>
    %cst_180 = arith.constant dense<0.000000e+00> : vector<32xf32>
    %511 = vector.multi_reduction <add>, %508, %cst_180 [0] : vector<8x32xf32> to vector<32xf32>
    %512 = vector.shape_cast %511 : vector<32xf32> to vector<1x32xf32>
    %cst_181 = arith.constant 8.000000e+00 : f32
    %513 = vector.broadcast %cst_181 : f32 to vector<1x32xf32>
    %514 = arith.divf %512, %513 : vector<1x32xf32>
    %515 = vector.broadcast %514 : vector<1x32xf32> to vector<8x32xf32>
    %516 = arith.subf %508, %515 : vector<8x32xf32>
    %517 = arith.mulf %516, %516 : vector<8x32xf32>
    %cst_182 = arith.constant dense<0.000000e+00> : vector<32xf32>
    %518 = vector.multi_reduction <add>, %517, %cst_182 [0] : vector<8x32xf32> to vector<32xf32>
    %519 = vector.shape_cast %518 : vector<32xf32> to vector<1x32xf32>
    %cst_183 = arith.constant 8.000000e+00 : f32
    %520 = vector.broadcast %cst_183 : f32 to vector<1x32xf32>
    %521 = arith.divf %519, %520 : vector<1x32xf32>
    %522 = vector.broadcast %514 : vector<1x32xf32> to vector<8x32xf32>
    %523 = arith.subf %508, %522 : vector<8x32xf32>
    %cst_184 = arith.constant 9.99999974E-6 : f32
    %524 = vector.broadcast %cst_184 : f32 to vector<1x32xf32>
    %525 = arith.addf %521, %524 : vector<1x32xf32>
    %526 = math.rsqrt %525 : vector<1x32xf32>
    %527 = vector.broadcast %526 : vector<1x32xf32> to vector<8x32xf32>
    %528 = arith.mulf %523, %527 : vector<8x32xf32>
    %529 = vector.broadcast %509 : vector<1x32xf32> to vector<8x32xf32>
    %530 = arith.mulf %528, %529 : vector<8x32xf32>
    %531 = vector.broadcast %510 : vector<1x32xf32> to vector<8x32xf32>
    %532 = arith.addf %530, %531 : vector<8x32xf32>
    %533 = arith.negf %532 : vector<8x32xf32>
    %534 = math.exp %533 : vector<8x32xf32>
    %cst_185 = arith.constant 1.000000e+00 : f32
    %535 = vector.broadcast %cst_185 : f32 to vector<8x32xf32>
    %536 = arith.addf %535, %534 : vector<8x32xf32>
    %537 = arith.divf %535, %536 : vector<8x32xf32>
    %538 = arith.mulf %532, %537 : vector<8x32xf32>
    %c0_186 = arith.constant 0 : index
    %c32 = arith.constant 32 : index
    %539 = vector.load %arg25[%c0_186, %c32] : memref<8x64xf32, #tpu.memory_space<vmem>>, vector<8x32xf32>
    tpu.vector_store %arg25[%c0_186, %c32], %538 {strides = array<i32>} : memref<8x64xf32, #tpu.memory_space<vmem>>, vector<8x32xf32>,
    return
  }
}

</mosaic_0001>

<llo_original>
// kernel: split_model_forward.1
$region0: #{split_model_forward.1}
  #allocation0 [shape = 'u32[]', space=smem, size = 0x4, offset = 0x4, fixed_abs, tag = 'smem constant byte address 0x4 - core index']
  #allocation1 [shape = 'u32[144,128]{1,0:T(1,128)}', space=vmem, size = 0x12000, scoped, tag = 'internal scratch']
  #allocation2 [shape = 'f32[8,256]{1,0:T(8,128)}', space=vmem, size = 0x2000, scoped, tag = 'scratch operand']
  #allocation3 [shape = 'f32[8,32]{1,0:T(8,128)}', space=vmem, size = 0x1000, scoped, tag = 'scratch operand']
  #allocation4 [shape = 'f32[8,32]{1,0:T(8,128)}', space=vmem, size = 0x1000, scoped, tag = 'scratch operand']
  %s0 = inlined_call_operand.vmem [shape: f32[8,16], index: 0, kind: input, shape index: {}]
  %s1 = inlined_call_operand.vmem [shape: f32[16,32], index: 1, kind: input, shape index: {}]
  %s2 = inlined_call_operand.vmem [shape: f32[1,32], index: 2, kind: input, shape index: {}]
  %s3 = inlined_call_operand.vmem [shape: f32[1,32], index: 3, kind: input, shape index: {}]
  %s4 = inlined_call_operand.vmem [shape: f32[1,32], index: 4, kind: input, shape index: {}]
  %s5 = inlined_call_operand.vmem [shape: f32[32,64], index: 5, kind: input, shape index: {}]
  %s6 = inlined_call_operand.vmem [shape: f32[1,64], index: 6, kind: input, shape index: {}]
  %s7 = inlined_call_operand.vmem [shape: f32[1,64], index: 7, kind: input, shape index: {}]
  %s8 = inlined_call_operand.vmem [shape: f32[1,64], index: 8, kind: input, shape index: {}]
  %s9 = inlined_call_operand.vmem [shape: f32[64,32], index: 9, kind: input, shape index: {}]
  %s10 = inlined_call_operand.vmem [shape: f32[1,32], index: 10, kind: input, shape index: {}]
  %s11 = inlined_call_operand.vmem [shape: f32[1,32], index: 11, kind: input, shape index: {}]
  %s12 = inlined_call_operand.vmem [shape: f32[1,32], index: 12, kind: input, shape index: {}]
  %s13 = inlined_call_operand.vmem [shape: f32[32,16], index: 13, kind: input, shape index: {}]
  %s14 = inlined_call_operand.vmem [shape: f32[1,16], index: 14, kind: input, shape index: {}]
  %s15 = inlined_call_operand.vmem [shape: f32[1,16], index: 15, kind: input, shape index: {}]
  %s16 = inlined_call_operand.vmem [shape: f32[1,16], index: 16, kind: input, shape index: {}]
  %s17 = inlined_call_operand.vmem [shape: f32[16,256], index: 17, kind: input, shape index: {}]
  %s18 = inlined_call_operand.vmem [shape: f32[1,256], index: 18, kind: input, shape index: {}]
  %s19 = inlined_call_operand.vmem [shape: f32[32,128], index: 19, kind: input, shape index: {}]
  %s20 = inlined_call_operand.vmem [shape: f32[32,128], index: 20, kind: input, shape index: {}]
  %s21 = inlined_call_operand.vmem [shape: f32[1,32], index: 21, kind: input, shape index: {}]
  %s22 = inlined_call_operand.vmem [shape: f32[1,32], index: 22, kind: input, shape index: {}]
  %s23 = inlined_call_operand.vmem [shape: f32[1,32], index: 23, kind: input, shape index: {}]
  %s24 = inlined_call_operand.vmem [shape: f32[1,32], index: 24, kind: input, shape index: {}]
  %s25 = inlined_call_operand.hbm [shape: f32[8,64], index: 25, kind: output, shape index: {}]
  %s26 = sld [smem:[#allocation0]]
  $region110: #{split_model_forward.1} parent=0
    _
  %s28 = ssub.s32 1, %s26
  %s29 = scalar_select 0, %s28, %s26
  $region1: #{split_model_forward.1} parent=0
    #allocation5 [shape = 'u8[4096]{0}', space=vmem, size = 0x1000, scoped, tag = 'output window, operand 0, single buffered']
    #allocation6 [shape = 's32[1]{0}', space=sflag, size = 0x4, scoped, tag = 'scoped memory for split_model_forward.1']
    %30 = vsyncpa [#allocation6], 0
    // Predicated region
    $region2: #{split_model_forward.1} parent=1 // pred_check
      _
    $region3: #{split_model_forward.1} parent=1 // pred_check_branch
      %32 = sbr.rel (0) target = $region5
    $region4: #{split_model_forward.1} parent=1 // pred_region
      _
    $region5: #{split_model_forward.1} parent=1 // pred_fallthru
      _
    // Predicated region
    $region6: #{split_model_forward.1} parent=1 // pred_check
      _
    $region7: #{split_model_forward.1} parent=1 // pred_check_branch
      %34 = sbr.rel (0) target = $region9
    $region8: #{split_model_forward.1} parent=1 // pred_region
      _
    $region9: #{split_model_forward.1} parent=1 // pred_fallthru
      _
    // Predicated region
    $region10: #{split_model_forward.1} parent=1 // pred_check
      _
    $region11: #{split_model_forward.1} parent=1 // pred_check_branch
      %36 = sbr.rel (0) target = $region13
    $region12: #{split_model_forward.1} parent=1 // pred_region
      _
    $region13: #{split_model_forward.1} parent=1 // pred_fallthru
      _
    // Predicated region
    $region14: #{split_model_forward.1} parent=1 // pred_check
      _
    $region15: #{split_model_forward.1} parent=1 // pred_check_branch
      %38 = sbr.rel (0) target = $region17
    $region16: #{split_model_forward.1} parent=1 // pred_region
      _
    $region17: #{split_model_forward.1} parent=1 // pred_fallthru
      _
    // Predicated region
    $region18: #{split_model_forward.1} parent=1 // pred_check
      _
    $region19: #{split_model_forward.1} parent=1 // pred_check_branch
      %40 = sbr.rel (0) target = $region21
    $region20: #{split_model_forward.1} parent=1 // pred_region
      _
    $region21: #{split_model_forward.1} parent=1 // pred_fallthru
      _
    // Predicated region
    $region22: #{split_model_forward.1} parent=1 // pred_check
      _
    $region23: #{split_model_forward.1} parent=1 // pred_check_branch
      %42 = sbr.rel (0) target = $region25
    $region24: #{split_model_forward.1} parent=1 // pred_region
      _
    $region25: #{split_model_forward.1} parent=1 // pred_fallthru
      _
    // Predicated region
    $region26: #{split_model_forward.1} parent=1 // pred_check
      _
    $region27: #{split_model_forward.1} parent=1 // pred_check_branch
      %44 = sbr.rel (0) target = $region29
    $region28: #{split_model_forward.1} parent=1 // pred_region
      _
    $region29: #{split_model_forward.1} parent=1 // pred_fallthru
      _
    // Predicated region
    $region30: #{split_model_forward.1} parent=1 // pred_check
      _
    $region31: #{split_model_forward.1} parent=1 // pred_check_branch
      %46 = sbr.rel (0) target = $region33
    $region32: #{split_model_forward.1} parent=1 // pred_region
      _
    $region33: #{split_model_forward.1} parent=1 // pred_fallthru
      _
    // Predicated region
    $region34: #{split_model_forward.1} parent=1 // pred_check
      _
    $region35: #{split_model_forward.1} parent=1 // pred_check_branch
      %48 = sbr.rel (0) target = $region37
    $region36: #{split_model_forward.1} parent=1 // pred_region
      _
    $region37: #{split_model_forward.1} parent=1 // pred_fallthru
      _
    // Predicated region
    $region38: #{split_model_forward.1} parent=1 // pred_check
      _
    $region39: #{split_model_forward.1} parent=1 // pred_check_branch
      %50 = sbr.rel (0) target = $region41
    $region40: #{split_model_forward.1} parent=1 // pred_region
      _
    $region41: #{split_model_forward.1} parent=1 // pred_fallthru
      _
    // Predicated region
    $region42: #{split_model_forward.1} parent=1 // pred_check
      _
    $region43: #{split_model_forward.1} parent=1 // pred_check_branch
      %52 = sbr.rel (0) target = $region45
    $region44: #{split_model_forward.1} parent=1 // pred_region
      _
    $region45: #{split_model_forward.1} parent=1 // pred_fallthru
      _
    // Predicated region
    $region46: #{split_model_forward.1} parent=1 // pred_check
      _
    $region47: #{split_model_forward.1} parent=1 // pred_check_branch
      %54 = sbr.rel (0) target = $region49
    $region48: #{split_model_forward.1} parent=1 // pred_region
      _
    $region49: #{split_model_forward.1} parent=1 // pred_fallthru
      _
    // Predicated region
    $region50: #{split_model_forward.1} parent=1 // pred_check
      _
    $region51: #{split_model_forward.1} parent=1 // pred_check_branch
      %56 = sbr.rel (0) target = $region53
    $region52: #{split_model_forward.1} parent=1 // pred_region
      _
    $region53: #{split_model_forward.1} parent=1 // pred_fallthru
      _
    // Predicated region
    $region54: #{split_model_forward.1} parent=1 // pred_check
      _
    $region55: #{split_model_forward.1} parent=1 // pred_check_branch
      %58 = sbr.rel (0) target = $region57
    $region56: #{split_model_forward.1} parent=1 // pred_region
      _
    $region57: #{split_model_forward.1} parent=1 // pred_fallthru
      _
    // Predicated region
    $region58: #{split_model_forward.1} parent=1 // pred_check
      _
    $region59: #{split_model_forward.1} parent=1 // pred_check_branch
      %60 = sbr.rel (0) target = $region61
    $region60: #{split_model_forward.1} parent=1 // pred_region
      _
    $region61: #{split_model_forward.1} parent=1 // pred_fallthru
      _
    // Predicated region
    $region62: #{split_model_forward.1} parent=1 // pred_check
      _
    $region63: #{split_model_forward.1} parent=1 // pred_check_branch
      %62 = sbr.rel (0) target = $region65
    $region64: #{split_model_forward.1} parent=1 // pred_region
      _
    $region65: #{split_model_forward.1} parent=1 // pred_fallthru
      _
    // Predicated region
    $region66: #{split_model_forward.1} parent=1 // pred_check
      _
    $region67: #{split_model_forward.1} parent=1 // pred_check_branch
      %64 = sbr.rel (0) target = $region69
    $region68: #{split_model_forward.1} parent=1 // pred_region
      _
    $region69: #{split_model_forward.1} parent=1 // pred_fallthru
      _
    // Predicated region
    $region70: #{split_model_forward.1} parent=1 // pred_check
      _
    $region71: #{split_model_forward.1} parent=1 // pred_check_branch
      %66 = sbr.rel (0) target = $region73
    $region72: #{split_model_forward.1} parent=1 // pred_region
      _
    $region73: #{split_model_forward.1} parent=1 // pred_fallthru
      _
    // Predicated region
    $region74: #{split_model_forward.1} parent=1 // pred_check
      _
    $region75: #{split_model_forward.1} parent=1 // pred_check_branch
      %68 = sbr.rel (0) target = $region77
    $region76: #{split_model_forward.1} parent=1 // pred_region
      _
    $region77: #{split_model_forward.1} parent=1 // pred_fallthru
      _
    // Predicated region
    $region78: #{split_model_forward.1} parent=1 // pred_check
      _
    $region79: #{split_model_forward.1} parent=1 // pred_check_branch
      %70 = sbr.rel (0) target = $region81
    $region80: #{split_model_forward.1} parent=1 // pred_region
      _
    $region81: #{split_model_forward.1} parent=1 // pred_fallthru
      _
    // Predicated region
    $region82: #{split_model_forward.1} parent=1 // pred_check
      _
    $region83: #{split_model_forward.1} parent=1 // pred_check_branch
      %72 = sbr.rel (0) target = $region85
    $region84: #{split_model_forward.1} parent=1 // pred_region
      _
    $region85: #{split_model_forward.1} parent=1 // pred_fallthru
      _
    // Predicated region
    $region86: #{split_model_forward.1} parent=1 // pred_check
      _
    $region87: #{split_model_forward.1} parent=1 // pred_check_branch
      %74 = sbr.rel (0) target = $region89
    $region88: #{split_model_forward.1} parent=1 // pred_region
      _
    $region89: #{split_model_forward.1} parent=1 // pred_fallthru
      _
    // Predicated region
    $region90: #{split_model_forward.1} parent=1 // pred_check
      _
    $region91: #{split_model_forward.1} parent=1 // pred_check_branch
      %76 = sbr.rel (0) target = $region93
    $region92: #{split_model_forward.1} parent=1 // pred_region
      _
    $region93: #{split_model_forward.1} parent=1 // pred_fallthru
      _
    // Predicated region
    $region94: #{split_model_forward.1} parent=1 // pred_check
      _
    $region95: #{split_model_forward.1} parent=1 // pred_check_branch
      %78 = sbr.rel (0) target = $region97
    $region96: #{split_model_forward.1} parent=1 // pred_region
      _
    $region97: #{split_model_forward.1} parent=1 // pred_fallthru
      _
    // Predicated region
    $region98: #{split_model_forward.1} parent=1 // pred_check
      _
    $region99: #{split_model_forward.1} parent=1 // pred_check_branch
      %80 = sbr.rel (0) target = $region101
    $region100: #{split_model_forward.1} parent=1 // pred_region
      _
    $region101: #{split_model_forward.1} parent=1 // pred_fallthru
      _
    %v81 = vld [vmem:[%s0] sm:$0xff]
    %v82 = vld [vmem:[%s1] sm:$0xff]
    %v83 = vld [vmem:[%s1 + $0x8] sm:$0xff]
    %v84 = vld [vmem:[%s2] sm:$0x1]
    %v86 = vlaneseq
    %v87 = vshrl.u32 %v86, 7
    %v88 = vsub.s32 0, %v87
    %v89 = vrot.slane %v84, %v88
    %vm91 = vcmask 130048
    %v93 = vsel %vm91, %v81, 0
    %95 = vmatprep.subr.mxu0 0.0
    %96 = vmatpush1.msra.mxu0 %v82
    %97 = vmatprep.subr.mxu0 0.0
    %98 = vmatpush1.msra.mxu0 %v83
    %99 = vmatprep.subr.mxu0 0.0
    %100 = vmatpush1.msra.mxu0 0.0
    %101 = vmatprep.subr.mxu0 0.0
    %102 = vmatpush1.msra.mxu0 0.0
    %103 = vmatprep.subr.mxu0 0.0
    %104 = vmatpush1.msra.mxu0 0.0
    %105 = vmatprep.subr.mxu0 0.0
    %106 = vmatpush1.msra.mxu0 0.0
    %107 = vmatprep.subr.mxu0 0.0
    %108 = vmatpush1.msra.mxu0 0.0
    %109 = vmatprep.subr.mxu0 0.0
    %110 = vmatpush1.msra.mxu0 0.0
    %111 = vmatprep.subr.mxu0 0.0
    %112 = vmatpush1.msra.mxu0 0.0
    %113 = vmatprep.subr.mxu0 0.0
    %114 = vmatpush1.msra.mxu0 0.0
    %115 = vmatprep.subr.mxu0 0.0
    %116 = vmatpush1.msra.mxu0 0.0
    %117 = vmatprep.subr.mxu0 0.0
    %118 = vmatpush1.msra.mxu0 0.0
    %119 = vmatprep.subr.mxu0 0.0
    %120 = vmatpush1.msra.mxu0 0.0
    %121 = vmatprep.subr.mxu0 0.0
    %122 = vmatpush1.msra.mxu0 0.0
    %123 = vmatprep.subr.mxu0 0.0
    %124 = vmatpush1.msra.mxu0 0.0
    %125 = vmatprep.subr.mxu0 0.0
    %126 = vmatpush1.msra.mxu0 0.0
    %127 = vmatprep.subr.mxu0 0.0
    %128 = vmatpush1.msra.mxu0 0.0
    %129 = vmatprep.subr.mxu0 0.0
    %130 = vmatpush1.msra.mxu0 0.0
    %131 = vmatprep.subr.mxu0 0.0
    %132 = vmatpush1.msra.mxu0 0.0
    %133 = vmatprep.subr.mxu0 0.0
    %134 = vmatpush1.msra.mxu0 0.0
    %135 = vmatprep.subr.mxu0 0.0
    %136 = vmatpush1.msra.mxu0 0.0
    %137 = vmatprep.subr.mxu0 0.0
    %138 = vmatpush1.msra.mxu0 0.0
    %139 = vmatprep.subr.mxu0 0.0
    %140 = vmatpush1.msra.mxu0 0.0
    %141 = vmatprep.subr.mxu0 0.0
    %142 = vmatpush1.msra.mxu0 0.0
    %143 = vmatprep.subr.mxu0 0.0
    %144 = vmatpush1.msra.mxu0 0.0
    %145 = vmatprep.subr.mxu0 0.0
    %146 = vmatpush1.msra.mxu0 0.0
    %147 = vmatprep.subr.mxu0 0.0
    %148 = vmatpush1.msra.mxu0 0.0
    %149 = vmatprep.subr.mxu0 0.0
    %150 = vmatpush1.msra.mxu0 0.0
    %151 = vmatprep.subr.mxu0 0.0
    %152 = vmatpush1.msra.mxu0 0.0
    %153 = vmatprep.subr.mxu0 0.0
    %154 = vmatpush1.msra.mxu0 0.0
    %155 = vmatprep.subr.mxu0 0.0
    %156 = vmatpush1.msra.mxu0 0.0
    %157 = vmatprep.subr.mxu0 0.0
    %158 = vmatpush1.msra.mxu0 0.0
    %159 = vmatprep.mubr.f32.mxu0 0.0
    %160 = vmatmul.mubr.f32.gmra.mrb[0].mxu0 %v93
    %v161 = vpop.f32.mrb[0].mxu0
    %v162 = vadd.f32 %v89, %v161
    %v163 = vpop.f32.mrb[0].mxu0
    %164 = vdwg.mxu0
    %v165 = vld [vmem:[%s3] sm:$0x1]
    %v166 = vld [vmem:[%s4] sm:$0x1]
    %vm167 = vcmask 261120
    %v168 = vsel %vm167, %v162, 0.0
    %v169 = vrot.slane %v168, 4
    %v170 = vadd.f32 %v168, %v169
    %v171 = vrot.slane %v170, 2
    %v172 = vadd.f32 %v170, %v171
    %v173 = vrot.slane %v172, 1
    %v174 = vadd.f32 %v172, %v173
    %v175 = vrcp.pop 8.0
    %v176 = vmul.f32 %v174, %v175
    %v177 = vsub.f32 %v162, %v176
    %v178 = vmul.f32 %v177, %v177
    %v179 = vsel %vm167, %v178, 0.0
    %v180 = vrot.slane %v179, 4
    %v181 = vadd.f32 %v179, %v180
    %v182 = vrot.slane %v181, 2
    %v183 = vadd.f32 %v181, %v182
    %v184 = vrot.slane %v183, 1
    %v185 = vadd.f32 %v183, %v184
    %v186 = vmul.f32 %v185, %v175
    %v187 = vadd.f32 %v186, 1e-05
    %v188 = vrsqrt.pop %v187
    %v189 = vmul.f32 %v177, %v188
    %v191 = vlaneseq
    %v192 = vshrl.u32 %v191, 7
    %v193 = vsub.s32 0, %v192
    %v194 = vrot.slane %v165, %v193
    %v196 = vmul.f32 %v189, %v194
    %v198 = vlaneseq
    %v199 = vshrl.u32 %v198, 7
    %v200 = vsub.s32 0, %v199
    %v201 = vrot.slane %v166, %v200
    %v203 = vadd.f32 %v196, %v201
    %v204 = vxor.u32 %v203, 2147483648
    %v205 = vmul.f32 %v204, 1.442695
    %v206 = vpow.pop %v205
    %v207 = vadd.f32 %v206, 1.0
    %v208 = vrcp.pop %v207
    %v209 = vmul.f32 1.0, %v208
    %v210 = vmul.f32 %v203, %v209
    %v211 = vld [vmem:[%s5] sm:$0xff]
    %v212 = vld [vmem:[%s5 + $0x8] sm:$0xff]
    %v213 = vld [vmem:[%s5 + $0x10] sm:$0xff]
    %v214 = vld [vmem:[%s5 + $0x18] sm:$0xff]
    %v215 = vld [vmem:[%s6] sm:$0x1]
    %v217 = vlaneseq
    %v218 = vshrl.u32 %v217, 7
    %v219 = vsub.s32 0, %v218
    %v220 = vrot.slane %v215, %v219
    %v223 = vsel %vm167, %v210, 0
    %225 = vmatprep.subr.mxu0 0.0
    %226 = vmatpush1.msra.mxu0 %v211
    %227 = vmatprep.subr.mxu0 0.0
    %228 = vmatpush1.msra.mxu0 %v212
    %229 = vmatprep.subr.mxu0 0.0
    %230 = vmatpush1.msra.mxu0 %v213
    %231 = vmatprep.subr.mxu0 0.0
    %232 = vmatpush1.msra.mxu0 %v214
    %233 = vmatprep.subr.mxu0 0.0
    %234 = vmatpush1.msra.mxu0 0.0
    %235 = vmatprep.subr.mxu0 0.0
    %236 = vmatpush1.msra.mxu0 0.0
    %237 = vmatprep.subr.mxu0 0.0
    %238 = vmatpush1.msra.mxu0 0.0
    %239 = vmatprep.subr.mxu0 0.0
    %240 = vmatpush1.msra.mxu0 0.0
    %241 = vmatprep.subr.mxu0 0.0
    %242 = vmatpush1.msra.mxu0 0.0
    %243 = vmatprep.subr.mxu0 0.0
    %244 = vmatpush1.msra.mxu0 0.0
    %245 = vmatprep.subr.mxu0 0.0
    %246 = vmatpush1.msra.mxu0 0.0
    %247 = vmatprep.subr.mxu0 0.0
    %248 = vmatpush1.msra.mxu0 0.0
    %249 = vmatprep.subr.mxu0 0.0
    %250 = vmatpush1.msra.mxu0 0.0
    %251 = vmatprep.subr.mxu0 0.0
    %252 = vmatpush1.msra.mxu0 0.0
    %253 = vmatprep.subr.mxu0 0.0
    %254 = vmatpush1.msra.mxu0 0.0
    %255 = vmatprep.subr.mxu0 0.0
    %256 = vmatpush1.msra.mxu0 0.0
    %257 = vmatprep.subr.mxu0 0.0
    %258 = vmatpush1.msra.mxu0 0.0
    %259 = vmatprep.subr.mxu0 0.0
    %260 = vmatpush1.msra.mxu0 0.0
    %261 = vmatprep.subr.mxu0 0.0
    %262 = vmatpush1.msra.mxu0 0.0
    %263 = vmatprep.subr.mxu0 0.0
    %264 = vmatpush1.msra.mxu0 0.0
    %265 = vmatprep.subr.mxu0 0.0
    %266 = vmatpush1.msra.mxu0 0.0
    %267 = vmatprep.subr.mxu0 0.0
    %268 = vmatpush1.msra.mxu0 0.0
    %269 = vmatprep.subr.mxu0 0.0
    %270 = vmatpush1.msra.mxu0 0.0
    %271 = vmatprep.subr.mxu0 0.0
    %272 = vmatpush1.msra.mxu0 0.0
    %273 = vmatprep.subr.mxu0 0.0
    %274 = vmatpush1.msra.mxu0 0.0
    %275 = vmatprep.subr.mxu0 0.0
    %276 = vmatpush1.msra.mxu0 0.0
    %277 = vmatprep.subr.mxu0 0.0
    %278 = vmatpush1.msra.mxu0 0.0
    %279 = vmatprep.subr.mxu0 0.0
    %280 = vmatpush1.msra.mxu0 0.0
    %281 = vmatprep.subr.mxu0 0.0
    %282 = vmatpush1.msra.mxu0 0.0
    %283 = vmatprep.subr.mxu0 0.0
    %284 = vmatpush1.msra.mxu0 0.0
    %285 = vmatprep.subr.mxu0 0.0
    %286 = vmatpush1.msra.mxu0 0.0
    %287 = vmatprep.subr.mxu0 0.0
    %288 = vmatpush1.msra.mxu0 0.0
    %289 = vmatprep.mubr.f32.mxu0 0.0
    %290 = vmatmul.mubr.f32.gmra.mrb[0].mxu0 %v223
    %v291 = vpop.f32.mrb[0].mxu0
    %v292 = vadd.f32 %v220, %v291
    %v293 = vpop.f32.mrb[0].mxu0
    %294 = vdwg.mxu0
    %v295 = vld [vmem:[%s7] sm:$0x1]
    %v296 = vld [vmem:[%s8] sm:$0x1]
    %vm297 = vcmask 523264
    %v298 = vsel %vm297, %v292, 0.0
    %v299 = vrot.slane %v298, 4
    %v300 = vadd.f32 %v298, %v299
    %v301 = vrot.slane %v300, 2
    %v302 = vadd.f32 %v300, %v301
    %v303 = vrot.slane %v302, 1
    %v304 = vadd.f32 %v302, %v303
    %v305 = vmul.f32 %v304, %v175
    %v306 = vsub.f32 %v292, %v305
    %v307 = vmul.f32 %v306, %v306
    %v308 = vsel %vm297, %v307, 0.0
    %v309 = vrot.slane %v308, 4
    %v310 = vadd.f32 %v308, %v309
    %v311 = vrot.slane %v310, 2
    %v312 = vadd.f32 %v310, %v311
    %v313 = vrot.slane %v312, 1
    %v314 = vadd.f32 %v312, %v313
    %v315 = vmul.f32 %v314, %v175
    %v316 = vadd.f32 %v315, 1e-05
    %v317 = vrsqrt.pop %v316
    %v318 = vmul.f32 %v306, %v317
    %v320 = vlaneseq
    %v321 = vshrl.u32 %v320, 7
    %v322 = vsub.s32 0, %v321
    %v323 = vrot.slane %v295, %v322
    %v325 = vmul.f32 %v318, %v323
    %v327 = vlaneseq
    %v328 = vshrl.u32 %v327, 7
    %v329 = vsub.s32 0, %v328
    %v330 = vrot.slane %v296, %v329
    %v332 = vadd.f32 %v325, %v330
    %v333 = vxor.u32 %v332, 2147483648
    %v334 = vmul.f32 %v333, 1.442695
    %v335 = vpow.pop %v334
    %v336 = vadd.f32 %v335, 1.0
    %v337 = vrcp.pop %v336
    %v338 = vmul.f32 1.0, %v337
    %v339 = vmul.f32 %v332, %v338
    %v340 = vld [vmem:[%s9] sm:$0xff]
    %v341 = vld [vmem:[%s9 + $0x8] sm:$0xff]
    %v342 = vld [vmem:[%s9 + $0x10] sm:$0xff]
    %v343 = vld [vmem:[%s9 + $0x18] sm:$0xff]
    %v344 = vld [vmem:[%s9 + $0x20] sm:$0xff]
    %v345 = vld [vmem:[%s9 + $0x28] sm:$0xff]
    %v346 = vld [vmem:[%s9 + $0x30] sm:$0xff]
    %v347 = vld [vmem:[%s9 + $0x38] sm:$0xff]
    %v348 = vld [vmem:[%s10] sm:$0x1]
    %v350 = vlaneseq
    %v351 = vshrl.u32 %v350, 7
    %v352 = vsub.s32 0, %v351
    %v353 = vrot.slane %v348, %v352
    %v356 = vsel %vm297, %v339, 0
    %358 = vmatprep.subr.mxu0 0.0
    %359 = vmatpush1.msra.mxu0 %v340
    %360 = vmatprep.subr.mxu0 0.0
    %361 = vmatpush1.msra.mxu0 %v341
    %362 = vmatprep.subr.mxu0 0.0
    %363 = vmatpush1.msra.mxu0 %v342
    %364 = vmatprep.subr.mxu0 0.0
    %365 = vmatpush1.msra.mxu0 %v343
    %366 = vmatprep.subr.mxu0 0.0
    %367 = vmatpush1.msra.mxu0 %v344
    %368 = vmatprep.subr.mxu0 0.0
    %369 = vmatpush1.msra.mxu0 %v345
    %370 = vmatprep.subr.mxu0 0.0
    %371 = vmatpush1.msra.mxu0 %v346
    %372 = vmatprep.subr.mxu0 0.0
    %373 = vmatpush1.msra.mxu0 %v347
    %374 = vmatprep.subr.mxu0 0.0
    %375 = vmatpush1.msra.mxu0 0.0
    %376 = vmatprep.subr.mxu0 0.0
    %377 = vmatpush1.msra.mxu0 0.0
    %378 = vmatprep.subr.mxu0 0.0
    %379 = vmatpush1.msra.mxu0 0.0
    %380 = vmatprep.subr.mxu0 0.0
    %381 = vmatpush1.msra.mxu0 0.0
    %382 = vmatprep.subr.mxu0 0.0
    %383 = vmatpush1.msra.mxu0 0.0
    %384 = vmatprep.subr.mxu0 0.0
    %385 = vmatpush1.msra.mxu0 0.0
    %386 = vmatprep.subr.mxu0 0.0
    %387 = vmatpush1.msra.mxu0 0.0
    %388 = vmatprep.subr.mxu0 0.0
    %389 = vmatpush1.msra.mxu0 0.0
    %390 = vmatprep.subr.mxu0 0.0
    %391 = vmatpush1.msra.mxu0 0.0
    %392 = vmatprep.subr.mxu0 0.0
    %393 = vmatpush1.msra.mxu0 0.0
    %394 = vmatprep.subr.mxu0 0.0
    %395 = vmatpush1.msra.mxu0 0.0
    %396 = vmatprep.subr.mxu0 0.0
    %397 = vmatpush1.msra.mxu0 0.0
    %398 = vmatprep.subr.mxu0 0.0
    %399 = vmatpush1.msra.mxu0 0.0
    %400 = vmatprep.subr.mxu0 0.0
    %401 = vmatpush1.msra.mxu0 0.0
    %402 = vmatprep.subr.mxu0 0.0
    %403 = vmatpush1.msra.mxu0 0.0
    %404 = vmatprep.subr.mxu0 0.0
    %405 = vmatpush1.msra.mxu0 0.0
    %406 = vmatprep.subr.mxu0 0.0
    %407 = vmatpush1.msra.mxu0 0.0
    %408 = vmatprep.subr.mxu0 0.0
    %409 = vmatpush1.msra.mxu0 0.0
    %410 = vmatprep.subr.mxu0 0.0
    %411 = vmatpush1.msra.mxu0 0.0
    %412 = vmatprep.subr.mxu0 0.0
    %413 = vmatpush1.msra.mxu0 0.0
    %414 = vmatprep.subr.mxu0 0.0
    %415 = vmatpush1.msra.mxu0 0.0
    %416 = vmatprep.subr.mxu0 0.0
    %417 = vmatpush1.msra.mxu0 0.0
    %418 = vmatprep.subr.mxu0 0.0
    %419 = vmatpush1.msra.mxu0 0.0
    %420 = vmatprep.subr.mxu0 0.0
    %421 = vmatpush1.msra.mxu0 0.0
    %422 = vmatprep.mubr.f32.mxu0 0.0
    %423 = vmatmul.mubr.f32.gmra.mrb[0].mxu0 %v356
    %v424 = vpop.f32.mrb[0].mxu0
    %v425 = vadd.f32 %v353, %v424
    %v426 = vpop.f32.mrb[0].mxu0
    %427 = vdwg.mxu0
    %v428 = vld [vmem:[%s11] sm:$0x1]
    %v429 = vld [vmem:[%s12] sm:$0x1]
    %v430 = vsel %vm167, %v425, 0.0
    %v431 = vrot.slane %v430, 4
    %v432 = vadd.f32 %v430, %v431
    %v433 = vrot.slane %v432, 2
    %v434 = vadd.f32 %v432, %v433
    %v435 = vrot.slane %v434, 1
    %v436 = vadd.f32 %v434, %v435
    %v437 = vmul.f32 %v436, %v175
    %v438 = vsub.f32 %v425, %v437
    %v439 = vmul.f32 %v438, %v438
    %v440 = vsel %vm167, %v439, 0.0
    %v441 = vrot.slane %v440, 4
    %v442 = vadd.f32 %v440, %v441
    %v443 = vrot.slane %v442, 2
    %v444 = vadd.f32 %v442, %v443
    %v445 = vrot.slane %v444, 1
    %v446 = vadd.f32 %v444, %v445
    %v447 = vmul.f32 %v446, %v175
    %v448 = vadd.f32 %v447, 1e-05
    %v449 = vrsqrt.pop %v448
    %v450 = vmul.f32 %v438, %v449
    %v452 = vlaneseq
    %v453 = vshrl.u32 %v452, 7
    %v454 = vsub.s32 0, %v453
    %v455 = vrot.slane %v428, %v454
    %v457 = vmul.f32 %v450, %v455
    %v459 = vlaneseq
    %v460 = vshrl.u32 %v459, 7
    %v461 = vsub.s32 0, %v460
    %v462 = vrot.slane %v429, %v461
    %v464 = vadd.f32 %v457, %v462
    %v465 = vxor.u32 %v464, 2147483648
    %v466 = vmul.f32 %v465, 1.442695
    %v467 = vpow.pop %v466
    %v468 = vadd.f32 %v467, 1.0
    %v469 = vrcp.pop %v468
    %v470 = vmul.f32 1.0, %v469
    %v471 = vmul.f32 %v464, %v470
    %v472 = vld [vmem:[%s13] sm:$0xff]
    %v473 = vld [vmem:[%s13 + $0x8] sm:$0xff]
    %v474 = vld [vmem:[%s13 + $0x10] sm:$0xff]
    %v475 = vld [vmem:[%s13 + $0x18] sm:$0xff]
    %v476 = vld [vmem:[%s14] sm:$0x1]
    %v478 = vlaneseq
    %v479 = vshrl.u32 %v478, 7
    %v480 = vsub.s32 0, %v479
    %v481 = vrot.slane %v476, %v480
    %v484 = vsel %vm167, %v471, 0
    %486 = vmatprep.subr.mxu0 0.0
    %487 = vmatpush1.msra.mxu0 %v472
    %488 = vmatprep.subr.mxu0 0.0
    %489 = vmatpush1.msra.mxu0 %v473
    %490 = vmatprep.subr.mxu0 0.0
    %491 = vmatpush1.msra.mxu0 %v474
    %492 = vmatprep.subr.mxu0 0.0
    %493 = vmatpush1.msra.mxu0 %v475
    %494 = vmatprep.subr.mxu0 0.0
    %495 = vmatpush1.msra.mxu0 0.0
    %496 = vmatprep.subr.mxu0 0.0
    %497 = vmatpush1.msra.mxu0 0.0
    %498 = vmatprep.subr.mxu0 0.0
    %499 = vmatpush1.msra.mxu0 0.0
    %500 = vmatprep.subr.mxu0 0.0
    %501 = vmatpush1.msra.mxu0 0.0
    %502 = vmatprep.subr.mxu0 0.0
    %503 = vmatpush1.msra.mxu0 0.0
    %504 = vmatprep.subr.mxu0 0.0
    %505 = vmatpush1.msra.mxu0 0.0
    %506 = vmatprep.subr.mxu0 0.0
    %507 = vmatpush1.msra.mxu0 0.0
    %508 = vmatprep.subr.mxu0 0.0
    %509 = vmatpush1.msra.mxu0 0.0
    %510 = vmatprep.subr.mxu0 0.0
    %511 = vmatpush1.msra.mxu0 0.0
    %512 = vmatprep.subr.mxu0 0.0
    %513 = vmatpush1.msra.mxu0 0.0
    %514 = vmatprep.subr.mxu0 0.0
    %515 = vmatpush1.msra.mxu0 0.0
    %516 = vmatprep.subr.mxu0 0.0
    %517 = vmatpush1.msra.mxu0 0.0
    %518 = vmatprep.subr.mxu0 0.0
    %519 = vmatpush1.msra.mxu0 0.0
    %520 = vmatprep.subr.mxu0 0.0
    %521 = vmatpush1.msra.mxu0 0.0
    %522 = vmatprep.subr.mxu0 0.0
    %523 = vmatpush1.msra.mxu0 0.0
    %524 = vmatprep.subr.mxu0 0.0
    %525 = vmatpush1.msra.mxu0 0.0
    %526 = vmatprep.subr.mxu0 0.0
    %527 = vmatpush1.msra.mxu0 0.0
    %528 = vmatprep.subr.mxu0 0.0
    %529 = vmatpush1.msra.mxu0 0.0
    %530 = vmatprep.subr.mxu0 0.0
    %531 = vmatpush1.msra.mxu0 0.0
    %532 = vmatprep.subr.mxu0 0.0
    %533 = vmatpush1.msra.mxu0 0.0
    %534 = vmatprep.subr.mxu0 0.0
    %535 = vmatpush1.msra.mxu0 0.0
    %536 = vmatprep.subr.mxu0 0.0
    %537 = vmatpush1.msra.mxu0 0.0
    %538 = vmatprep.subr.mxu0 0.0
    %539 = vmatpush1.msra.mxu0 0.0
    %540 = vmatprep.subr.mxu0 0.0
    %541 = vmatpush1.msra.mxu0 0.0
    %542 = vmatprep.subr.mxu0 0.0
    %543 = vmatpush1.msra.mxu0 0.0
    %544 = vmatprep.subr.mxu0 0.0
    %545 = vmatpush1.msra.mxu0 0.0
    %546 = vmatprep.subr.mxu0 0.0
    %547 = vmatpush1.msra.mxu0 0.0
    %548 = vmatprep.subr.mxu0 0.0
    %549 = vmatpush1.msra.mxu0 0.0
    %550 = vmatprep.mubr.f32.mxu0 0.0
    %551 = vmatmul.mubr.f32.gmra.mrb[0].mxu0 %v484
    %v552 = vpop.f32.mrb[0].mxu0
    %v553 = vadd.f32 %v481, %v552
    %v554 = vpop.f32.mrb[0].mxu0
    %555 = vdwg.mxu0
    %v556 = vld [vmem:[%s15] sm:$0x1]
    %v557 = vld [vmem:[%s16] sm:$0x1]
    %v558 = vsel %vm91, %v553, 0.0
    %v559 = vrot.slane %v558, 4
    %v560 = vadd.f32 %v558, %v559
    %v561 = vrot.slane %v560, 2
    %v562 = vadd.f32 %v560, %v561
    %v563 = vrot.slane %v562, 1
    %v564 = vadd.f32 %v562, %v563
    %v565 = vmul.f32 %v564, %v175
    %v566 = vsub.f32 %v553, %v565
    %v567 = vmul.f32 %v566, %v566
    %v568 = vsel %vm91, %v567, 0.0
    %v569 = vrot.slane %v568, 4
    %v570 = vadd.f32 %v568, %v569
    %v571 = vrot.slane %v570, 2
    %v572 = vadd.f32 %v570, %v571
    %v573 = vrot.slane %v572, 1
    %v574 = vadd.f32 %v572, %v573
    %v575 = vmul.f32 %v574, %v175
    %v576 = vadd.f32 %v575, 1e-05
    %v577 = vrsqrt.pop %v576
    %v578 = vmul.f32 %v566, %v577
    %v580 = vlaneseq
    %v581 = vshrl.u32 %v580, 7
    %v582 = vsub.s32 0, %v581
    %v583 = vrot.slane %v556, %v582
    %v585 = vmul.f32 %v578, %v583
    %v587 = vlaneseq
    %v588 = vshrl.u32 %v587, 7
    %v589 = vsub.s32 0, %v588
    %v590 = vrot.slane %v557, %v589
    %v592 = vadd.f32 %v585, %v590
    %v593 = vxor.u32 %v592, 2147483648
    %v594 = vmul.f32 %v593, 1.442695
    %v595 = vpow.pop %v594
    %v596 = vadd.f32 %v595, 1.0
    %v597 = vrcp.pop %v596
    %v598 = vmul.f32 1.0, %v597
    %v599 = vmul.f32 %v592, %v598
    %v600 = vld [vmem:[%s17] sm:$0xff]
    %v601 = vld [vmem:[%s17 + $0x8] sm:$0xff]
    %v602 = vld [vmem:[%s17 + $0x10] sm:$0xff]
    %v603 = vld [vmem:[%s17 + $0x18] sm:$0xff]
    %v604 = vld [vmem:[%s18] sm:$0x3]
    %v606 = vlaneseq
    %v607 = vshrl.u32 %v606, 7
    %v608 = vsub.s32 0, %v607
    %v609 = vrot.slane %v604, %v608
    %v610 = vlaneseq
    %v611 = vshrl.u32 %v610, 7
    %v612 = vsub.s32 1, %v611
    %v613 = vrot.slane %v604, %v612
    %v617 = vsel %vm91, %v599, 0
    %619 = vmatprep.subr.mxu0 %v601
    %620 = vmatpush1.msra.mxu0 %v600
    %621 = vmatprep.subr.mxu0 %v603
    %622 = vmatpush1.msra.mxu0 %v602
    %623 = vmatprep.subr.mxu0 0.0
    %624 = vmatpush1.msra.mxu0 0.0
    %625 = vmatprep.subr.mxu0 0.0
    %626 = vmatpush1.msra.mxu0 0.0
    %627 = vmatprep.subr.mxu0 0.0
    %628 = vmatpush1.msra.mxu0 0.0
    %629 = vmatprep.subr.mxu0 0.0
    %630 = vmatpush1.msra.mxu0 0.0
    %631 = vmatprep.subr.mxu0 0.0
    %632 = vmatpush1.msra.mxu0 0.0
    %633 = vmatprep.subr.mxu0 0.0
    %634 = vmatpush1.msra.mxu0 0.0
    %635 = vmatprep.subr.mxu0 0.0
    %636 = vmatpush1.msra.mxu0 0.0
    %637 = vmatprep.subr.mxu0 0.0
    %638 = vmatpush1.msra.mxu0 0.0
    %639 = vmatprep.subr.mxu0 0.0
    %640 = vmatpush1.msra.mxu0 0.0
    %641 = vmatprep.subr.mxu0 0.0
    %642 = vmatpush1.msra.mxu0 0.0
    %643 = vmatprep.subr.mxu0 0.0
    %644 = vmatpush1.msra.mxu0 0.0
    %645 = vmatprep.subr.mxu0 0.0
    %646 = vmatpush1.msra.mxu0 0.0
    %647 = vmatprep.subr.mxu0 0.0
    %648 = vmatpush1.msra.mxu0 0.0
    %649 = vmatprep.subr.mxu0 0.0
    %650 = vmatpush1.msra.mxu0 0.0
    %651 = vmatprep.subr.mxu0 0.0
    %652 = vmatpush1.msra.mxu0 0.0
    %653 = vmatprep.subr.mxu0 0.0
    %654 = vmatpush1.msra.mxu0 0.0
    %655 = vmatprep.subr.mxu0 0.0
    %656 = vmatpush1.msra.mxu0 0.0
    %657 = vmatprep.subr.mxu0 0.0
    %658 = vmatpush1.msra.mxu0 0.0
    %659 = vmatprep.subr.mxu0 0.0
    %660 = vmatpush1.msra.mxu0 0.0
    %661 = vmatprep.subr.mxu0 0.0
    %662 = vmatpush1.msra.mxu0 0.0
    %663 = vmatprep.subr.mxu0 0.0
    %664 = vmatpush1.msra.mxu0 0.0
    %665 = vmatprep.subr.mxu0 0.0
    %666 = vmatpush1.msra.mxu0 0.0
    %667 = vmatprep.subr.mxu0 0.0
    %668 = vmatpush1.msra.mxu0 0.0
    %669 = vmatprep.subr.mxu0 0.0
    %670 = vmatpush1.msra.mxu0 0.0
    %671 = vmatprep.subr.mxu0 0.0
    %672 = vmatpush1.msra.mxu0 0.0
    %673 = vmatprep.subr.mxu0 0.0
    %674 = vmatpush1.msra.mxu0 0.0
    %675 = vmatprep.subr.mxu0 0.0
    %676 = vmatpush1.msra.mxu0 0.0
    %677 = vmatprep.subr.mxu0 0.0
    %678 = vmatpush1.msra.mxu0 0.0
    %679 = vmatprep.subr.mxu0 0.0
    %680 = vmatpush1.msra.mxu0 0.0
    %681 = vmatprep.subr.mxu0 0.0
    %682 = vmatpush1.msra.mxu0 0.0
    %683 = vmatprep.mubr.f32.mxu0 0.0
    %684 = vmatmul.mubr.f32.gmra.mrb[0].mxu0 %v617
    %v685 = vpop.f32.mrb[0].mxu0
    %v686 = vadd.f32 %v609, %v685
    %v687 = vpop.f32.mrb[0].mxu0
    %v688 = vadd.f32 %v613, %v687
    %689 = vdwg.mxu0
    %690 = vst [vmem:[#allocation2] sm:$0xff] %v686
    %691 = vst [vmem:[#allocation2 + $0x8] sm:$0xff] %v688
    %v692 = vld [vmem:[%s19] sm:$0xff]
    %v693 = vld [vmem:[%s19 + $0x8] sm:$0xff]
    %v694 = vld [vmem:[%s19 + $0x10] sm:$0xff]
    %v695 = vld [vmem:[%s19 + $0x18] sm:$0xff]
    %v696 = vld [vmem:[%s20] sm:$0xff]
    %v697 = vld [vmem:[%s20 + $0x8] sm:$0xff]
    %v698 = vld [vmem:[%s20 + $0x10] sm:$0xff]
    %v699 = vld [vmem:[%s20 + $0x18] sm:$0xff]
    %v700 = vlaneseq
    %v701 = vand.u32 %v700, 127
    %vm702 = vcmp.ge.s32.totalorder %v701, 64
    %vm703 = vcmp.lt.s32.totalorder %v701, 96
    %vm704 = vmand %vm702, %vm703
    %v705 = vld [vmem:[#allocation2] ss:$0 sm:$0xff]
    %v707 = vsel %vm167, 0.0, 0
    %709 = vmatprep.subr.mxu0 0.0
    %710 = vmatpush1.msra.mxu0 %v692
    %711 = vmatprep.subr.mxu0 0.0
    %712 = vmatpush1.msra.mxu0 %v693
    %713 = vmatprep.subr.mxu0 0.0
    %714 = vmatpush1.msra.mxu0 %v694
    %715 = vmatprep.subr.mxu0 0.0
    %716 = vmatpush1.msra.mxu0 %v695
    %717 = vmatprep.subr.mxu0 0.0
    %718 = vmatpush1.msra.mxu0 0.0
    %719 = vmatprep.subr.mxu0 0.0
    %720 = vmatpush1.msra.mxu0 0.0
    %721 = vmatprep.subr.mxu0 0.0
    %722 = vmatpush1.msra.mxu0 0.0
    %723 = vmatprep.subr.mxu0 0.0
    %724 = vmatpush1.msra.mxu0 0.0
    %725 = vmatprep.subr.mxu0 0.0
    %726 = vmatpush1.msra.mxu0 0.0
    %727 = vmatprep.subr.mxu0 0.0
    %728 = vmatpush1.msra.mxu0 0.0
    %729 = vmatprep.subr.mxu0 0.0
    %730 = vmatpush1.msra.mxu0 0.0
    %731 = vmatprep.subr.mxu0 0.0
    %732 = vmatpush1.msra.mxu0 0.0
    %733 = vmatprep.subr.mxu0 0.0
    %734 = vmatpush1.msra.mxu0 0.0
    %735 = vmatprep.subr.mxu0 0.0
    %736 = vmatpush1.msra.mxu0 0.0
    %737 = vmatprep.subr.mxu0 0.0
    %738 = vmatpush1.msra.mxu0 0.0
    %739 = vmatprep.subr.mxu0 0.0
    %740 = vmatpush1.msra.mxu0 0.0
    %741 = vmatprep.subr.mxu0 0.0
    %742 = vmatpush1.msra.mxu0 0.0
    %743 = vmatprep.subr.mxu0 0.0
    %744 = vmatpush1.msra.mxu0 0.0
    %745 = vmatprep.subr.mxu0 0.0
    %746 = vmatpush1.msra.mxu0 0.0
    %747 = vmatprep.subr.mxu0 0.0
    %748 = vmatpush1.msra.mxu0 0.0
    %749 = vmatprep.subr.mxu0 0.0
    %750 = vmatpush1.msra.mxu0 0.0
    %751 = vmatprep.subr.mxu0 0.0
    %752 = vmatpush1.msra.mxu0 0.0
    %753 = vmatprep.subr.mxu0 0.0
    %754 = vmatpush1.msra.mxu0 0.0
    %755 = vmatprep.subr.mxu0 0.0
    %756 = vmatpush1.msra.mxu0 0.0
    %757 = vmatprep.subr.mxu0 0.0
    %758 = vmatpush1.msra.mxu0 0.0
    %759 = vmatprep.subr.mxu0 0.0
    %760 = vmatpush1.msra.mxu0 0.0
    %761 = vmatprep.subr.mxu0 0.0
    %762 = vmatpush1.msra.mxu0 0.0
    %763 = vmatprep.subr.mxu0 0.0
    %764 = vmatpush1.msra.mxu0 0.0
    %765 = vmatprep.subr.mxu0 0.0
    %766 = vmatpush1.msra.mxu0 0.0
    %767 = vmatprep.subr.mxu0 0.0
    %768 = vmatpush1.msra.mxu0 0.0
    %769 = vmatprep.subr.mxu0 0.0
    %770 = vmatpush1.msra.mxu0 0.0
    %771 = vmatprep.subr.mxu0 0.0
    %772 = vmatpush1.msra.mxu0 0.0
    %773 = vmatprep.mubr.f32.mxu0 0.0
    %774 = vmatmul.mubr.f32.gmra.mrb[0].mxu0 %v707
    %v775 = vpop.f32.mrb[0].mxu0
    %v776 = vadd.f32 0.0, %v775
    %v777 = vpop.f32.mrb[0].mxu0
    %778 = vdwg.mxu0
    %v779 = vadd.f32 %v705, %v776
    %v780 = vld [vmem:[#allocation2 + $0xf] ss:$0 sm:$0xff]
    %781 = vmatprep.subr.mxu0 0.0
    %782 = vmatpush1.msra.mxu0 %v696
    %783 = vmatprep.subr.mxu0 0.0
    %784 = vmatpush1.msra.mxu0 %v697
    %785 = vmatprep.subr.mxu0 0.0
    %786 = vmatpush1.msra.mxu0 %v698
    %787 = vmatprep.subr.mxu0 0.0
    %788 = vmatpush1.msra.mxu0 %v699
    %789 = vmatprep.subr.mxu0 0.0
    %790 = vmatpush1.msra.mxu0 0.0
    %791 = vmatprep.subr.mxu0 0.0
    %792 = vmatpush1.msra.mxu0 0.0
    %793 = vmatprep.subr.mxu0 0.0
    %794 = vmatpush1.msra.mxu0 0.0
    %795 = vmatprep.subr.mxu0 0.0
    %796 = vmatpush1.msra.mxu0 0.0
    %797 = vmatprep.subr.mxu0 0.0
    %798 = vmatpush1.msra.mxu0 0.0
    %799 = vmatprep.subr.mxu0 0.0
    %800 = vmatpush1.msra.mxu0 0.0
    %801 = vmatprep.subr.mxu0 0.0
    %802 = vmatpush1.msra.mxu0 0.0
    %803 = vmatprep.subr.mxu0 0.0
    %804 = vmatpush1.msra.mxu0 0.0
    %805 = vmatprep.subr.mxu0 0.0
    %806 = vmatpush1.msra.mxu0 0.0
    %807 = vmatprep.subr.mxu0 0.0
    %808 = vmatpush1.msra.mxu0 0.0
    %809 = vmatprep.subr.mxu0 0.0
    %810 = vmatpush1.msra.mxu0 0.0
    %811 = vmatprep.subr.mxu0 0.0
    %812 = vmatpush1.msra.mxu0 0.0
    %813 = vmatprep.subr.mxu0 0.0
    %814 = vmatpush1.msra.mxu0 0.0
    %815 = vmatprep.subr.mxu0 0.0
    %816 = vmatpush1.msra.mxu0 0.0
    %817 = vmatprep.subr.mxu0 0.0
    %818 = vmatpush1.msra.mxu0 0.0
    %819 = vmatprep.subr.mxu0 0.0
    %820 = vmatpush1.msra.mxu0 0.0
    %821 = vmatprep.subr.mxu0 0.0
    %822 = vmatpush1.msra.mxu0 0.0
    %823 = vmatprep.subr.mxu0 0.0
    %824 = vmatpush1.msra.mxu0 0.0
    %825 = vmatprep.subr.mxu0 0.0
    %826 = vmatpush1.msra.mxu0 0.0
    %827 = vmatprep.subr.mxu0 0.0
    %828 = vmatpush1.msra.mxu0 0.0
    %829 = vmatprep.subr.mxu0 0.0
    %830 = vmatpush1.msra.mxu0 0.0
    %831 = vmatprep.subr.mxu0 0.0
    %832 = vmatpush1.msra.mxu0 0.0
    %833 = vmatprep.subr.mxu0 0.0
    %834 = vmatpush1.msra.mxu0 0.0
    %835 = vmatprep.subr.mxu0 0.0
    %836 = vmatpush1.msra.mxu0 0.0
    %837 = vmatprep.subr.mxu0 0.0
    %838 = vmatpush1.msra.mxu0 0.0
    %839 = vmatprep.subr.mxu0 0.0
    %840 = vmatpush1.msra.mxu0 0.0
    %841 = vmatprep.subr.mxu0 0.0
    %842 = vmatpush1.msra.mxu0 0.0
    %843 = vmatprep.subr.mxu0 0.0
    %844 = vmatpush1.msra.mxu0 0.0
    %845 = vmatprep.mubr.f32.mxu0 0.0
    %846 = vmatmul.mubr.f32.gmra.mrb[0].mxu0 %v707
    %v847 = vpop.f32.mrb[0].mxu0
    %v848 = vadd.f32 0.0, %v847
    %v849 = vpop.f32.mrb[0].mxu0
    %850 = vdwg.mxu0
    %v851 = vadd.f32 %v780, %v848
    %v852 = vtanh.pop %v779
    %v853 = vxor.u32 %v779, 2147483648
    %v854 = vmul.f32 %v853, 1.442695
    %v855 = vpow.pop %v854
    %v856 = vadd.f32 %v855, 1.0
    %v857 = vrcp.pop %v856
    %v858 = vmul.f32 1.0, %v857
    %v859 = vsel %vm704, %v852, %v858
    %v860 = vmul.f32 %v859, 0.0
    %862 = vrot.lane.b32.xlu0 %v859, 64
    %v863 = vpop.permute.xlu0 %862
    %v865 = vmul.f32 %v859, %v863
    %867 = vrot.lane.b32.xlu0 %v865, 32
    %v868 = vpop.permute.xlu0 %867
    %v870 = vadd.f32 %v860, %v868
    %v871 = vtanh.pop %v870
    %873 = vrot.lane.b32.xlu0 %v871, 64
    %v874 = vpop.permute.xlu0 %873
    %v876 = vmul.f32 %v859, %v874
    %v877 = vtanh.pop %v851
    %v878 = vxor.u32 %v851, 2147483648
    %v879 = vmul.f32 %v878, 1.442695
    %v880 = vpow.pop %v879
    %v881 = vadd.f32 %v880, 1.0
    %v882 = vrcp.pop %v881
    %v883 = vmul.f32 1.0, %v882
    %v884 = vsel %vm704, %v877, %v883
    %v885 = vmul.f32 %v884, 0.0
    %887 = vrot.lane.b32.xlu0 %v884, 64
    %v888 = vpop.permute.xlu0 %887
    %v890 = vmul.f32 %v884, %v888
    %892 = vrot.lane.b32.xlu0 %v890, 32
    %v893 = vpop.permute.xlu0 %892
    %v895 = vadd.f32 %v885, %v893
    %v896 = vtanh.pop %v895
    %898 = vrot.lane.b32.xlu0 %v896, 64
    %v899 = vpop.permute.xlu0 %898
    %v901 = vmul.f32 %v884, %v899
    %903 = vrot.lane.b32.xlu0 %v876, 32
    %v904 = vpop.permute.xlu0 %903
    %vm906 = vcmask 253952
    %907 = vst.msk [vmem:[#allocation3] sm:$0x1] %vm906, %v904
    %909 = vrot.lane.b32.xlu0 %v901, 32
    %v910 = vpop.permute.xlu0 %909
    %912 = vst.msk [vmem:[#allocation4 + $0x7] sm:$0x1] %vm906, %v910
    %v913 = vld [vmem:[#allocation2 + $0x1] ss:$0 sm:$0xff]
    %v914 = vsel %vm167, %v904, 0
    %916 = vmatprep.subr.mxu0 0.0
    %917 = vmatpush1.msra.mxu0 %v692
    %918 = vmatprep.subr.mxu0 0.0
    %919 = vmatpush1.msra.mxu0 %v693
    %920 = vmatprep.subr.mxu0 0.0
    %921 = vmatpush1.msra.mxu0 %v694
    %922 = vmatprep.subr.mxu0 0.0
    %923 = vmatpush1.msra.mxu0 %v695
    %924 = vmatprep.subr.mxu0 0.0
    %925 = vmatpush1.msra.mxu0 0.0
    %926 = vmatprep.subr.mxu0 0.0
    %927 = vmatpush1.msra.mxu0 0.0
    %928 = vmatprep.subr.mxu0 0.0
    %929 = vmatpush1.msra.mxu0 0.0
    %930 = vmatprep.subr.mxu0 0.0
    %931 = vmatpush1.msra.mxu0 0.0
    %932 = vmatprep.subr.mxu0 0.0
    %933 = vmatpush1.msra.mxu0 0.0
    %934 = vmatprep.subr.mxu0 0.0
    %935 = vmatpush1.msra.mxu0 0.0
    %936 = vmatprep.subr.mxu0 0.0
    %937 = vmatpush1.msra.mxu0 0.0
    %938 = vmatprep.subr.mxu0 0.0
    %939 = vmatpush1.msra.mxu0 0.0
    %940 = vmatprep.subr.mxu0 0.0
    %941 = vmatpush1.msra.mxu0 0.0
    %942 = vmatprep.subr.mxu0 0.0
    %943 = vmatpush1.msra.mxu0 0.0
    %944 = vmatprep.subr.mxu0 0.0
    %945 = vmatpush1.msra.mxu0 0.0
    %946 = vmatprep.subr.mxu0 0.0
    %947 = vmatpush1.msra.mxu0 0.0
    %948 = vmatprep.subr.mxu0 0.0
    %949 = vmatpush1.msra.mxu0 0.0
    %950 = vmatprep.subr.mxu0 0.0
    %951 = vmatpush1.msra.mxu0 0.0
    %952 = vmatprep.subr.mxu0 0.0
    %953 = vmatpush1.msra.mxu0 0.0
    %954 = vmatprep.subr.mxu0 0.0
    %955 = vmatpush1.msra.mxu0 0.0
    %956 = vmatprep.subr.mxu0 0.0
    %957 = vmatpush1.msra.mxu0 0.0
    %958 = vmatprep.subr.mxu0 0.0
    %959 = vmatpush1.msra.mxu0 0.0
    %960 = vmatprep.subr.mxu0 0.0
    %961 = vmatpush1.msra.mxu0 0.0
    %962 = vmatprep.subr.mxu0 0.0
    %963 = vmatpush1.msra.mxu0 0.0
    %964 = vmatprep.subr.mxu0 0.0
    %965 = vmatpush1.msra.mxu0 0.0
    %966 = vmatprep.subr.mxu0 0.0
    %967 = vmatpush1.msra.mxu0 0.0
    %968 = vmatprep.subr.mxu0 0.0
    %969 = vmatpush1.msra.mxu0 0.0
    %970 = vmatprep.subr.mxu0 0.0
    %971 = vmatpush1.msra.mxu0 0.0
    %972 = vmatprep.subr.mxu0 0.0
    %973 = vmatpush1.msra.mxu0 0.0
    %974 = vmatprep.subr.mxu0 0.0
    %975 = vmatpush1.msra.mxu0 0.0
    %976 = vmatprep.subr.mxu0 0.0
    %977 = vmatpush1.msra.mxu0 0.0
    %978 = vmatprep.subr.mxu0 0.0
    %979 = vmatpush1.msra.mxu0 0.0
    %980 = vmatprep.mubr.f32.mxu0 0.0
    %981 = vmatmul.mubr.f32.gmra.mrb[0].mxu0 %v914
    %v982 = vpop.f32.mrb[0].mxu0
    %v983 = vadd.f32 0.0, %v982
    %v984 = vpop.f32.mrb[0].mxu0
    %985 = vdwg.mxu0
    %v986 = vadd.f32 %v913, %v983
    %v987 = vld [vmem:[#allocation2 + $0xe] ss:$0 sm:$0xff]
    %v988 = vsel %vm167, %v910, 0
    %990 = vmatprep.subr.mxu0 0.0
    %991 = vmatpush1.msra.mxu0 %v696
    %992 = vmatprep.subr.mxu0 0.0
    %993 = vmatpush1.msra.mxu0 %v697
    %994 = vmatprep.subr.mxu0 0.0
    %995 = vmatpush1.msra.mxu0 %v698
    %996 = vmatprep.subr.mxu0 0.0
    %997 = vmatpush1.msra.mxu0 %v699
    %998 = vmatprep.subr.mxu0 0.0
    %999 = vmatpush1.msra.mxu0 0.0
    %1000 = vmatprep.subr.mxu0 0.0
    %1001 = vmatpush1.msra.mxu0 0.0
    %1002 = vmatprep.subr.mxu0 0.0
    %1003 = vmatpush1.msra.mxu0 0.0
    %1004 = vmatprep.subr.mxu0 0.0
    %1005 = vmatpush1.msra.mxu0 0.0
    %1006 = vmatprep.subr.mxu0 0.0
    %1007 = vmatpush1.msra.mxu0 0.0
    %1008 = vmatprep.subr.mxu0 0.0
    %1009 = vmatpush1.msra.mxu0 0.0
    %1010 = vmatprep.subr.mxu0 0.0
    %1011 = vmatpush1.msra.mxu0 0.0
    %1012 = vmatprep.subr.mxu0 0.0
    %1013 = vmatpush1.msra.mxu0 0.0
    %1014 = vmatprep.subr.mxu0 0.0
    %1015 = vmatpush1.msra.mxu0 0.0
    %1016 = vmatprep.subr.mxu0 0.0
    %1017 = vmatpush1.msra.mxu0 0.0
    %1018 = vmatprep.subr.mxu0 0.0
    %1019 = vmatpush1.msra.mxu0 0.0
    %1020 = vmatprep.subr.mxu0 0.0
    %1021 = vmatpush1.msra.mxu0 0.0
    %1022 = vmatprep.subr.mxu0 0.0
    %1023 = vmatpush1.msra.mxu0 0.0
    %1024 = vmatprep.subr.mxu0 0.0
    %1025 = vmatpush1.msra.mxu0 0.0
    %1026 = vmatprep.subr.mxu0 0.0
    %1027 = vmatpush1.msra.mxu0 0.0
    %1028 = vmatprep.subr.mxu0 0.0
    %1029 = vmatpush1.msra.mxu0 0.0
    %1030 = vmatprep.subr.mxu0 0.0
    %1031 = vmatpush1.msra.mxu0 0.0
    %1032 = vmatprep.subr.mxu0 0.0
    %1033 = vmatpush1.msra.mxu0 0.0
    %1034 = vmatprep.subr.mxu0 0.0
    %1035 = vmatpush1.msra.mxu0 0.0
    %1036 = vmatprep.subr.mxu0 0.0
    %1037 = vmatpush1.msra.mxu0 0.0
    %1038 = vmatprep.subr.mxu0 0.0
    %1039 = vmatpush1.msra.mxu0 0.0
    %1040 = vmatprep.subr.mxu0 0.0
    %1041 = vmatpush1.msra.mxu0 0.0
    %1042 = vmatprep.subr.mxu0 0.0
    %1043 = vmatpush1.msra.mxu0 0.0
    %1044 = vmatprep.subr.mxu0 0.0
    %1045 = vmatpush1.msra.mxu0 0.0
    %1046 = vmatprep.subr.mxu0 0.0
    %1047 = vmatpush1.msra.mxu0 0.0
    %1048 = vmatprep.subr.mxu0 0.0
    %1049 = vmatpush1.msra.mxu0 0.0
    %1050 = vmatprep.subr.mxu0 0.0
    %1051 = vmatpush1.msra.mxu0 0.0
    %1052 = vmatprep.subr.mxu0 0.0
    %1053 = vmatpush1.msra.mxu0 0.0
    %1054 = vmatprep.mubr.f32.mxu0 0.0
    %1055 = vmatmul.mubr.f32.gmra.mrb[0].mxu0 %v988
    %v1056 = vpop.f32.mrb[0].mxu0
    %v1057 = vadd.f32 0.0, %v1056
    %v1058 = vpop.f32.mrb[0].mxu0
    %1059 = vdwg.mxu0
    %v1060 = vadd.f32 %v987, %v1057
    %v1061 = vtanh.pop %v986
    %v1062 = vxor.u32 %v986, 2147483648
    %v1063 = vmul.f32 %v1062, 1.442695
    %v1064 = vpow.pop %v1063
    %v1065 = vadd.f32 %v1064, 1.0
    %v1066 = vrcp.pop %v1065
    %v1067 = vmul.f32 1.0, %v1066
    %v1068 = vsel %vm704, %v1061, %v1067
    %v1069 = vmul.f32 %v1068, %v870
    %1071 = vrot.lane.b32.xlu0 %v1068, 64
    %v1072 = vpop.permute.xlu0 %1071
    %v1074 = vmul.f32 %v1068, %v1072
    %1076 = vrot.lane.b32.xlu0 %v1074, 32
    %v1077 = vpop.permute.xlu0 %1076
    %v1079 = vadd.f32 %v1069, %v1077
    %v1080 = vtanh.pop %v1079
    %1082 = vrot.lane.b32.xlu0 %v1080, 64
    %v1083 = vpop.permute.xlu0 %1082
    %v1085 = vmul.f32 %v1068, %v1083
    %v1086 = vtanh.pop %v1060
    %v1087 = vxor.u32 %v1060, 2147483648
    %v1088 = vmul.f32 %v1087, 1.442695
    %v1089 = vpow.pop %v1088
    %v1090 = vadd.f32 %v1089, 1.0
    %v1091 = vrcp.pop %v1090
    %v1092 = vmul.f32 1.0, %v1091
    %v1093 = vsel %vm704, %v1086, %v1092
    %v1094 = vmul.f32 %v1093, %v895
    %1096 = vrot.lane.b32.xlu0 %v1093, 64
    %v1097 = vpop.permute.xlu0 %1096
    %v1099 = vmul.f32 %v1093, %v1097
    %1101 = vrot.lane.b32.xlu0 %v1099, 32
    %v1102 = vpop.permute.xlu0 %1101
    %v1104 = vadd.f32 %v1094, %v1102
    %v1105 = vtanh.pop %v1104
    %1107 = vrot.lane.b32.xlu0 %v1105, 64
    %v1108 = vpop.permute.xlu0 %1107
    %v1110 = vmul.f32 %v1093, %v1108
    %1112 = vrot.lane.b32.xlu0 %v1085, 32
    %v1113 = vpop.permute.xlu0 %1112
    %1115 = vst.msk [vmem:[#allocation3 + $0x1] sm:$0x1] %vm906, %v1113
    %1117 = vrot.lane.b32.xlu0 %v1110, 32
    %v1118 = vpop.permute.xlu0 %1117
    %1120 = vst.msk [vmem:[#allocation4 + $0x6] sm:$0x1] %vm906, %v1118
    %v1121 = vld [vmem:[#allocation2 + $0x2] ss:$0 sm:$0xff]
    %v1122 = vsel %vm167, %v1113, 0
    %1124 = vmatprep.subr.mxu0 0.0
    %1125 = vmatpush1.msra.mxu0 %v692
    %1126 = vmatprep.subr.mxu0 0.0
    %1127 = vmatpush1.msra.mxu0 %v693
    %1128 = vmatprep.subr.mxu0 0.0
    %1129 = vmatpush1.msra.mxu0 %v694
    %1130 = vmatprep.subr.mxu0 0.0
    %1131 = vmatpush1.msra.mxu0 %v695
    %1132 = vmatprep.subr.mxu0 0.0
    %1133 = vmatpush1.msra.mxu0 0.0
    %1134 = vmatprep.subr.mxu0 0.0
    %1135 = vmatpush1.msra.mxu0 0.0
    %1136 = vmatprep.subr.mxu0 0.0
    %1137 = vmatpush1.msra.mxu0 0.0
    %1138 = vmatprep.subr.mxu0 0.0
    %1139 = vmatpush1.msra.mxu0 0.0
    %1140 = vmatprep.subr.mxu0 0.0
    %1141 = vmatpush1.msra.mxu0 0.0
    %1142 = vmatprep.subr.mxu0 0.0
    %1143 = vmatpush1.msra.mxu0 0.0
    %1144 = vmatprep.subr.mxu0 0.0
    %1145 = vmatpush1.msra.mxu0 0.0
    %1146 = vmatprep.subr.mxu0 0.0
    %1147 = vmatpush1.msra.mxu0 0.0
    %1148 = vmatprep.subr.mxu0 0.0
    %1149 = vmatpush1.msra.mxu0 0.0
    %1150 = vmatprep.subr.mxu0 0.0
    %1151 = vmatpush1.msra.mxu0 0.0
    %1152 = vmatprep.subr.mxu0 0.0
    %1153 = vmatpush1.msra.mxu0 0.0
    %1154 = vmatprep.subr.mxu0 0.0
    %1155 = vmatpush1.msra.mxu0 0.0
    %1156 = vmatprep.subr.mxu0 0.0
    %1157 = vmatpush1.msra.mxu0 0.0
    %1158 = vmatprep.subr.mxu0 0.0
    %1159 = vmatpush1.msra.mxu0 0.0
    %1160 = vmatprep.subr.mxu0 0.0
    %1161 = vmatpush1.msra.mxu0 0.0
    %1162 = vmatprep.subr.mxu0 0.0
    %1163 = vmatpush1.msra.mxu0 0.0
    %1164 = vmatprep.subr.mxu0 0.0
    %1165 = vmatpush1.msra.mxu0 0.0
    %1166 = vmatprep.subr.mxu0 0.0
    %1167 = vmatpush1.msra.mxu0 0.0
    %1168 = vmatprep.subr.mxu0 0.0
    %1169 = vmatpush1.msra.mxu0 0.0
    %1170 = vmatprep.subr.mxu0 0.0
    %1171 = vmatpush1.msra.mxu0 0.0
    %1172 = vmatprep.subr.mxu0 0.0
    %1173 = vmatpush1.msra.mxu0 0.0
    %1174 = vmatprep.subr.mxu0 0.0
    %1175 = vmatpush1.msra.mxu0 0.0
    %1176 = vmatprep.subr.mxu0 0.0
    %1177 = vmatpush1.msra.mxu0 0.0
    %1178 = vmatprep.subr.mxu0 0.0
    %1179 = vmatpush1.msra.mxu0 0.0
    %1180 = vmatprep.subr.mxu0 0.0
    %1181 = vmatpush1.msra.mxu0 0.0
    %1182 = vmatprep.subr.mxu0 0.0
    %1183 = vmatpush1.msra.mxu0 0.0
    %1184 = vmatprep.subr.mxu0 0.0
    %1185 = vmatpush1.msra.mxu0 0.0
    %1186 = vmatprep.subr.mxu0 0.0
    %1187 = vmatpush1.msra.mxu0 0.0
    %1188 = vmatprep.mubr.f32.mxu0 0.0
    %1189 = vmatmul.mubr.f32.gmra.mrb[0].mxu0 %v1122
    %v1190 = vpop.f32.mrb[0].mxu0
    %v1191 = vadd.f32 0.0, %v1190
    %v1192 = vpop.f32.mrb[0].mxu0
    %1193 = vdwg.mxu0
    %v1194 = vadd.f32 %v1121, %v1191
    %v1195 = vld [vmem:[#allocation2 + $0xd] ss:$0 sm:$0xff]
    %v1196 = vsel %vm167, %v1118, 0
    %1198 = vmatprep.subr.mxu0 0.0
    %1199 = vmatpush1.msra.mxu0 %v696
    %1200 = vmatprep.subr.mxu0 0.0
    %1201 = vmatpush1.msra.mxu0 %v697
    %1202 = vmatprep.subr.mxu0 0.0
    %1203 = vmatpush1.msra.mxu0 %v698
    %1204 = vmatprep.subr.mxu0 0.0
    %1205 = vmatpush1.msra.mxu0 %v699
    %1206 = vmatprep.subr.mxu0 0.0
    %1207 = vmatpush1.msra.mxu0 0.0
    %1208 = vmatprep.subr.mxu0 0.0
    %1209 = vmatpush1.msra.mxu0 0.0
    %1210 = vmatprep.subr.mxu0 0.0
    %1211 = vmatpush1.msra.mxu0 0.0
    %1212 = vmatprep.subr.mxu0 0.0
    %1213 = vmatpush1.msra.mxu0 0.0
    %1214 = vmatprep.subr.mxu0 0.0
    %1215 = vmatpush1.msra.mxu0 0.0
    %1216 = vmatprep.subr.mxu0 0.0
    %1217 = vmatpush1.msra.mxu0 0.0
    %1218 = vmatprep.subr.mxu0 0.0
    %1219 = vmatpush1.msra.mxu0 0.0
    %1220 = vmatprep.subr.mxu0 0.0
    %1221 = vmatpush1.msra.mxu0 0.0
    %1222 = vmatprep.subr.mxu0 0.0
    %1223 = vmatpush1.msra.mxu0 0.0
    %1224 = vmatprep.subr.mxu0 0.0
    %1225 = vmatpush1.msra.mxu0 0.0
    %1226 = vmatprep.subr.mxu0 0.0
    %1227 = vmatpush1.msra.mxu0 0.0
    %1228 = vmatprep.subr.mxu0 0.0
    %1229 = vmatpush1.msra.mxu0 0.0
    %1230 = vmatprep.subr.mxu0 0.0
    %1231 = vmatpush1.msra.mxu0 0.0
    %1232 = vmatprep.subr.mxu0 0.0
    %1233 = vmatpush1.msra.mxu0 0.0
    %1234 = vmatprep.subr.mxu0 0.0
    %1235 = vmatpush1.msra.mxu0 0.0
    %1236 = vmatprep.subr.mxu0 0.0
    %1237 = vmatpush1.msra.mxu0 0.0
    %1238 = vmatprep.subr.mxu0 0.0
    %1239 = vmatpush1.msra.mxu0 0.0
    %1240 = vmatprep.subr.mxu0 0.0
    %1241 = vmatpush1.msra.mxu0 0.0
    %1242 = vmatprep.subr.mxu0 0.0
    %1243 = vmatpush1.msra.mxu0 0.0
    %1244 = vmatprep.subr.mxu0 0.0
    %1245 = vmatpush1.msra.mxu0 0.0
    %1246 = vmatprep.subr.mxu0 0.0
    %1247 = vmatpush1.msra.mxu0 0.0
    %1248 = vmatprep.subr.mxu0 0.0
    %1249 = vmatpush1.msra.mxu0 0.0
    %1250 = vmatprep.subr.mxu0 0.0
    %1251 = vmatpush1.msra.mxu0 0.0
    %1252 = vmatprep.subr.mxu0 0.0
    %1253 = vmatpush1.msra.mxu0 0.0
    %1254 = vmatprep.subr.mxu0 0.0
    %1255 = vmatpush1.msra.mxu0 0.0
    %1256 = vmatprep.subr.mxu0 0.0
    %1257 = vmatpush1.msra.mxu0 0.0
    %1258 = vmatprep.subr.mxu0 0.0
    %1259 = vmatpush1.msra.mxu0 0.0
    %1260 = vmatprep.subr.mxu0 0.0
    %1261 = vmatpush1.msra.mxu0 0.0
    %1262 = vmatprep.mubr.f32.mxu0 0.0
    %1263 = vmatmul.mubr.f32.gmra.mrb[0].mxu0 %v1196
    %v1264 = vpop.f32.mrb[0].mxu0
    %v1265 = vadd.f32 0.0, %v1264
    %v1266 = vpop.f32.mrb[0].mxu0
    %1267 = vdwg.mxu0
    %v1268 = vadd.f32 %v1195, %v1265
    %v1269 = vtanh.pop %v1194
    %v1270 = vxor.u32 %v1194, 2147483648
    %v1271 = vmul.f32 %v1270, 1.442695
    %v1272 = vpow.pop %v1271
    %v1273 = vadd.f32 %v1272, 1.0
    %v1274 = vrcp.pop %v1273
    %v1275 = vmul.f32 1.0, %v1274
    %v1276 = vsel %vm704, %v1269, %v1275
    %v1277 = vmul.f32 %v1276, %v1079
    %1279 = vrot.lane.b32.xlu0 %v1276, 64
    %v1280 = vpop.permute.xlu0 %1279
    %v1282 = vmul.f32 %v1276, %v1280
    %1284 = vrot.lane.b32.xlu0 %v1282, 32
    %v1285 = vpop.permute.xlu0 %1284
    %v1287 = vadd.f32 %v1277, %v1285
    %v1288 = vtanh.pop %v1287
    %1290 = vrot.lane.b32.xlu0 %v1288, 64
    %v1291 = vpop.permute.xlu0 %1290
    %v1293 = vmul.f32 %v1276, %v1291
    %v1294 = vtanh.pop %v1268
    %v1295 = vxor.u32 %v1268, 2147483648
    %v1296 = vmul.f32 %v1295, 1.442695
    %v1297 = vpow.pop %v1296
    %v1298 = vadd.f32 %v1297, 1.0
    %v1299 = vrcp.pop %v1298
    %v1300 = vmul.f32 1.0, %v1299
    %v1301 = vsel %vm704, %v1294, %v1300
    %v1302 = vmul.f32 %v1301, %v1104
    %1304 = vrot.lane.b32.xlu0 %v1301, 64
    %v1305 = vpop.permute.xlu0 %1304
    %v1307 = vmul.f32 %v1301, %v1305
    %1309 = vrot.lane.b32.xlu0 %v1307, 32
    %v1310 = vpop.permute.xlu0 %1309
    %v1312 = vadd.f32 %v1302, %v1310
    %v1313 = vtanh.pop %v1312
    %1315 = vrot.lane.b32.xlu0 %v1313, 64
    %v1316 = vpop.permute.xlu0 %1315
    %v1318 = vmul.f32 %v1301, %v1316
    %1320 = vrot.lane.b32.xlu0 %v1293, 32
    %v1321 = vpop.permute.xlu0 %1320
    %1323 = vst.msk [vmem:[#allocation3 + $0x2] sm:$0x1] %vm906, %v1321
    %1325 = vrot.lane.b32.xlu0 %v1318, 32
    %v1326 = vpop.permute.xlu0 %1325
    %1328 = vst.msk [vmem:[#allocation4 + $0x5] sm:$0x1] %vm906, %v1326
    %v1329 = vld [vmem:[#allocation2 + $0x3] ss:$0 sm:$0xff]
    %v1330 = vsel %vm167, %v1321, 0
    %1332 = vmatprep.subr.mxu0 0.0
    %1333 = vmatpush1.msra.mxu0 %v692
    %1334 = vmatprep.subr.mxu0 0.0
    %1335 = vmatpush1.msra.mxu0 %v693
    %1336 = vmatprep.subr.mxu0 0.0
    %1337 = vmatpush1.msra.mxu0 %v694
    %1338 = vmatprep.subr.mxu0 0.0
    %1339 = vmatpush1.msra.mxu0 %v695
    %1340 = vmatprep.subr.mxu0 0.0
    %1341 = vmatpush1.msra.mxu0 0.0
    %1342 = vmatprep.subr.mxu0 0.0
    %1343 = vmatpush1.msra.mxu0 0.0
    %1344 = vmatprep.subr.mxu0 0.0
    %1345 = vmatpush1.msra.mxu0 0.0
    %1346 = vmatprep.subr.mxu0 0.0
    %1347 = vmatpush1.msra.mxu0 0.0
    %1348 = vmatprep.subr.mxu0 0.0
    %1349 = vmatpush1.msra.mxu0 0.0
    %1350 = vmatprep.subr.mxu0 0.0
    %1351 = vmatpush1.msra.mxu0 0.0
    %1352 = vmatprep.subr.mxu0 0.0
    %1353 = vmatpush1.msra.mxu0 0.0
    %1354 = vmatprep.subr.mxu0 0.0
    %1355 = vmatpush1.msra.mxu0 0.0
    %1356 = vmatprep.subr.mxu0 0.0
    %1357 = vmatpush1.msra.mxu0 0.0
    %1358 = vmatprep.subr.mxu0 0.0
    %1359 = vmatpush1.msra.mxu0 0.0
    %1360 = vmatprep.subr.mxu0 0.0
    %1361 = vmatpush1.msra.mxu0 0.0
    %1362 = vmatprep.subr.mxu0 0.0
    %1363 = vmatpush1.msra.mxu0 0.0
    %1364 = vmatprep.subr.mxu0 0.0
    %1365 = vmatpush1.msra.mxu0 0.0
    %1366 = vmatprep.subr.mxu0 0.0
    %1367 = vmatpush1.msra.mxu0 0.0
    %1368 = vmatprep.subr.mxu0 0.0
    %1369 = vmatpush1.msra.mxu0 0.0
    %1370 = vmatprep.subr.mxu0 0.0
    %1371 = vmatpush1.msra.mxu0 0.0
    %1372 = vmatprep.subr.mxu0 0.0
    %1373 = vmatpush1.msra.mxu0 0.0
    %1374 = vmatprep.subr.mxu0 0.0
    %1375 = vmatpush1.msra.mxu0 0.0
    %1376 = vmatprep.subr.mxu0 0.0
    %1377 = vmatpush1.msra.mxu0 0.0
    %1378 = vmatprep.subr.mxu0 0.0
    %1379 = vmatpush1.msra.mxu0 0.0
    %1380 = vmatprep.subr.mxu0 0.0
    %1381 = vmatpush1.msra.mxu0 0.0
    %1382 = vmatprep.subr.mxu0 0.0
    %1383 = vmatpush1.msra.mxu0 0.0
    %1384 = vmatprep.subr.mxu0 0.0
    %1385 = vmatpush1.msra.mxu0 0.0
    %1386 = vmatprep.subr.mxu0 0.0
    %1387 = vmatpush1.msra.mxu0 0.0
    %1388 = vmatprep.subr.mxu0 0.0
    %1389 = vmatpush1.msra.mxu0 0.0
    %1390 = vmatprep.subr.mxu0 0.0
    %1391 = vmatpush1.msra.mxu0 0.0
    %1392 = vmatprep.subr.mxu0 0.0
    %1393 = vmatpush1.msra.mxu0 0.0
    %1394 = vmatprep.subr.mxu0 0.0
    %1395 = vmatpush1.msra.mxu0 0.0
    %1396 = vmatprep.mubr.f32.mxu0 0.0
    %1397 = vmatmul.mubr.f32.gmra.mrb[0].mxu0 %v1330
    %v1398 = vpop.f32.mrb[0].mxu0
    %v1399 = vadd.f32 0.0, %v1398
    %v1400 = vpop.f32.mrb[0].mxu0
    %1401 = vdwg.mxu0
    %v1402 = vadd.f32 %v1329, %v1399
    %v1403 = vld [vmem:[#allocation2 + $0xc] ss:$0 sm:$0xff]
    %v1404 = vsel %vm167, %v1326, 0
    %1406 = vmatprep.subr.mxu0 0.0
    %1407 = vmatpush1.msra.mxu0 %v696
    %1408 = vmatprep.subr.mxu0 0.0
    %1409 = vmatpush1.msra.mxu0 %v697
    %1410 = vmatprep.subr.mxu0 0.0
    %1411 = vmatpush1.msra.mxu0 %v698
    %1412 = vmatprep.subr.mxu0 0.0
    %1413 = vmatpush1.msra.mxu0 %v699
    %1414 = vmatprep.subr.mxu0 0.0
    %1415 = vmatpush1.msra.mxu0 0.0
    %1416 = vmatprep.subr.mxu0 0.0
    %1417 = vmatpush1.msra.mxu0 0.0
    %1418 = vmatprep.subr.mxu0 0.0
    %1419 = vmatpush1.msra.mxu0 0.0
    %1420 = vmatprep.subr.mxu0 0.0
    %1421 = vmatpush1.msra.mxu0 0.0
    %1422 = vmatprep.subr.mxu0 0.0
    %1423 = vmatpush1.msra.mxu0 0.0
    %1424 = vmatprep.subr.mxu0 0.0
    %1425 = vmatpush1.msra.mxu0 0.0
    %1426 = vmatprep.subr.mxu0 0.0
    %1427 = vmatpush1.msra.mxu0 0.0
    %1428 = vmatprep.subr.mxu0 0.0
    %1429 = vmatpush1.msra.mxu0 0.0
    %1430 = vmatprep.subr.mxu0 0.0
    %1431 = vmatpush1.msra.mxu0 0.0
    %1432 = vmatprep.subr.mxu0 0.0
    %1433 = vmatpush1.msra.mxu0 0.0
    %1434 = vmatprep.subr.mxu0 0.0
    %1435 = vmatpush1.msra.mxu0 0.0
    %1436 = vmatprep.subr.mxu0 0.0
    %1437 = vmatpush1.msra.mxu0 0.0
    %1438 = vmatprep.subr.mxu0 0.0
    %1439 = vmatpush1.msra.mxu0 0.0
    %1440 = vmatprep.subr.mxu0 0.0
    %1441 = vmatpush1.msra.mxu0 0.0
    %1442 = vmatprep.subr.mxu0 0.0
    %1443 = vmatpush1.msra.mxu0 0.0
    %1444 = vmatprep.subr.mxu0 0.0
    %1445 = vmatpush1.msra.mxu0 0.0
    %1446 = vmatprep.subr.mxu0 0.0
    %1447 = vmatpush1.msra.mxu0 0.0
    %1448 = vmatprep.subr.mxu0 0.0
    %1449 = vmatpush1.msra.mxu0 0.0
    %1450 = vmatprep.subr.mxu0 0.0
    %1451 = vmatpush1.msra.mxu0 0.0
    %1452 = vmatprep.subr.mxu0 0.0
    %1453 = vmatpush1.msra.mxu0 0.0
    %1454 = vmatprep.subr.mxu0 0.0
    %1455 = vmatpush1.msra.mxu0 0.0
    %1456 = vmatprep.subr.mxu0 0.0
    %1457 = vmatpush1.msra.mxu0 0.0
    %1458 = vmatprep.subr.mxu0 0.0
    %1459 = vmatpush1.msra.mxu0 0.0
    %1460 = vmatprep.subr.mxu0 0.0
    %1461 = vmatpush1.msra.mxu0 0.0
    %1462 = vmatprep.subr.mxu0 0.0
    %1463 = vmatpush1.msra.mxu0 0.0
    %1464 = vmatprep.subr.mxu0 0.0
    %1465 = vmatpush1.msra.mxu0 0.0
    %1466 = vmatprep.subr.mxu0 0.0
    %1467 = vmatpush1.msra.mxu0 0.0
    %1468 = vmatprep.subr.mxu0 0.0
    %1469 = vmatpush1.msra.mxu0 0.0
    %1470 = vmatprep.mubr.f32.mxu0 0.0
    %1471 = vmatmul.mubr.f32.gmra.mrb[0].mxu0 %v1404
    %v1472 = vpop.f32.mrb[0].mxu0
    %v1473 = vadd.f32 0.0, %v1472
    %v1474 = vpop.f32.mrb[0].mxu0
    %1475 = vdwg.mxu0
    %v1476 = vadd.f32 %v1403, %v1473
    %v1477 = vtanh.pop %v1402
    %v1478 = vxor.u32 %v1402, 2147483648
    %v1479 = vmul.f32 %v1478, 1.442695
    %v1480 = vpow.pop %v1479
    %v1481 = vadd.f32 %v1480, 1.0
    %v1482 = vrcp.pop %v1481
    %v1483 = vmul.f32 1.0, %v1482
    %v1484 = vsel %vm704, %v1477, %v1483
    %v1485 = vmul.f32 %v1484, %v1287
    %1487 = vrot.lane.b32.xlu0 %v1484, 64
    %v1488 = vpop.permute.xlu0 %1487
    %v1490 = vmul.f32 %v1484, %v1488
    %1492 = vrot.lane.b32.xlu0 %v1490, 32
    %v1493 = vpop.permute.xlu0 %1492
    %v1495 = vadd.f32 %v1485, %v1493
    %v1496 = vtanh.pop %v1495
    %1498 = vrot.lane.b32.xlu0 %v1496, 64
    %v1499 = vpop.permute.xlu0 %1498
    %v1501 = vmul.f32 %v1484, %v1499
    %v1502 = vtanh.pop %v1476
    %v1503 = vxor.u32 %v1476, 2147483648
    %v1504 = vmul.f32 %v1503, 1.442695
    %v1505 = vpow.pop %v1504
    %v1506 = vadd.f32 %v1505, 1.0
    %v1507 = vrcp.pop %v1506
    %v1508 = vmul.f32 1.0, %v1507
    %v1509 = vsel %vm704, %v1502, %v1508
    %v1510 = vmul.f32 %v1509, %v1312
    %1512 = vrot.lane.b32.xlu0 %v1509, 64
    %v1513 = vpop.permute.xlu0 %1512
    %v1515 = vmul.f32 %v1509, %v1513
    %1517 = vrot.lane.b32.xlu0 %v1515, 32
    %v1518 = vpop.permute.xlu0 %1517
    %v1520 = vadd.f32 %v1510, %v1518
    %v1521 = vtanh.pop %v1520
    %1523 = vrot.lane.b32.xlu0 %v1521, 64
    %v1524 = vpop.permute.xlu0 %1523
    %v1526 = vmul.f32 %v1509, %v1524
    %1528 = vrot.lane.b32.xlu0 %v1501, 32
    %v1529 = vpop.permute.xlu0 %1528
    %1531 = vst.msk [vmem:[#allocation3 + $0x3] sm:$0x1] %vm906, %v1529
    %1533 = vrot.lane.b32.xlu0 %v1526, 32
    %v1534 = vpop.permute.xlu0 %1533
    %1536 = vst.msk [vmem:[#allocation4 + $0x4] sm:$0x1] %vm906, %v1534
    %v1537 = vld [vmem:[#allocation2 + $0x4] ss:$0 sm:$0xff]
    %v1538 = vsel %vm167, %v1529, 0
    %1540 = vmatprep.subr.mxu0 0.0
    %1541 = vmatpush1.msra.mxu0 %v692
    %1542 = vmatprep.subr.mxu0 0.0
    %1543 = vmatpush1.msra.mxu0 %v693
    %1544 = vmatprep.subr.mxu0 0.0
    %1545 = vmatpush1.msra.mxu0 %v694
    %1546 = vmatprep.subr.mxu0 0.0
    %1547 = vmatpush1.msra.mxu0 %v695
    %1548 = vmatprep.subr.mxu0 0.0
    %1549 = vmatpush1.msra.mxu0 0.0
    %1550 = vmatprep.subr.mxu0 0.0
    %1551 = vmatpush1.msra.mxu0 0.0
    %1552 = vmatprep.subr.mxu0 0.0
    %1553 = vmatpush1.msra.mxu0 0.0
    %1554 = vmatprep.subr.mxu0 0.0
    %1555 = vmatpush1.msra.mxu0 0.0
    %1556 = vmatprep.subr.mxu0 0.0
    %1557 = vmatpush1.msra.mxu0 0.0
    %1558 = vmatprep.subr.mxu0 0.0
    %1559 = vmatpush1.msra.mxu0 0.0
    %1560 = vmatprep.subr.mxu0 0.0
    %1561 = vmatpush1.msra.mxu0 0.0
    %1562 = vmatprep.subr.mxu0 0.0
    %1563 = vmatpush1.msra.mxu0 0.0
    %1564 = vmatprep.subr.mxu0 0.0
    %1565 = vmatpush1.msra.mxu0 0.0
    %1566 = vmatprep.subr.mxu0 0.0
    %1567 = vmatpush1.msra.mxu0 0.0
    %1568 = vmatprep.subr.mxu0 0.0
    %1569 = vmatpush1.msra.mxu0 0.0
    %1570 = vmatprep.subr.mxu0 0.0
    %1571 = vmatpush1.msra.mxu0 0.0
    %1572 = vmatprep.subr.mxu0 0.0
    %1573 = vmatpush1.msra.mxu0 0.0
    %1574 = vmatprep.subr.mxu0 0.0
    %1575 = vmatpush1.msra.mxu0 0.0
    %1576 = vmatprep.subr.mxu0 0.0
    %1577 = vmatpush1.msra.mxu0 0.0
    %1578 = vmatprep.subr.mxu0 0.0
    %1579 = vmatpush1.msra.mxu0 0.0
    %1580 = vmatprep.subr.mxu0 0.0
    %1581 = vmatpush1.msra.mxu0 0.0
    %1582 = vmatprep.subr.mxu0 0.0
    %1583 = vmatpush1.msra.mxu0 0.0
    %1584 = vmatprep.subr.mxu0 0.0
    %1585 = vmatpush1.msra.mxu0 0.0
    %1586 = vmatprep.subr.mxu0 0.0
    %1587 = vmatpush1.msra.mxu0 0.0
    %1588 = vmatprep.subr.mxu0 0.0
    %1589 = vmatpush1.msra.mxu0 0.0
    %1590 = vmatprep.subr.mxu0 0.0
    %1591 = vmatpush1.msra.mxu0 0.0
    %1592 = vmatprep.subr.mxu0 0.0
    %1593 = vmatpush1.msra.mxu0 0.0
    %1594 = vmatprep.subr.mxu0 0.0
    %1595 = vmatpush1.msra.mxu0 0.0
    %1596 = vmatprep.subr.mxu0 0.0
    %1597 = vmatpush1.msra.mxu0 0.0
    %1598 = vmatprep.subr.mxu0 0.0
    %1599 = vmatpush1.msra.mxu0 0.0
    %1600 = vmatprep.subr.mxu0 0.0
    %1601 = vmatpush1.msra.mxu0 0.0
    %1602 = vmatprep.subr.mxu0 0.0
    %1603 = vmatpush1.msra.mxu0 0.0
    %1604 = vmatprep.mubr.f32.mxu0 0.0
    %1605 = vmatmul.mubr.f32.gmra.mrb[0].mxu0 %v1538
    %v1606 = vpop.f32.mrb[0].mxu0
    %v1607 = vadd.f32 0.0, %v1606
    %v1608 = vpop.f32.mrb[0].mxu0
    %1609 = vdwg.mxu0
    %v1610 = vadd.f32 %v1537, %v1607
    %v1611 = vld [vmem:[#allocation2 + $0xb] ss:$0 sm:$0xff]
    %v1612 = vsel %vm167, %v1534, 0
    %1614 = vmatprep.subr.mxu0 0.0
    %1615 = vmatpush1.msra.mxu0 %v696
    %1616 = vmatprep.subr.mxu0 0.0
    %1617 = vmatpush1.msra.mxu0 %v697
    %1618 = vmatprep.subr.mxu0 0.0
    %1619 = vmatpush1.msra.mxu0 %v698
    %1620 = vmatprep.subr.mxu0 0.0
    %1621 = vmatpush1.msra.mxu0 %v699
    %1622 = vmatprep.subr.mxu0 0.0
    %1623 = vmatpush1.msra.mxu0 0.0
    %1624 = vmatprep.subr.mxu0 0.0
    %1625 = vmatpush1.msra.mxu0 0.0
    %1626 = vmatprep.subr.mxu0 0.0
    %1627 = vmatpush1.msra.mxu0 0.0
    %1628 = vmatprep.subr.mxu0 0.0
    %1629 = vmatpush1.msra.mxu0 0.0
    %1630 = vmatprep.subr.mxu0 0.0
    %1631 = vmatpush1.msra.mxu0 0.0
    %1632 = vmatprep.subr.mxu0 0.0
    %1633 = vmatpush1.msra.mxu0 0.0
    %1634 = vmatprep.subr.mxu0 0.0
    %1635 = vmatpush1.msra.mxu0 0.0
    %1636 = vmatprep.subr.mxu0 0.0
    %1637 = vmatpush1.msra.mxu0 0.0
    %1638 = vmatprep.subr.mxu0 0.0
    %1639 = vmatpush1.msra.mxu0 0.0
    %1640 = vmatprep.subr.mxu0 0.0
    %1641 = vmatpush1.msra.mxu0 0.0
    %1642 = vmatprep.subr.mxu0 0.0
    %1643 = vmatpush1.msra.mxu0 0.0
    %1644 = vmatprep.subr.mxu0 0.0
    %1645 = vmatpush1.msra.mxu0 0.0
    %1646 = vmatprep.subr.mxu0 0.0
    %1647 = vmatpush1.msra.mxu0 0.0
    %1648 = vmatprep.subr.mxu0 0.0
    %1649 = vmatpush1.msra.mxu0 0.0
    %1650 = vmatprep.subr.mxu0 0.0
    %1651 = vmatpush1.msra.mxu0 0.0
    %1652 = vmatprep.subr.mxu0 0.0
    %1653 = vmatpush1.msra.mxu0 0.0
    %1654 = vmatprep.subr.mxu0 0.0
    %1655 = vmatpush1.msra.mxu0 0.0
    %1656 = vmatprep.subr.mxu0 0.0
    %1657 = vmatpush1.msra.mxu0 0.0
    %1658 = vmatprep.subr.mxu0 0.0
    %1659 = vmatpush1.msra.mxu0 0.0
    %1660 = vmatprep.subr.mxu0 0.0
    %1661 = vmatpush1.msra.mxu0 0.0
    %1662 = vmatprep.subr.mxu0 0.0
    %1663 = vmatpush1.msra.mxu0 0.0
    %1664 = vmatprep.subr.mxu0 0.0
    %1665 = vmatpush1.msra.mxu0 0.0
    %1666 = vmatprep.subr.mxu0 0.0
    %1667 = vmatpush1.msra.mxu0 0.0
    %1668 = vmatprep.subr.mxu0 0.0
    %1669 = vmatpush1.msra.mxu0 0.0
    %1670 = vmatprep.subr.mxu0 0.0
    %1671 = vmatpush1.msra.mxu0 0.0
    %1672 = vmatprep.subr.mxu0 0.0
    %1673 = vmatpush1.msra.mxu0 0.0
    %1674 = vmatprep.subr.mxu0 0.0
    %1675 = vmatpush1.msra.mxu0 0.0
    %1676 = vmatprep.subr.mxu0 0.0
    %1677 = vmatpush1.msra.mxu0 0.0
    %1678 = vmatprep.mubr.f32.mxu0 0.0
    %1679 = vmatmul.mubr.f32.gmra.mrb[0].mxu0 %v1612
    %v1680 = vpop.f32.mrb[0].mxu0
    %v1681 = vadd.f32 0.0, %v1680
    %v1682 = vpop.f32.mrb[0].mxu0
    %1683 = vdwg.mxu0
    %v1684 = vadd.f32 %v1611, %v1681
    %v1685 = vtanh.pop %v1610
    %v1686 = vxor.u32 %v1610, 2147483648
    %v1687 = vmul.f32 %v1686, 1.442695
    %v1688 = vpow.pop %v1687
    %v1689 = vadd.f32 %v1688, 1.0
    %v1690 = vrcp.pop %v1689
    %v1691 = vmul.f32 1.0, %v1690
    %v1692 = vsel %vm704, %v1685, %v1691
    %v1693 = vmul.f32 %v1692, %v1495
    %1695 = vrot.lane.b32.xlu0 %v1692, 64
    %v1696 = vpop.permute.xlu0 %1695
    %v1698 = vmul.f32 %v1692, %v1696
    %1700 = vrot.lane.b32.xlu0 %v1698, 32
    %v1701 = vpop.permute.xlu0 %1700
    %v1703 = vadd.f32 %v1693, %v1701
    %v1704 = vtanh.pop %v1703
    %1706 = vrot.lane.b32.xlu0 %v1704, 64
    %v1707 = vpop.permute.xlu0 %1706
    %v1709 = vmul.f32 %v1692, %v1707
    %v1710 = vtanh.pop %v1684
    %v1711 = vxor.u32 %v1684, 2147483648
    %v1712 = vmul.f32 %v1711, 1.442695
    %v1713 = vpow.pop %v1712
    %v1714 = vadd.f32 %v1713, 1.0
    %v1715 = vrcp.pop %v1714
    %v1716 = vmul.f32 1.0, %v1715
    %v1717 = vsel %vm704, %v1710, %v1716
    %v1718 = vmul.f32 %v1717, %v1520
    %1720 = vrot.lane.b32.xlu0 %v1717, 64
    %v1721 = vpop.permute.xlu0 %1720
    %v1723 = vmul.f32 %v1717, %v1721
    %1725 = vrot.lane.b32.xlu0 %v1723, 32
    %v1726 = vpop.permute.xlu0 %1725
    %v1728 = vadd.f32 %v1718, %v1726
    %v1729 = vtanh.pop %v1728
    %1731 = vrot.lane.b32.xlu0 %v1729, 64
    %v1732 = vpop.permute.xlu0 %1731
    %v1734 = vmul.f32 %v1717, %v1732
    %1736 = vrot.lane.b32.xlu0 %v1709, 32
    %v1737 = vpop.permute.xlu0 %1736
    %1739 = vst.msk [vmem:[#allocation3 + $0x4] sm:$0x1] %vm906, %v1737
    %1741 = vrot.lane.b32.xlu0 %v1734, 32
    %v1742 = vpop.permute.xlu0 %1741
    %1744 = vst.msk [vmem:[#allocation4 + $0x3] sm:$0x1] %vm906, %v1742
    %v1745 = vld [vmem:[#allocation2 + $0x5] ss:$0 sm:$0xff]
    %v1746 = vsel %vm167, %v1737, 0
    %1748 = vmatprep.subr.mxu0 0.0
    %1749 = vmatpush1.msra.mxu0 %v692
    %1750 = vmatprep.subr.mxu0 0.0
    %1751 = vmatpush1.msra.mxu0 %v693
    %1752 = vmatprep.subr.mxu0 0.0
    %1753 = vmatpush1.msra.mxu0 %v694
    %1754 = vmatprep.subr.mxu0 0.0
    %1755 = vmatpush1.msra.mxu0 %v695
    %1756 = vmatprep.subr.mxu0 0.0
    %1757 = vmatpush1.msra.mxu0 0.0
    %1758 = vmatprep.subr.mxu0 0.0
    %1759 = vmatpush1.msra.mxu0 0.0
    %1760 = vmatprep.subr.mxu0 0.0
    %1761 = vmatpush1.msra.mxu0 0.0
    %1762 = vmatprep.subr.mxu0 0.0
    %1763 = vmatpush1.msra.mxu0 0.0
    %1764 = vmatprep.subr.mxu0 0.0
    %1765 = vmatpush1.msra.mxu0 0.0
    %1766 = vmatprep.subr.mxu0 0.0
    %1767 = vmatpush1.msra.mxu0 0.0
    %1768 = vmatprep.subr.mxu0 0.0
    %1769 = vmatpush1.msra.mxu0 0.0
    %1770 = vmatprep.subr.mxu0 0.0
    %1771 = vmatpush1.msra.mxu0 0.0
    %1772 = vmatprep.subr.mxu0 0.0
    %1773 = vmatpush1.msra.mxu0 0.0
    %1774 = vmatprep.subr.mxu0 0.0
    %1775 = vmatpush1.msra.mxu0 0.0
    %1776 = vmatprep.subr.mxu0 0.0
    %1777 = vmatpush1.msra.mxu0 0.0
    %1778 = vmatprep.subr.mxu0 0.0
    %1779 = vmatpush1.msra.mxu0 0.0
    %1780 = vmatprep.subr.mxu0 0.0
    %1781 = vmatpush1.msra.mxu0 0.0
    %1782 = vmatprep.subr.mxu0 0.0
    %1783 = vmatpush1.msra.mxu0 0.0
    %1784 = vmatprep.subr.mxu0 0.0
    %1785 = vmatpush1.msra.mxu0 0.0
    %1786 = vmatprep.subr.mxu0 0.0
    %1787 = vmatpush1.msra.mxu0 0.0
    %1788 = vmatprep.subr.mxu0 0.0
    %1789 = vmatpush1.msra.mxu0 0.0
    %1790 = vmatprep.subr.mxu0 0.0
    %1791 = vmatpush1.msra.mxu0 0.0
    %1792 = vmatprep.subr.mxu0 0.0
    %1793 = vmatpush1.msra.mxu0 0.0
    %1794 = vmatprep.subr.mxu0 0.0
    %1795 = vmatpush1.msra.mxu0 0.0
    %1796 = vmatprep.subr.mxu0 0.0
    %1797 = vmatpush1.msra.mxu0 0.0
    %1798 = vmatprep.subr.mxu0 0.0
    %1799 = vmatpush1.msra.mxu0 0.0
    %1800 = vmatprep.subr.mxu0 0.0
    %1801 = vmatpush1.msra.mxu0 0.0
    %1802 = vmatprep.subr.mxu0 0.0
    %1803 = vmatpush1.msra.mxu0 0.0
    %1804 = vmatprep.subr.mxu0 0.0
    %1805 = vmatpush1.msra.mxu0 0.0
    %1806 = vmatprep.subr.mxu0 0.0
    %1807 = vmatpush1.msra.mxu0 0.0
    %1808 = vmatprep.subr.mxu0 0.0
    %1809 = vmatpush1.msra.mxu0 0.0
    %1810 = vmatprep.subr.mxu0 0.0
    %1811 = vmatpush1.msra.mxu0 0.0
    %1812 = vmatprep.mubr.f32.mxu0 0.0
    %1813 = vmatmul.mubr.f32.gmra.mrb[0].mxu0 %v1746
    %v1814 = vpop.f32.mrb[0].mxu0
    %v1815 = vadd.f32 0.0, %v1814
    %v1816 = vpop.f32.mrb[0].mxu0
    %1817 = vdwg.mxu0
    %v1818 = vadd.f32 %v1745, %v1815
    %v1819 = vld [vmem:[#allocation2 + $0xa] ss:$0 sm:$0xff]
    %v1820 = vsel %vm167, %v1742, 0
    %1822 = vmatprep.subr.mxu0 0.0
    %1823 = vmatpush1.msra.mxu0 %v696
    %1824 = vmatprep.subr.mxu0 0.0
    %1825 = vmatpush1.msra.mxu0 %v697
    %1826 = vmatprep.subr.mxu0 0.0
    %1827 = vmatpush1.msra.mxu0 %v698
    %1828 = vmatprep.subr.mxu0 0.0
    %1829 = vmatpush1.msra.mxu0 %v699
    %1830 = vmatprep.subr.mxu0 0.0
    %1831 = vmatpush1.msra.mxu0 0.0
    %1832 = vmatprep.subr.mxu0 0.0
    %1833 = vmatpush1.msra.mxu0 0.0
    %1834 = vmatprep.subr.mxu0 0.0
    %1835 = vmatpush1.msra.mxu0 0.0
    %1836 = vmatprep.subr.mxu0 0.0
    %1837 = vmatpush1.msra.mxu0 0.0
    %1838 = vmatprep.subr.mxu0 0.0
    %1839 = vmatpush1.msra.mxu0 0.0
    %1840 = vmatprep.subr.mxu0 0.0
    %1841 = vmatpush1.msra.mxu0 0.0
    %1842 = vmatprep.subr.mxu0 0.0
    %1843 = vmatpush1.msra.mxu0 0.0
    %1844 = vmatprep.subr.mxu0 0.0
    %1845 = vmatpush1.msra.mxu0 0.0
    %1846 = vmatprep.subr.mxu0 0.0
    %1847 = vmatpush1.msra.mxu0 0.0
    %1848 = vmatprep.subr.mxu0 0.0
    %1849 = vmatpush1.msra.mxu0 0.0
    %1850 = vmatprep.subr.mxu0 0.0
    %1851 = vmatpush1.msra.mxu0 0.0
    %1852 = vmatprep.subr.mxu0 0.0
    %1853 = vmatpush1.msra.mxu0 0.0
    %1854 = vmatprep.subr.mxu0 0.0
    %1855 = vmatpush1.msra.mxu0 0.0
    %1856 = vmatprep.subr.mxu0 0.0
    %1857 = vmatpush1.msra.mxu0 0.0
    %1858 = vmatprep.subr.mxu0 0.0
    %1859 = vmatpush1.msra.mxu0 0.0
    %1860 = vmatprep.subr.mxu0 0.0
    %1861 = vmatpush1.msra.mxu0 0.0
    %1862 = vmatprep.subr.mxu0 0.0
    %1863 = vmatpush1.msra.mxu0 0.0
    %1864 = vmatprep.subr.mxu0 0.0
    %1865 = vmatpush1.msra.mxu0 0.0
    %1866 = vmatprep.subr.mxu0 0.0
    %1867 = vmatpush1.msra.mxu0 0.0
    %1868 = vmatprep.subr.mxu0 0.0
    %1869 = vmatpush1.msra.mxu0 0.0
    %1870 = vmatprep.subr.mxu0 0.0
    %1871 = vmatpush1.msra.mxu0 0.0
    %1872 = vmatprep.subr.mxu0 0.0
    %1873 = vmatpush1.msra.mxu0 0.0
    %1874 = vmatprep.subr.mxu0 0.0
    %1875 = vmatpush1.msra.mxu0 0.0
    %1876 = vmatprep.subr.mxu0 0.0
    %1877 = vmatpush1.msra.mxu0 0.0
    %1878 = vmatprep.subr.mxu0 0.0
    %1879 = vmatpush1.msra.mxu0 0.0
    %1880 = vmatprep.subr.mxu0 0.0
    %1881 = vmatpush1.msra.mxu0 0.0
    %1882 = vmatprep.subr.mxu0 0.0
    %1883 = vmatpush1.msra.mxu0 0.0
    %1884 = vmatprep.subr.mxu0 0.0
    %1885 = vmatpush1.msra.mxu0 0.0
    %1886 = vmatprep.mubr.f32.mxu0 0.0
    %1887 = vmatmul.mubr.f32.gmra.mrb[0].mxu0 %v1820
    %v1888 = vpop.f32.mrb[0].mxu0
    %v1889 = vadd.f32 0.0, %v1888
    %v1890 = vpop.f32.mrb[0].mxu0
    %1891 = vdwg.mxu0
    %v1892 = vadd.f32 %v1819, %v1889
    %v1893 = vtanh.pop %v1818
    %v1894 = vxor.u32 %v1818, 2147483648
    %v1895 = vmul.f32 %v1894, 1.442695
    %v1896 = vpow.pop %v1895
    %v1897 = vadd.f32 %v1896, 1.0
    %v1898 = vrcp.pop %v1897
    %v1899 = vmul.f32 1.0, %v1898
    %v1900 = vsel %vm704, %v1893, %v1899
    %v1901 = vmul.f32 %v1900, %v1703
    %1903 = vrot.lane.b32.xlu0 %v1900, 64
    %v1904 = vpop.permute.xlu0 %1903
    %v1906 = vmul.f32 %v1900, %v1904
    %1908 = vrot.lane.b32.xlu0 %v1906, 32
    %v1909 = vpop.permute.xlu0 %1908
    %v1911 = vadd.f32 %v1901, %v1909
    %v1912 = vtanh.pop %v1911
    %1914 = vrot.lane.b32.xlu0 %v1912, 64
    %v1915 = vpop.permute.xlu0 %1914
    %v1917 = vmul.f32 %v1900, %v1915
    %v1918 = vtanh.pop %v1892
    %v1919 = vxor.u32 %v1892, 2147483648
    %v1920 = vmul.f32 %v1919, 1.442695
    %v1921 = vpow.pop %v1920
    %v1922 = vadd.f32 %v1921, 1.0
    %v1923 = vrcp.pop %v1922
    %v1924 = vmul.f32 1.0, %v1923
    %v1925 = vsel %vm704, %v1918, %v1924
    %v1926 = vmul.f32 %v1925, %v1728
    %1928 = vrot.lane.b32.xlu0 %v1925, 64
    %v1929 = vpop.permute.xlu0 %1928
    %v1931 = vmul.f32 %v1925, %v1929
    %1933 = vrot.lane.b32.xlu0 %v1931, 32
    %v1934 = vpop.permute.xlu0 %1933
    %v1936 = vadd.f32 %v1926, %v1934
    %v1937 = vtanh.pop %v1936
    %1939 = vrot.lane.b32.xlu0 %v1937, 64
    %v1940 = vpop.permute.xlu0 %1939
    %v1942 = vmul.f32 %v1925, %v1940
    %1944 = vrot.lane.b32.xlu0 %v1917, 32
    %v1945 = vpop.permute.xlu0 %1944
    %1947 = vst.msk [vmem:[#allocation3 + $0x5] sm:$0x1] %vm906, %v1945
    %1949 = vrot.lane.b32.xlu0 %v1942, 32
    %v1950 = vpop.permute.xlu0 %1949
    %1952 = vst.msk [vmem:[#allocation4 + $0x2] sm:$0x1] %vm906, %v1950
    %v1953 = vld [vmem:[#allocation2 + $0x6] ss:$0 sm:$0xff]
    %v1954 = vsel %vm167, %v1945, 0
    %1956 = vmatprep.subr.mxu0 0.0
    %1957 = vmatpush1.msra.mxu0 %v692
    %1958 = vmatprep.subr.mxu0 0.0
    %1959 = vmatpush1.msra.mxu0 %v693
    %1960 = vmatprep.subr.mxu0 0.0
    %1961 = vmatpush1.msra.mxu0 %v694
    %1962 = vmatprep.subr.mxu0 0.0
    %1963 = vmatpush1.msra.mxu0 %v695
    %1964 = vmatprep.subr.mxu0 0.0
    %1965 = vmatpush1.msra.mxu0 0.0
    %1966 = vmatprep.subr.mxu0 0.0
    %1967 = vmatpush1.msra.mxu0 0.0
    %1968 = vmatprep.subr.mxu0 0.0
    %1969 = vmatpush1.msra.mxu0 0.0
    %1970 = vmatprep.subr.mxu0 0.0
    %1971 = vmatpush1.msra.mxu0 0.0
    %1972 = vmatprep.subr.mxu0 0.0
    %1973 = vmatpush1.msra.mxu0 0.0
    %1974 = vmatprep.subr.mxu0 0.0
    %1975 = vmatpush1.msra.mxu0 0.0
    %1976 = vmatprep.subr.mxu0 0.0
    %1977 = vmatpush1.msra.mxu0 0.0
    %1978 = vmatprep.subr.mxu0 0.0
    %1979 = vmatpush1.msra.mxu0 0.0
    %1980 = vmatprep.subr.mxu0 0.0
    %1981 = vmatpush1.msra.mxu0 0.0
    %1982 = vmatprep.subr.mxu0 0.0
    %1983 = vmatpush1.msra.mxu0 0.0
    %1984 = vmatprep.subr.mxu0 0.0
    %1985 = vmatpush1.msra.mxu0 0.0
    %1986 = vmatprep.subr.mxu0 0.0
    %1987 = vmatpush1.msra.mxu0 0.0
    %1988 = vmatprep.subr.mxu0 0.0
    %1989 = vmatpush1.msra.mxu0 0.0
    %1990 = vmatprep.subr.mxu0 0.0
    %1991 = vmatpush1.msra.mxu0 0.0
    %1992 = vmatprep.subr.mxu0 0.0
    %1993 = vmatpush1.msra.mxu0 0.0
    %1994 = vmatprep.subr.mxu0 0.0
    %1995 = vmatpush1.msra.mxu0 0.0
    %1996 = vmatprep.subr.mxu0 0.0
    %1997 = vmatpush1.msra.mxu0 0.0
    %1998 = vmatprep.subr.mxu0 0.0
    %1999 = vmatpush1.msra.mxu0 0.0
    %2000 = vmatprep.subr.mxu0 0.0
    %2001 = vmatpush1.msra.mxu0 0.0
    %2002 = vmatprep.subr.mxu0 0.0
    %2003 = vmatpush1.msra.mxu0 0.0
    %2004 = vmatprep.subr.mxu0 0.0
    %2005 = vmatpush1.msra.mxu0 0.0
    %2006 = vmatprep.subr.mxu0 0.0
    %2007 = vmatpush1.msra.mxu0 0.0
    %2008 = vmatprep.subr.mxu0 0.0
    %2009 = vmatpush1.msra.mxu0 0.0
    %2010 = vmatprep.subr.mxu0 0.0
    %2011 = vmatpush1.msra.mxu0 0.0
    %2012 = vmatprep.subr.mxu0 0.0
    %2013 = vmatpush1.msra.mxu0 0.0
    %2014 = vmatprep.subr.mxu0 0.0
    %2015 = vmatpush1.msra.mxu0 0.0
    %2016 = vmatprep.subr.mxu0 0.0
    %2017 = vmatpush1.msra.mxu0 0.0
    %2018 = vmatprep.subr.mxu0 0.0
    %2019 = vmatpush1.msra.mxu0 0.0
    %2020 = vmatprep.mubr.f32.mxu0 0.0
    %2021 = vmatmul.mubr.f32.gmra.mrb[0].mxu0 %v1954
    %v2022 = vpop.f32.mrb[0].mxu0
    %v2023 = vadd.f32 0.0, %v2022
    %v2024 = vpop.f32.mrb[0].mxu0
    %2025 = vdwg.mxu0
    %v2026 = vadd.f32 %v1953, %v2023
    %v2027 = vld [vmem:[#allocation2 + $0x9] ss:$0 sm:$0xff]
    %v2028 = vsel %vm167, %v1950, 0
    %2030 = vmatprep.subr.mxu0 0.0
    %2031 = vmatpush1.msra.mxu0 %v696
    %2032 = vmatprep.subr.mxu0 0.0
    %2033 = vmatpush1.msra.mxu0 %v697
    %2034 = vmatprep.subr.mxu0 0.0
    %2035 = vmatpush1.msra.mxu0 %v698
    %2036 = vmatprep.subr.mxu0 0.0
    %2037 = vmatpush1.msra.mxu0 %v699
    %2038 = vmatprep.subr.mxu0 0.0
    %2039 = vmatpush1.msra.mxu0 0.0
    %2040 = vmatprep.subr.mxu0 0.0
    %2041 = vmatpush1.msra.mxu0 0.0
    %2042 = vmatprep.subr.mxu0 0.0
    %2043 = vmatpush1.msra.mxu0 0.0
    %2044 = vmatprep.subr.mxu0 0.0
    %2045 = vmatpush1.msra.mxu0 0.0
    %2046 = vmatprep.subr.mxu0 0.0
    %2047 = vmatpush1.msra.mxu0 0.0
    %2048 = vmatprep.subr.mxu0 0.0
    %2049 = vmatpush1.msra.mxu0 0.0
    %2050 = vmatprep.subr.mxu0 0.0
    %2051 = vmatpush1.msra.mxu0 0.0
    %2052 = vmatprep.subr.mxu0 0.0
    %2053 = vmatpush1.msra.mxu0 0.0
    %2054 = vmatprep.subr.mxu0 0.0
    %2055 = vmatpush1.msra.mxu0 0.0
    %2056 = vmatprep.subr.mxu0 0.0
    %2057 = vmatpush1.msra.mxu0 0.0
    %2058 = vmatprep.subr.mxu0 0.0
    %2059 = vmatpush1.msra.mxu0 0.0
    %2060 = vmatprep.subr.mxu0 0.0
    %2061 = vmatpush1.msra.mxu0 0.0
    %2062 = vmatprep.subr.mxu0 0.0
    %2063 = vmatpush1.msra.mxu0 0.0
    %2064 = vmatprep.subr.mxu0 0.0
    %2065 = vmatpush1.msra.mxu0 0.0
    %2066 = vmatprep.subr.mxu0 0.0
    %2067 = vmatpush1.msra.mxu0 0.0
    %2068 = vmatprep.subr.mxu0 0.0
    %2069 = vmatpush1.msra.mxu0 0.0
    %2070 = vmatprep.subr.mxu0 0.0
    %2071 = vmatpush1.msra.mxu0 0.0
    %2072 = vmatprep.subr.mxu0 0.0
    %2073 = vmatpush1.msra.mxu0 0.0
    %2074 = vmatprep.subr.mxu0 0.0
    %2075 = vmatpush1.msra.mxu0 0.0
    %2076 = vmatprep.subr.mxu0 0.0
    %2077 = vmatpush1.msra.mxu0 0.0
    %2078 = vmatprep.subr.mxu0 0.0
    %2079 = vmatpush1.msra.mxu0 0.0
    %2080 = vmatprep.subr.mxu0 0.0
    %2081 = vmatpush1.msra.mxu0 0.0
    %2082 = vmatprep.subr.mxu0 0.0
    %2083 = vmatpush1.msra.mxu0 0.0
    %2084 = vmatprep.subr.mxu0 0.0
    %2085 = vmatpush1.msra.mxu0 0.0
    %2086 = vmatprep.subr.mxu0 0.0
    %2087 = vmatpush1.msra.mxu0 0.0
    %2088 = vmatprep.subr.mxu0 0.0
    %2089 = vmatpush1.msra.mxu0 0.0
    %2090 = vmatprep.subr.mxu0 0.0
    %2091 = vmatpush1.msra.mxu0 0.0
    %2092 = vmatprep.subr.mxu0 0.0
    %2093 = vmatpush1.msra.mxu0 0.0
    %2094 = vmatprep.mubr.f32.mxu0 0.0
    %2095 = vmatmul.mubr.f32.gmra.mrb[0].mxu0 %v2028
    %v2096 = vpop.f32.mrb[0].mxu0
    %v2097 = vadd.f32 0.0, %v2096
    %v2098 = vpop.f32.mrb[0].mxu0
    %2099 = vdwg.mxu0
    %v2100 = vadd.f32 %v2027, %v2097
    %v2101 = vtanh.pop %v2026
    %v2102 = vxor.u32 %v2026, 2147483648
    %v2103 = vmul.f32 %v2102, 1.442695
    %v2104 = vpow.pop %v2103
    %v2105 = vadd.f32 %v2104, 1.0
    %v2106 = vrcp.pop %v2105
    %v2107 = vmul.f32 1.0, %v2106
    %v2108 = vsel %vm704, %v2101, %v2107
    %v2109 = vmul.f32 %v2108, %v1911
    %2111 = vrot.lane.b32.xlu0 %v2108, 64
    %v2112 = vpop.permute.xlu0 %2111
    %v2114 = vmul.f32 %v2108, %v2112
    %2116 = vrot.lane.b32.xlu0 %v2114, 32
    %v2117 = vpop.permute.xlu0 %2116
    %v2119 = vadd.f32 %v2109, %v2117
    %v2120 = vtanh.pop %v2119
    %2122 = vrot.lane.b32.xlu0 %v2120, 64
    %v2123 = vpop.permute.xlu0 %2122
    %v2125 = vmul.f32 %v2108, %v2123
    %v2126 = vtanh.pop %v2100
    %v2127 = vxor.u32 %v2100, 2147483648
    %v2128 = vmul.f32 %v2127, 1.442695
    %v2129 = vpow.pop %v2128
    %v2130 = vadd.f32 %v2129, 1.0
    %v2131 = vrcp.pop %v2130
    %v2132 = vmul.f32 1.0, %v2131
    %v2133 = vsel %vm704, %v2126, %v2132
    %v2134 = vmul.f32 %v2133, %v1936
    %2136 = vrot.lane.b32.xlu0 %v2133, 64
    %v2137 = vpop.permute.xlu0 %2136
    %v2139 = vmul.f32 %v2133, %v2137
    %2141 = vrot.lane.b32.xlu0 %v2139, 32
    %v2142 = vpop.permute.xlu0 %2141
    %v2144 = vadd.f32 %v2134, %v2142
    %v2145 = vtanh.pop %v2144
    %2147 = vrot.lane.b32.xlu0 %v2145, 64
    %v2148 = vpop.permute.xlu0 %2147
    %v2150 = vmul.f32 %v2133, %v2148
    %2152 = vrot.lane.b32.xlu0 %v2125, 32
    %v2153 = vpop.permute.xlu0 %2152
    %2155 = vst.msk [vmem:[#allocation3 + $0x6] sm:$0x1] %vm906, %v2153
    %2157 = vrot.lane.b32.xlu0 %v2150, 32
    %v2158 = vpop.permute.xlu0 %2157
    %2160 = vst.msk [vmem:[#allocation4 + $0x1] sm:$0x1] %vm906, %v2158
    %v2161 = vld [vmem:[#allocation2 + $0x7] ss:$0 sm:$0xff]
    %v2162 = vsel %vm167, %v2153, 0
    %2164 = vmatprep.subr.mxu0 0.0
    %2165 = vmatpush1.msra.mxu0 %v692
    %2166 = vmatprep.subr.mxu0 0.0
    %2167 = vmatpush1.msra.mxu0 %v693
    %2168 = vmatprep.subr.mxu0 0.0
    %2169 = vmatpush1.msra.mxu0 %v694
    %2170 = vmatprep.subr.mxu0 0.0
    %2171 = vmatpush1.msra.mxu0 %v695
    %2172 = vmatprep.subr.mxu0 0.0
    %2173 = vmatpush1.msra.mxu0 0.0
    %2174 = vmatprep.subr.mxu0 0.0
    %2175 = vmatpush1.msra.mxu0 0.0
    %2176 = vmatprep.subr.mxu0 0.0
    %2177 = vmatpush1.msra.mxu0 0.0
    %2178 = vmatprep.subr.mxu0 0.0
    %2179 = vmatpush1.msra.mxu0 0.0
    %2180 = vmatprep.subr.mxu0 0.0
    %2181 = vmatpush1.msra.mxu0 0.0
    %2182 = vmatprep.subr.mxu0 0.0
    %2183 = vmatpush1.msra.mxu0 0.0
    %2184 = vmatprep.subr.mxu0 0.0
    %2185 = vmatpush1.msra.mxu0 0.0
    %2186 = vmatprep.subr.mxu0 0.0
    %2187 = vmatpush1.msra.mxu0 0.0
    %2188 = vmatprep.subr.mxu0 0.0
    %2189 = vmatpush1.msra.mxu0 0.0
    %2190 = vmatprep.subr.mxu0 0.0
    %2191 = vmatpush1.msra.mxu0 0.0
    %2192 = vmatprep.subr.mxu0 0.0
    %2193 = vmatpush1.msra.mxu0 0.0
    %2194 = vmatprep.subr.mxu0 0.0
    %2195 = vmatpush1.msra.mxu0 0.0
    %2196 = vmatprep.subr.mxu0 0.0
    %2197 = vmatpush1.msra.mxu0 0.0
    %2198 = vmatprep.subr.mxu0 0.0
    %2199 = vmatpush1.msra.mxu0 0.0
    %2200 = vmatprep.subr.mxu0 0.0
    %2201 = vmatpush1.msra.mxu0 0.0
    %2202 = vmatprep.subr.mxu0 0.0
    %2203 = vmatpush1.msra.mxu0 0.0
    %2204 = vmatprep.subr.mxu0 0.0
    %2205 = vmatpush1.msra.mxu0 0.0
    %2206 = vmatprep.subr.mxu0 0.0
    %2207 = vmatpush1.msra.mxu0 0.0
    %2208 = vmatprep.subr.mxu0 0.0
    %2209 = vmatpush1.msra.mxu0 0.0
    %2210 = vmatprep.subr.mxu0 0.0
    %2211 = vmatpush1.msra.mxu0 0.0
    %2212 = vmatprep.subr.mxu0 0.0
    %2213 = vmatpush1.msra.mxu0 0.0
    %2214 = vmatprep.subr.mxu0 0.0
    %2215 = vmatpush1.msra.mxu0 0.0
    %2216 = vmatprep.subr.mxu0 0.0
    %2217 = vmatpush1.msra.mxu0 0.0
    %2218 = vmatprep.subr.mxu0 0.0
    %2219 = vmatpush1.msra.mxu0 0.0
    %2220 = vmatprep.subr.mxu0 0.0
    %2221 = vmatpush1.msra.mxu0 0.0
    %2222 = vmatprep.subr.mxu0 0.0
    %2223 = vmatpush1.msra.mxu0 0.0
    %2224 = vmatprep.subr.mxu0 0.0
    %2225 = vmatpush1.msra.mxu0 0.0
    %2226 = vmatprep.subr.mxu0 0.0
    %2227 = vmatpush1.msra.mxu0 0.0
    %2228 = vmatprep.mubr.f32.mxu0 0.0
    %2229 = vmatmul.mubr.f32.gmra.mrb[0].mxu0 %v2162
    %v2230 = vpop.f32.mrb[0].mxu0
    %v2231 = vadd.f32 0.0, %v2230
    %v2232 = vpop.f32.mrb[0].mxu0
    %2233 = vdwg.mxu0
    %v2234 = vadd.f32 %v2161, %v2231
    %v2235 = vld [vmem:[#allocation2 + $0x8] ss:$0 sm:$0xff]
    %v2236 = vsel %vm167, %v2158, 0
    %2238 = vmatprep.subr.mxu0 0.0
    %2239 = vmatpush1.msra.mxu0 %v696
    %2240 = vmatprep.subr.mxu0 0.0
    %2241 = vmatpush1.msra.mxu0 %v697
    %2242 = vmatprep.subr.mxu0 0.0
    %2243 = vmatpush1.msra.mxu0 %v698
    %2244 = vmatprep.subr.mxu0 0.0
    %2245 = vmatpush1.msra.mxu0 %v699
    %2246 = vmatprep.subr.mxu0 0.0
    %2247 = vmatpush1.msra.mxu0 0.0
    %2248 = vmatprep.subr.mxu0 0.0
    %2249 = vmatpush1.msra.mxu0 0.0
    %2250 = vmatprep.subr.mxu0 0.0
    %2251 = vmatpush1.msra.mxu0 0.0
    %2252 = vmatprep.subr.mxu0 0.0
    %2253 = vmatpush1.msra.mxu0 0.0
    %2254 = vmatprep.subr.mxu0 0.0
    %2255 = vmatpush1.msra.mxu0 0.0
    %2256 = vmatprep.subr.mxu0 0.0
    %2257 = vmatpush1.msra.mxu0 0.0
    %2258 = vmatprep.subr.mxu0 0.0
    %2259 = vmatpush1.msra.mxu0 0.0
    %2260 = vmatprep.subr.mxu0 0.0
    %2261 = vmatpush1.msra.mxu0 0.0
    %2262 = vmatprep.subr.mxu0 0.0
    %2263 = vmatpush1.msra.mxu0 0.0
    %2264 = vmatprep.subr.mxu0 0.0
    %2265 = vmatpush1.msra.mxu0 0.0
    %2266 = vmatprep.subr.mxu0 0.0
    %2267 = vmatpush1.msra.mxu0 0.0
    %2268 = vmatprep.subr.mxu0 0.0
    %2269 = vmatpush1.msra.mxu0 0.0
    %2270 = vmatprep.subr.mxu0 0.0
    %2271 = vmatpush1.msra.mxu0 0.0
    %2272 = vmatprep.subr.mxu0 0.0
    %2273 = vmatpush1.msra.mxu0 0.0
    %2274 = vmatprep.subr.mxu0 0.0
    %2275 = vmatpush1.msra.mxu0 0.0
    %2276 = vmatprep.subr.mxu0 0.0
    %2277 = vmatpush1.msra.mxu0 0.0
    %2278 = vmatprep.subr.mxu0 0.0
    %2279 = vmatpush1.msra.mxu0 0.0
    %2280 = vmatprep.subr.mxu0 0.0
    %2281 = vmatpush1.msra.mxu0 0.0
    %2282 = vmatprep.subr.mxu0 0.0
    %2283 = vmatpush1.msra.mxu0 0.0
    %2284 = vmatprep.subr.mxu0 0.0
    %2285 = vmatpush1.msra.mxu0 0.0
    %2286 = vmatprep.subr.mxu0 0.0
    %2287 = vmatpush1.msra.mxu0 0.0
    %2288 = vmatprep.subr.mxu0 0.0
    %2289 = vmatpush1.msra.mxu0 0.0
    %2290 = vmatprep.subr.mxu0 0.0
    %2291 = vmatpush1.msra.mxu0 0.0
    %2292 = vmatprep.subr.mxu0 0.0
    %2293 = vmatpush1.msra.mxu0 0.0
    %2294 = vmatprep.subr.mxu0 0.0
    %2295 = vmatpush1.msra.mxu0 0.0
    %2296 = vmatprep.subr.mxu0 0.0
    %2297 = vmatpush1.msra.mxu0 0.0
    %2298 = vmatprep.subr.mxu0 0.0
    %2299 = vmatpush1.msra.mxu0 0.0
    %2300 = vmatprep.subr.mxu0 0.0
    %2301 = vmatpush1.msra.mxu0 0.0
    %2302 = vmatprep.mubr.f32.mxu0 0.0
    %2303 = vmatmul.mubr.f32.gmra.mrb[0].mxu0 %v2236
    %v2304 = vpop.f32.mrb[0].mxu0
    %v2305 = vadd.f32 0.0, %v2304
    %v2306 = vpop.f32.mrb[0].mxu0
    %2307 = vdwg.mxu0
    %v2308 = vadd.f32 %v2235, %v2305
    %v2309 = vtanh.pop %v2234
    %v2310 = vxor.u32 %v2234, 2147483648
    %v2311 = vmul.f32 %v2310, 1.442695
    %v2312 = vpow.pop %v2311
    %v2313 = vadd.f32 %v2312, 1.0
    %v2314 = vrcp.pop %v2313
    %v2315 = vmul.f32 1.0, %v2314
    %v2316 = vsel %vm704, %v2309, %v2315
    %v2317 = vmul.f32 %v2316, %v2119
    %2319 = vrot.lane.b32.xlu0 %v2316, 64
    %v2320 = vpop.permute.xlu0 %2319
    %v2322 = vmul.f32 %v2316, %v2320
    %2324 = vrot.lane.b32.xlu0 %v2322, 32
    %v2325 = vpop.permute.xlu0 %2324
    %v2327 = vadd.f32 %v2317, %v2325
    %v2328 = vtanh.pop %v2327
    %2330 = vrot.lane.b32.xlu0 %v2328, 64
    %v2331 = vpop.permute.xlu0 %2330
    %v2333 = vmul.f32 %v2316, %v2331
    %v2334 = vtanh.pop %v2308
    %v2335 = vxor.u32 %v2308, 2147483648
    %v2336 = vmul.f32 %v2335, 1.442695
    %v2337 = vpow.pop %v2336
    %v2338 = vadd.f32 %v2337, 1.0
    %v2339 = vrcp.pop %v2338
    %v2340 = vmul.f32 1.0, %v2339
    %v2341 = vsel %vm704, %v2334, %v2340
    %v2342 = vmul.f32 %v2341, %v2144
    %2344 = vrot.lane.b32.xlu0 %v2341, 64
    %v2345 = vpop.permute.xlu0 %2344
    %v2347 = vmul.f32 %v2341, %v2345
    %2349 = vrot.lane.b32.xlu0 %v2347, 32
    %v2350 = vpop.permute.xlu0 %2349
    %v2352 = vadd.f32 %v2342, %v2350
    %v2353 = vtanh.pop %v2352
    %2355 = vrot.lane.b32.xlu0 %v2353, 64
    %v2356 = vpop.permute.xlu0 %2355
    %v2358 = vmul.f32 %v2341, %v2356
    %2360 = vrot.lane.b32.xlu0 %v2333, 32
    %v2361 = vpop.permute.xlu0 %2360
    %2363 = vst.msk [vmem:[#allocation3 + $0x7] sm:$0x1] %vm906, %v2361
    %2365 = vrot.lane.b32.xlu0 %v2358, 32
    %v2366 = vpop.permute.xlu0 %2365
    %2368 = vst.msk [vmem:[#allocation4] sm:$0x1] %vm906, %v2366
    %v2369 = vld [vmem:[#allocation3] sm:$0xff]
    %v2370 = vld [vmem:[%s21] sm:$0x1]
    %v2371 = vld [vmem:[%s22] sm:$0x1]
    %v2372 = vsel %vm167, %v2369, 0.0
    %v2373 = vrot.slane %v2372, 4
    %v2374 = vadd.f32 %v2372, %v2373
    %v2375 = vrot.slane %v2374, 2
    %v2376 = vadd.f32 %v2374, %v2375
    %v2377 = vrot.slane %v2376, 1
    %v2378 = vadd.f32 %v2376, %v2377
    %v2379 = vmul.f32 %v2378, %v175
    %v2380 = vsub.f32 %v2369, %v2379
    %v2381 = vmul.f32 %v2380, %v2380
    %v2382 = vsel %vm167, %v2381, 0.0
    %v2383 = vrot.slane %v2382, 4
    %v2384 = vadd.f32 %v2382, %v2383
    %v2385 = vrot.slane %v2384, 2
    %v2386 = vadd.f32 %v2384, %v2385
    %v2387 = vrot.slane %v2386, 1
    %v2388 = vadd.f32 %v2386, %v2387
    %v2389 = vmul.f32 %v2388, %v175
    %v2390 = vadd.f32 %v2389, 1e-05
    %v2391 = vrsqrt.pop %v2390
    %v2392 = vmul.f32 %v2380, %v2391
    %v2394 = vlaneseq
    %v2395 = vshrl.u32 %v2394, 7
    %v2396 = vsub.s32 0, %v2395
    %v2397 = vrot.slane %v2370, %v2396
    %v2399 = vmul.f32 %v2392, %v2397
    %v2401 = vlaneseq
    %v2402 = vshrl.u32 %v2401, 7
    %v2403 = vsub.s32 0, %v2402
    %v2404 = vrot.slane %v2371, %v2403
    %v2406 = vadd.f32 %v2399, %v2404
    %v2407 = vxor.u32 %v2406, 2147483648
    %v2408 = vmul.f32 %v2407, 1.442695
    %v2409 = vpow.pop %v2408
    %v2410 = vadd.f32 %v2409, 1.0
    %v2411 = vrcp.pop %v2410
    %v2412 = vmul.f32 1.0, %v2411
    %v2413 = vmul.f32 %v2406, %v2412
    %2414 = vst.msk [vmem:[#allocation5] sm:$0xff] %vm167, %v2413
    %v2415 = vld [vmem:[#allocation4] sm:$0xff]
    %v2416 = vld [vmem:[%s23] sm:$0x1]
    %v2417 = vld [vmem:[%s24] sm:$0x1]
    %v2418 = vsel %vm167, %v2415, 0.0
    %v2419 = vrot.slane %v2418, 4
    %v2420 = vadd.f32 %v2418, %v2419
    %v2421 = vrot.slane %v2420, 2
    %v2422 = vadd.f32 %v2420, %v2421
    %v2423 = vrot.slane %v2422, 1
    %v2424 = vadd.f32 %v2422, %v2423
    %v2425 = vmul.f32 %v2424, %v175
    %v2426 = vsub.f32 %v2415, %v2425
    %v2427 = vmul.f32 %v2426, %v2426
    %v2428 = vsel %vm167, %v2427, 0.0
    %v2429 = vrot.slane %v2428, 4
    %v2430 = vadd.f32 %v2428, %v2429
    %v2431 = vrot.slane %v2430, 2
    %v2432 = vadd.f32 %v2430, %v2431
    %v2433 = vrot.slane %v2432, 1
    %v2434 = vadd.f32 %v2432, %v2433
    %v2435 = vmul.f32 %v2434, %v175
    %v2436 = vadd.f32 %v2435, 1e-05
    %v2437 = vrsqrt.pop %v2436
    %v2438 = vmul.f32 %v2426, %v2437
    %v2440 = vlaneseq
    %v2441 = vshrl.u32 %v2440, 7
    %v2442 = vsub.s32 0, %v2441
    %v2443 = vrot.slane %v2416, %v2442
    %v2445 = vmul.f32 %v2438, %v2443
    %v2447 = vlaneseq
    %v2448 = vshrl.u32 %v2447, 7
    %v2449 = vsub.s32 0, %v2448
    %v2450 = vrot.slane %v2417, %v2449
    %v2452 = vadd.f32 %v2445, %v2450
    %v2453 = vxor.u32 %v2452, 2147483648
    %v2454 = vmul.f32 %v2453, 1.442695
    %v2455 = vpow.pop %v2454
    %v2456 = vadd.f32 %v2455, 1.0
    %v2457 = vrcp.pop %v2456
    %v2458 = vmul.f32 1.0, %v2457
    %v2459 = vmul.f32 %v2452, %v2458
    %2461 = vrot.lane.b32.xlu0 %v2459, 32
    %v2462 = vpop.permute.xlu0 %2461
    %vm2464 = vcmask 523520
    %2465 = vst.msk [vmem:[#allocation5] sm:$0xff] %vm2464, %v2462
    // Predicated region
    $region102: #{split_model_forward.1} parent=1 // pred_check
      _
    $region103: #{split_model_forward.1} parent=1 // pred_check_branch
      %2467 = sbr.rel (0) target = $region105
    $region104: #{split_model_forward.1} parent=1 // pred_region
      %s2469 = ssub.s32 128, 128
      %2470 = vsyncadd [#allocation6], %s2469
      %s2472 = sshll.u32 [#allocation5], 4
      %s2473 = int_to_ptr.vmem [resolvable:$true] %s2472
      %2475 = dma.vmem_to_hbm [thread:$0]  %s2473, 128, %s25, [#allocation6]
    $region105: #{split_model_forward.1} parent=1 // pred_fallthru
      _
    // Predicated region
    $region106: #{split_model_forward.1} parent=1 // pred_check
      _
    $region107: #{split_model_forward.1} parent=1 // pred_check_branch
      %2477 = sbr.rel (0) target = $region109
    $region108: #{split_model_forward.1} parent=1 // pred_region
      %2478 = dma.done [#allocation6], 128
    $region109: #{split_model_forward.1} parent=1 // pred_fallthru
      _
    %2479 = vsyncpa [#allocation6], 1

</llo_original>
